<compile_context>
chip_gen: v5e
topology: v5e:2x2
jax: 0.10.0
libtpu: 0.0.40
codegen_flags: <defaults>
</compile_context>

<pallas_src>
import functools

import jax
import jax.numpy as jnp
from jax.experimental import pallas as pl
from jax.experimental.pallas import tpu as pltpu


def _round_up(x, m):
    return (x + m - 1) // m * m


@functools.lru_cache(maxsize=None)
def _roll_sign():
    """Probe pltpu.roll's shift convention on this backend.

    Returns -1 if pltpu.roll matches jnp.roll (result[i] = x[i - shift]),
    +1 for the opposite convention, None if roll is unusable (-> slice/concat
    shift fallback inside the kernel).  Runs outside jit.
    """
    def probe(o_ref):
        o_ref[...] = pltpu.roll(
            jax.lax.broadcasted_iota(jnp.int32, (8, 128), 0), shift=1, axis=0)

    try:
        r = pl.pallas_call(
            probe, out_shape=jax.ShapeDtypeStruct((8, 128), jnp.int32))()
        v = int(jax.device_get(r[0, 0]))
    except Exception:
        return None
    if v == 7:       # result[0] = x[-1]  -> jnp.roll convention
        return -1
    if v == 1:       # result[0] = x[+1]  -> opposite convention
        return 1
    return None


def _vmem_capacity_bytes():
    """Best-effort VMEM capacity query; falls back to the v7x 64 MiB floor."""
    try:
        info = pltpu.get_tpu_info()
        for attr in ("vmem_capacity_bytes", "vmem_size_bytes", "vmem_bytes",
                     "vmem_capacity"):
            v = getattr(info, attr, None)
            if v:
                return int(v)
    except Exception:
        pass
    return 64 * 1024 * 1024


def _rcu_kernel(xm_ref, xh_ref, vm_ref, w1_ref, b1_ref, w2_ref, b2_ref, ws_ref,
                o_ref, *, TH, Wp, roll_sign):
    """Fused conv1 + SiLU + conv2 + bias + skip for one (batch, row-tile)."""
    M1 = (TH + 4) * Wp
    f32 = jnp.float32

    def shift_fwd(y, d):
        # y'[i] = y[i + d] for i < M1 - d.  Wrapped values at the tail only
        # land at window positions that are masked by the validity mask or
        # cropped from the output (requires Wp >= W + 4, asserted in wrapper).
        if d == 0:
            return y
        if roll_sign is None:
            return jnp.concatenate([y[d:], y[:d]], axis=0)
        return pltpu.roll(y, shift=(roll_sign * d) % M1, axis=0)

    def conv3x3(op_f32, w_ref):
        # 3x3 conv over the flattened (rows*Wp, C) window as 3 stacked-K
        # matmuls: the kw taps are concatenated along K (the MXU accumulates
        # them), the kh taps are 3 dots whose f32 results are row-shifted
        # (XLU, co-issues with the MXU) and added.
        stk = jnp.concatenate(
            [op_f32.astype(jnp.bfloat16),
             shift_fwd(op_f32, 1).astype(jnp.bfloat16),
             shift_fwd(op_f32, 2).astype(jnp.bfloat16)], axis=1)
        acc = jnp.dot(stk, w_ref[0], preferred_element_type=f32)
        acc = acc + shift_fwd(
            jnp.dot(stk, w_ref[1], preferred_element_type=f32), Wp)
        acc = acc + shift_fwd(
            jnp.dot(stk, w_ref[2], preferred_element_type=f32), 2 * Wp)
        return acc

    # (TH+4)-row window of the spatially padded image: main rows + 4-row halo.
    xw = jnp.concatenate([xm_ref[0], xh_ref[0]], axis=0)          # (M1, Ci) bf16

    # Skip projection first so the raw window's live range ends early.
    skip = shift_fwd(
        jnp.dot(xw, ws_ref[...], preferred_element_type=f32), 2 * Wp + 2)

    xf = xw.astype(f32)
    s = xf * jax.nn.sigmoid(xf)                                   # SiLU(x), f32

    y1 = conv3x3(s, w1_ref) + b1_ref[...]                         # conv1 + b1

    # conv1 outputs outside the true HxW image must behave as zeros for
    # conv2's zero padding: multiply by the precomputed {0,1} validity mask.
    z = y1 * jax.nn.sigmoid(y1) * vm_ref[0]                       # SiLU + mask

    out = conv3x3(z, w2_ref) + b2_ref[...] + skip                 # conv2+b2+skip
    o_ref[0] = out[:TH * Wp, :].astype(o_ref.dtype)


def _pick_tile_rows(B, H, W, ci, co, out_bytes, budget_bytes):
    """Largest TH (multiple of 8) whose per-step live VMEM fits the budget,
    shrunk until the grid has >=4 parallel steps (keeps multi-TC chips busy)."""
    wp = _round_up(W + 4, 8)
    # Grid-invariant bf16 weights/biases, double-buffered by the pipeline.
    # TODO(synk): pl.Buffered(1) on those specs would halve this once needed.
    fixed = 2 * 2 * (3 * 3 * ci * co + 3 * 3 * co * co + ci * co + 2 * co)
    budget = budget_bytes - fixed
    h_cap = _round_up(max(H, 8), 8)
    best = 8
    th = 8
    while th <= h_cap:
        m1 = (th + 4) * wp
        est = (2 * (th * wp + 4 * wp) * ci * 2      # 2x-buffered x blocks (bf16)
               + 2 * m1 * 4                         # 2x-buffered validity mask
               + 2 * th * wp * co * out_bytes       # 2x-buffered output block
               + m1 * (8 * ci + 20 * co))           # in-kernel live slabs (est.)
        if int(est * 1.25) > budget:
            break
        best = th
        th += 8
    th = min(best, h_cap)
    while th > 8 and B * (-(-H // th)) < 4:
        th -= 8
    return th, wp


def residual_conv_unit(x_nchw, w1, b1, w2, b2, w_skip=None, *, tile_rows=None):
    """Fused ResidualConvUnit forward.

    x_nchw: (B, Cin, H, W);  w1: (3,3,Cin,Cout) HWIO;  w2: (3,3,Cout,Cout);
    b1, b2: (Cout,);  w_skip: (Cin, Cout) 1x1 projection, or None for the
    nn.Identity skip (requires Cin == Cout).
    """
    B, Cin, H, W = x_nchw.shape
    Cout = w1.shape[-1]
    if w_skip is None:
        assert Cin == Cout, "identity skip requires in_channels == out_channels"
        w_skip = jnp.eye(Cin, dtype=x_nchw.dtype)

    Ci = _round_up(Cin, 128)                     # lane-dense contraction dim
    Co = _round_up(Cout, 128)                    # lane-dense output dim
    out_bytes = jnp.dtype(x_nchw.dtype).itemsize

    vmem_cap = _vmem_capacity_bytes()
    vmem_limit = max(min(vmem_cap - (4 << 20), 100 << 20), 32 << 20)

    if tile_rows is not None:
        TH = _round_up(max(int(tile_rows), 8), 8)
        Wp = _round_up(W + 4, 8)
    else:
        TH, Wp = _pick_tile_rows(B, H, W, Ci, Co, out_bytes,
                                 int(vmem_limit * 0.8))
    TH = min(TH, _round_up(H, 8))
    assert TH % 8 == 0 and Wp % 8 == 0 and Wp >= W + 4
    H_eff = _round_up(H, TH)
    nH = H_eff // TH
    M1 = (TH + 4) * Wp

    # NHWC bf16 in HBM (halves input DMA; MXU operands are bf16 anyway),
    # 2-px spatial halo + row/col round-up, channels padded to a lane multiple,
    # (rows, cols) flattened into one matmul M dimension.
    # TODO(synk): with an NHWC surrounding model (or in-VMEM channel padding
    # for narrow Cin) these wrapper transposes/pads could be folded away.
    x = jnp.transpose(x_nchw, (0, 2, 3, 1)).astype(jnp.bfloat16)
    x = jnp.pad(x, ((0, 0), (2, H_eff + 2 - H), (2, Wp - W - 2), (0, Ci - Cin)))
    x_flat = x.reshape(B, (H_eff + 4) * Wp, Ci)

    # Weights: channel-pad, cast to bf16, stack the kw taps along K so the MXU
    # accumulates them (K = 3*C per dot); the kh taps stay as the leading dim.
    w1p = jnp.pad(w1, ((0, 0), (0, 0), (0, Ci - Cin), (0, Co - Cout))
                  ).astype(jnp.bfloat16).reshape(3, 3 * Ci, Co)
    w2p = jnp.pad(w2, ((0, 0), (0, 0), (0, Co - Cout), (0, Co - Cout))
                  ).astype(jnp.bfloat16).reshape(3, 3 * Co, Co)
    wsp = jnp.pad(w_skip, ((0, Ci - Cin), (0, Co - Cout))).astype(jnp.bfloat16)
    b1p = jnp.pad(b1, (0, Co - Cout)).astype(jnp.float32).reshape(1, Co)
    b2p = jnp.pad(b2, (0, Co - Cout)).astype(jnp.float32).reshape(1, Co)

    # Per-tile {0,1} validity of conv1 outputs (inside the true HxW image) in
    # the kernel's flattened window layout: window (i, j) of tile h is the
    # conv1 output at global (h*TH + i - 1, j - 1).
    pr = jnp.arange(H_eff + 4, dtype=jnp.int32)
    pc = jnp.arange(Wp, dtype=jnp.int32)
    valid_full = (((pr >= 1) & (pr <= H))[:, None]
                  & ((pc >= 1) & (pc <= W))[None, :]).astype(jnp.float32)
    rows = (jnp.arange(nH, dtype=jnp.int32)[:, None] * TH
            + jnp.arange(TH + 4, dtype=jnp.int32)[None, :])
    valid_tiles = valid_full[rows].reshape(nH, M1, 1)

    def build(roll_sign):
        kernel = functools.partial(_rcu_kernel, TH=TH, Wp=Wp,
                                   roll_sign=roll_sign)
        return pl.pallas_call(
            kernel,
            out_shape=jax.ShapeDtypeStruct((B, H_eff * Wp, Co), x_nchw.dtype),
            grid=(B, nH),
            in_specs=[
                pl.BlockSpec((1, TH * Wp, Ci), lambda b, h: (b, h, 0)),
                pl.BlockSpec((1, 4 * Wp, Ci),
                             lambda b, h: (b, (h + 1) * (TH // 4), 0)),
                pl.BlockSpec((1, M1, 1), lambda b, h: (h, 0, 0)),
                pl.BlockSpec((3, 3 * Ci, Co), lambda b, h: (0, 0, 0)),
                pl.BlockSpec((1, Co), lambda b, h: (0, 0)),
                pl.BlockSpec((3, 3 * Co, Co), lambda b, h: (0, 0, 0)),
                pl.BlockSpec((1, Co), lambda b, h: (0, 0)),
                pl.BlockSpec((Ci, Co), lambda b, h: (0, 0)),
            ],
            out_specs=pl.BlockSpec((1, TH * Wp, Co), lambda b, h: (b, h, 0)),
            compiler_params=pltpu.CompilerParams(
                dimension_semantics=("parallel", "parallel"),
                vmem_limit_bytes=int(vmem_limit)),
        )

    args = (x_flat, x_flat, valid_tiles, w1p, b1p, w2p, b2p, wsp)
    sign = _roll_sign()
    if sign is None:
        out_flat = build(None)(*args)
    else:
        try:
            out_flat = build(sign)(*args)
        except Exception:
            # pltpu.roll failed to lower for these shapes; retry with the
            # slice+concat shift path (correct, slower).  Real bugs re-raise
            # from the fallback.  (Only effective outside an enclosing jit.)
            out_flat = build(None)(*args)

    out = out_flat.reshape(B, H_eff, Wp, Co)[:, :H, :W, :Cout]
    return jnp.transpose(out, (0, 3, 1, 2))          # back to NCHW


def _reference(x_nchw, w1, b1, w2, b2, w_skip):
    def conv3x3(x, w_hwio, b):
        y = jax.lax.conv_general_dilated(
            x, w_hwio, window_strides=(1, 1), padding="SAME",
            dimension_numbers=("NCHW", "HWIO", "NCHW"))
        return y + b[None, :, None, None]

    out = conv3x3(jax.nn.silu(x_nchw), w1, b1)
    out = conv3x3(jax.nn.silu(out), w2, b2)
    skip = jax.lax.conv_general_dilated(
        x_nchw, w_skip[None, None, :, :], (1, 1), "SAME",
        dimension_numbers=("NCHW", "HWIO", "NCHW"))
    return out + skip


if __name__ == "__main__":
    def run_case(key, B, Cin, Cout, H, W, identity_skip, tile_rows=None):
        ks = jax.random.split(key, 6)
        x = jax.random.normal(ks[0], (B, Cin, H, W), jnp.float32)        # NCHW
        w1 = jax.random.normal(ks[1], (3, 3, Cin, Cout), jnp.float32) * 0.1
        b1 = jax.random.normal(ks[2], (Cout,), jnp.float32) * 0.1
        w2 = jax.random.normal(ks[3], (3, 3, Cout, Cout), jnp.float32) * 0.1
        b2 = jax.random.normal(ks[4], (Cout,), jnp.float32) * 0.1
        if identity_skip:
            ws, ws_ref = None, jnp.eye(Cin, dtype=jnp.float32)
        else:
            ws = jax.random.normal(ks[5], (Cin, Cout), jnp.float32) * 0.1
            ws_ref = ws

        out = jax.block_until_ready(
            residual_conv_unit(x, w1, b1, w2, b2, ws, tile_rows=tile_rows))
        ref = jax.block_until_ready(_reference(x, w1, b1, w2, b2, ws_ref))
        assert out.shape == (B, Cout, H, W), out.shape
        err = float(jnp.max(jnp.abs(out - ref)))
        # bf16 inputs / weights on the MXU (f32 accumulation) vs all-f32 ref.
        assert err < 5e-2, f"max abs error {err}"

    key = jax.random.PRNGKey(0)
    k1, k2 = jax.random.split(key)
    # Cin != Cout (1x1 skip projection); auto tiling -> 2 row tiles per image,
    # exercising the halo fetch and the boundary mask across tiles.
    run_case(k1, B=2, Cin=4, Cout=8, H=16, W=16, identity_skip=False)
    # Identity skip, W not a multiple of 8, H not a multiple of the tile rows.
    run_case(k2, B=1, Cin=8, Cout=8, H=13, W=10, identity_skip=True,
             tile_rows=8)
    print("KERNEL_OK")
</pallas_src>

<mosaic_0001>
module attributes {stable_mosaic.version = 11 : i64} {
  func.func @_rcu_kernel(%arg0: i32, %arg1: i32, %arg2: memref<1x192x128xbf16, #tpu.memory_space<vmem>>, %arg3: memref<1x96x128xbf16, #tpu.memory_space<vmem>>, %arg4: memref<1x288x1xf32, #tpu.memory_space<vmem>>, %arg5: memref<3x384x128xbf16, #tpu.memory_space<vmem>>, %arg6: memref<1x128xf32, #tpu.memory_space<vmem>>, %arg7: memref<3x384x128xbf16, #tpu.memory_space<vmem>>, %arg8: memref<1x128xf32, #tpu.memory_space<vmem>>, %arg9: memref<128x128xbf16, #tpu.memory_space<vmem>>, %arg10: memref<1x192x128xf32, #tpu.memory_space<vmem>>) attributes {dimension_semantics = [#tpu.dimension_semantics<parallel>, #tpu.dimension_semantics<parallel>], iteration_bounds = array<i64: 2, 2>, scalar_prefetch = 0 : i64, scratch_operands = 0 : i64, tpu.core_type = #tpu.core_type<tc>, window_params = [{transform_indices = @transform_0, window_bounds = array<i64: 1, 192, 128>}, {transform_indices = @transform_1, window_bounds = array<i64: 1, 96, 128>}, {transform_indices = @transform_2, window_bounds = array<i64: 1, 288, 1>}, {pipeline_mode = #tpu.pipeline_mode<synchronous>, transform_indices = @transform_3, window_bounds = array<i64: 3, 384, 128>}, {pipeline_mode = #tpu.pipeline_mode<synchronous>, transform_indices = @transform_4, window_bounds = array<i64: 1, 128>}, {pipeline_mode = #tpu.pipeline_mode<synchronous>, transform_indices = @transform_5, window_bounds = array<i64: 3, 384, 128>}, {pipeline_mode = #tpu.pipeline_mode<synchronous>, transform_indices = @transform_6, window_bounds = array<i64: 1, 128>}, {pipeline_mode = #tpu.pipeline_mode<synchronous>, transform_indices = @transform_7, window_bounds = array<i64: 128, 128>}, {transform_indices = @transform_8, window_bounds = array<i64: 1, 192, 128>}]} {
    %c0 = arith.constant 0 : index
    %c0_0 = arith.constant 0 : index
    %c0_1 = arith.constant 0 : index
    %0 = vector.load %arg2[%c0, %c0_0, %c0_1] : memref<1x192x128xbf16, #tpu.memory_space<vmem>>, vector<1x192x128xbf16>
    %1 = vector.shape_cast %0 : vector<1x192x128xbf16> to vector<192x128xbf16>
    %c0_2 = arith.constant 0 : index
    %c0_3 = arith.constant 0 : index
    %c0_4 = arith.constant 0 : index
    %2 = vector.load %arg3[%c0_2, %c0_3, %c0_4] : memref<1x96x128xbf16, #tpu.memory_space<vmem>>, vector<1x96x128xbf16>
    %3 = vector.shape_cast %2 : vector<1x96x128xbf16> to vector<96x128xbf16>
    %4 = tpu.concatenate %1, %3 in 0 : vector<192x128xbf16>, vector<96x128xbf16> -> vector<288x128xbf16>
    %c0_5 = arith.constant 0 : index
    %c0_6 = arith.constant 0 : index
    %5 = vector.load %arg9[%c0_5, %c0_6] : memref<128x128xbf16, #tpu.memory_space<vmem>>, vector<128x128xbf16>
    %cst = arith.constant dense<0.000000e+00> : vector<288x128xf32>
    %6 = tpu.matmul %4, %5, %cst {dimension_numbers = #tpu.dot_dimension_numbers<[1], [0], [0], [1], [0, 0, 1, 1], [], []>} : vector<288x128xbf16>, vector<128x128xbf16>, vector<288x128xf32> -> vector<288x128xf32>
    %7 = vector.extract_strided_slice %6 {offsets = [50, 0], sizes = [238, 128], strides = [1, 1]} : vector<288x128xf32> to vector<238x128xf32>
    %8 = vector.extract_strided_slice %6 {offsets = [0, 0], sizes = [50, 128], strides = [1, 1]} : vector<288x128xf32> to vector<50x128xf32>
    %9 = tpu.concatenate %7, %8 in 0 : vector<238x128xf32>, vector<50x128xf32> -> vector<288x128xf32>
    %10 = arith.extf %4 : vector<288x128xbf16> to vector<288x128xf32>
    %11 = arith.negf %10 : vector<288x128xf32>
    %12 = math.exp %11 : vector<288x128xf32>
    %cst_7 = arith.constant 1.000000e+00 : f32
    %13 = vector.broadcast %cst_7 : f32 to vector<288x128xf32>
    %14 = arith.addf %13, %12 : vector<288x128xf32>
    %15 = arith.divf %13, %14 : vector<288x128xf32>
    %16 = arith.mulf %10, %15 : vector<288x128xf32>
    %17 = arith.truncf %16 : vector<288x128xf32> to vector<288x128xbf16>
    %18 = vector.extract_strided_slice %16 {offsets = [1, 0], sizes = [287, 128], strides = [1, 1]} : vector<288x128xf32> to vector<287x128xf32>
    %19 = vector.extract_strided_slice %16 {offsets = [0, 0], sizes = [1, 128], strides = [1, 1]} : vector<288x128xf32> to vector<1x128xf32>
    %20 = tpu.concatenate %18, %19 in 0 : vector<287x128xf32>, vector<1x128xf32> -> vector<288x128xf32>
    %21 = arith.truncf %20 : vector<288x128xf32> to vector<288x128xbf16>
    %22 = vector.extract_strided_slice %16 {offsets = [2, 0], sizes = [286, 128], strides = [1, 1]} : vector<288x128xf32> to vector<286x128xf32>
    %23 = vector.extract_strided_slice %16 {offsets = [0, 0], sizes = [2, 128], strides = [1, 1]} : vector<288x128xf32> to vector<2x128xf32>
    %24 = tpu.concatenate %22, %23 in 0 : vector<286x128xf32>, vector<2x128xf32> -> vector<288x128xf32>
    %25 = arith.truncf %24 : vector<288x128xf32> to vector<288x128xbf16>
    %26 = tpu.concatenate %17, %21, %25 in 1 : vector<288x128xbf16>, vector<288x128xbf16>, vector<288x128xbf16> -> vector<288x384xbf16>
    %c0_8 = arith.constant 0 : index
    %c0_9 = arith.constant 0 : index
    %c0_10 = arith.constant 0 : index
    %27 = vector.load %arg5[%c0_8, %c0_9, %c0_10] : memref<3x384x128xbf16, #tpu.memory_space<vmem>>, vector<1x384x128xbf16>
    %28 = vector.shape_cast %27 : vector<1x384x128xbf16> to vector<384x128xbf16>
    %cst_11 = arith.constant dense<0.000000e+00> : vector<288x128xf32>
    %29 = tpu.matmul %26, %28, %cst_11 {dimension_numbers = #tpu.dot_dimension_numbers<[1], [0], [0], [1], [0, 0, 1, 1], [], []>} : vector<288x384xbf16>, vector<384x128xbf16>, vector<288x128xf32> -> vector<288x128xf32>
    %c1 = arith.constant 1 : index
    %c0_12 = arith.constant 0 : index
    %c0_13 = arith.constant 0 : index
    %30 = vector.load %arg5[%c1, %c0_12, %c0_13] : memref<3x384x128xbf16, #tpu.memory_space<vmem>>, vector<1x384x128xbf16>
    %31 = vector.shape_cast %30 : vector<1x384x128xbf16> to vector<384x128xbf16>
    %cst_14 = arith.constant dense<0.000000e+00> : vector<288x128xf32>
    %32 = tpu.matmul %26, %31, %cst_14 {dimension_numbers = #tpu.dot_dimension_numbers<[1], [0], [0], [1], [0, 0, 1, 1], [], []>} : vector<288x384xbf16>, vector<384x128xbf16>, vector<288x128xf32> -> vector<288x128xf32>
    %33 = vector.extract_strided_slice %32 {offsets = [24, 0], sizes = [264, 128], strides = [1, 1]} : vector<288x128xf32> to vector<264x128xf32>
    %34 = vector.extract_strided_slice %32 {offsets = [0, 0], sizes = [24, 128], strides = [1, 1]} : vector<288x128xf32> to vector<24x128xf32>
    %35 = tpu.concatenate %33, %34 in 0 : vector<264x128xf32>, vector<24x128xf32> -> vector<288x128xf32>
    %36 = arith.addf %29, %35 : vector<288x128xf32>
    %c2 = arith.constant 2 : index
    %c0_15 = arith.constant 0 : index
    %c0_16 = arith.constant 0 : index
    %37 = vector.load %arg5[%c2, %c0_15, %c0_16] : memref<3x384x128xbf16, #tpu.memory_space<vmem>>, vector<1x384x128xbf16>
    %38 = vector.shape_cast %37 : vector<1x384x128xbf16> to vector<384x128xbf16>
    %cst_17 = arith.constant dense<0.000000e+00> : vector<288x128xf32>
    %39 = tpu.matmul %26, %38, %cst_17 {dimension_numbers = #tpu.dot_dimension_numbers<[1], [0], [0], [1], [0, 0, 1, 1], [], []>} : vector<288x384xbf16>, vector<384x128xbf16>, vector<288x128xf32> -> vector<288x128xf32>
    %40 = vector.extract_strided_slice %39 {offsets = [48, 0], sizes = [240, 128], strides = [1, 1]} : vector<288x128xf32> to vector<240x128xf32>
    %41 = vector.extract_strided_slice %39 {offsets = [0, 0], sizes = [48, 128], strides = [1, 1]} : vector<288x128xf32> to vector<48x128xf32>
    %42 = tpu.concatenate %40, %41 in 0 : vector<240x128xf32>, vector<48x128xf32> -> vector<288x128xf32>
    %43 = arith.addf %36, %42 : vector<288x128xf32>
    %c0_18 = arith.constant 0 : index
    %c0_19 = arith.constant 0 : index
    %44 = vector.load %arg6[%c0_18, %c0_19] : memref<1x128xf32, #tpu.memory_space<vmem>>, vector<1x128xf32>
    %45 = vector.broadcast %44 : vector<1x128xf32> to vector<288x128xf32>
    %46 = arith.addf %43, %45 : vector<288x128xf32>
    %47 = arith.negf %46 : vector<288x128xf32>
    %48 = math.exp %47 : vector<288x128xf32>
    %cst_20 = arith.constant 1.000000e+00 : f32
    %49 = vector.broadcast %cst_20 : f32 to vector<288x128xf32>
    %50 = arith.addf %49, %48 : vector<288x128xf32>
    %51 = arith.divf %49, %50 : vector<288x128xf32>
    %52 = arith.mulf %46, %51 : vector<288x128xf32>
    %c0_21 = arith.constant 0 : index
    %c0_22 = arith.constant 0 : index
    %c0_23 = arith.constant 0 : index
    %53 = vector.load %arg4[%c0_21, %c0_22, %c0_23] : memref<1x288x1xf32, #tpu.memory_space<vmem>>, vector<1x288x1xf32>
    %54 = vector.shape_cast %53 : vector<1x288x1xf32> to vector<288x1xf32>
    %55 = vector.broadcast %54 : vector<288x1xf32> to vector<288x128xf32>
    %56 = arith.mulf %52, %55 : vector<288x128xf32>
    %57 = arith.truncf %56 : vector<288x128xf32> to vector<288x128xbf16>
    %58 = vector.extract_strided_slice %56 {offsets = [1, 0], sizes = [287, 128], strides = [1, 1]} : vector<288x128xf32> to vector<287x128xf32>
    %59 = vector.extract_strided_slice %56 {offsets = [0, 0], sizes = [1, 128], strides = [1, 1]} : vector<288x128xf32> to vector<1x128xf32>
    %60 = tpu.concatenate %58, %59 in 0 : vector<287x128xf32>, vector<1x128xf32> -> vector<288x128xf32>
    %61 = arith.truncf %60 : vector<288x128xf32> to vector<288x128xbf16>
    %62 = vector.extract_strided_slice %56 {offsets = [2, 0], sizes = [286, 128], strides = [1, 1]} : vector<288x128xf32> to vector<286x128xf32>
    %63 = vector.extract_strided_slice %56 {offsets = [0, 0], sizes = [2, 128], strides = [1, 1]} : vector<288x128xf32> to vector<2x128xf32>
    %64 = tpu.concatenate %62, %63 in 0 : vector<286x128xf32>, vector<2x128xf32> -> vector<288x128xf32>
    %65 = arith.truncf %64 : vector<288x128xf32> to vector<288x128xbf16>
    %66 = tpu.concatenate %57, %61, %65 in 1 : vector<288x128xbf16>, vector<288x128xbf16>, vector<288x128xbf16> -> vector<288x384xbf16>
    %c0_24 = arith.constant 0 : index
    %c0_25 = arith.constant 0 : index
    %c0_26 = arith.constant 0 : index
    %67 = vector.load %arg7[%c0_24, %c0_25, %c0_26] : memref<3x384x128xbf16, #tpu.memory_space<vmem>>, vector<1x384x128xbf16>
    %68 = vector.shape_cast %67 : vector<1x384x128xbf16> to vector<384x128xbf16>
    %cst_27 = arith.constant dense<0.000000e+00> : vector<288x128xf32>
    %69 = tpu.matmul %66, %68, %cst_27 {dimension_numbers = #tpu.dot_dimension_numbers<[1], [0], [0], [1], [0, 0, 1, 1], [], []>} : vector<288x384xbf16>, vector<384x128xbf16>, vector<288x128xf32> -> vector<288x128xf32>
    %c1_28 = arith.constant 1 : index
    %c0_29 = arith.constant 0 : index
    %c0_30 = arith.constant 0 : index
    %70 = vector.load %arg7[%c1_28, %c0_29, %c0_30] : memref<3x384x128xbf16, #tpu.memory_space<vmem>>, vector<1x384x128xbf16>
    %71 = vector.shape_cast %70 : vector<1x384x128xbf16> to vector<384x128xbf16>
    %cst_31 = arith.constant dense<0.000000e+00> : vector<288x128xf32>
    %72 = tpu.matmul %66, %71, %cst_31 {dimension_numbers = #tpu.dot_dimension_numbers<[1], [0], [0], [1], [0, 0, 1, 1], [], []>} : vector<288x384xbf16>, vector<384x128xbf16>, vector<288x128xf32> -> vector<288x128xf32>
    %73 = vector.extract_strided_slice %72 {offsets = [24, 0], sizes = [264, 128], strides = [1, 1]} : vector<288x128xf32> to vector<264x128xf32>
    %74 = vector.extract_strided_slice %72 {offsets = [0, 0], sizes = [24, 128], strides = [1, 1]} : vector<288x128xf32> to vector<24x128xf32>
    %75 = tpu.concatenate %73, %74 in 0 : vector<264x128xf32>, vector<24x128xf32> -> vector<288x128xf32>
    %76 = arith.addf %69, %75 : vector<288x128xf32>
    %c2_32 = arith.constant 2 : index
    %c0_33 = arith.constant 0 : index
    %c0_34 = arith.constant 0 : index
    %77 = vector.load %arg7[%c2_32, %c0_33, %c0_34] : memref<3x384x128xbf16, #tpu.memory_space<vmem>>, vector<1x384x128xbf16>
    %78 = vector.shape_cast %77 : vector<1x384x128xbf16> to vector<384x128xbf16>
    %cst_35 = arith.constant dense<0.000000e+00> : vector<288x128xf32>
    %79 = tpu.matmul %66, %78, %cst_35 {dimension_numbers = #tpu.dot_dimension_numbers<[1], [0], [0], [1], [0, 0, 1, 1], [], []>} : vector<288x384xbf16>, vector<384x128xbf16>, vector<288x128xf32> -> vector<288x128xf32>
    %80 = vector.extract_strided_slice %79 {offsets = [48, 0], sizes = [240, 128], strides = [1, 1]} : vector<288x128xf32> to vector<240x128xf32>
    %81 = vector.extract_strided_slice %79 {offsets = [0, 0], sizes = [48, 128], strides = [1, 1]} : vector<288x128xf32> to vector<48x128xf32>
    %82 = tpu.concatenate %80, %81 in 0 : vector<240x128xf32>, vector<48x128xf32> -> vector<288x128xf32>
    %83 = arith.addf %76, %82 : vector<288x128xf32>
    %c0_36 = arith.constant 0 : index
    %c0_37 = arith.constant 0 : index
    %84 = vector.load %arg8[%c0_36, %c0_37] : memref<1x128xf32, #tpu.memory_space<vmem>>, vector<1x128xf32>
    %85 = vector.broadcast %84 : vector<1x128xf32> to vector<288x128xf32>
    %86 = arith.addf %83, %85 : vector<288x128xf32>
    %87 = arith.addf %86, %9 : vector<288x128xf32>
    %88 = vector.extract_strided_slice %87 {offsets = [0, 0], sizes = [192, 128], strides = [1, 1]} : vector<288x128xf32> to vector<192x128xf32>
    %c0_38 = arith.constant 0 : index
    %c0_39 = arith.constant 0 : index
    %c0_40 = arith.constant 0 : index
    %89 = vector.load %arg10[%c0_38, %c0_39, %c0_40] : memref<1x192x128xf32, #tpu.memory_space<vmem>>, vector<1x192x128xf32>
    %90 = vector.shape_cast %89 : vector<1x192x128xf32> to vector<192x128xf32>
    %91 = vector.shape_cast %88 : vector<192x128xf32> to vector<1x192x128xf32>
    tpu.vector_store %arg10[%c0_38, %c0_39, %c0_40], %91 {strides = array<i32>} : memref<1x192x128xf32, #tpu.memory_space<vmem>>, vector<1x192x128xf32>,
    return
  }
  func.func @transform_0(%arg0: i32, %arg1: i32) -> (i32, i32, i32) {
    %c0_i32 = arith.constant 0 : i32
    %c0_i32_0 = arith.constant 0 : i32
    return %arg0, %arg1, %c0_i32 : i32, i32, i32
  }
  func.func @transform_1(%arg0: i32, %arg1: i32) -> (i32, i32, i32) {
    %c1_i32 = arith.constant 1 : i32
    %0 = arith.addi %arg1, %c1_i32 : i32
    %c2_i32 = arith.constant 2 : i32
    %1 = arith.muli %0, %c2_i32 : i32
    %c0_i32 = arith.constant 0 : i32
    %c0_i32_0 = arith.constant 0 : i32
    return %arg0, %1, %c0_i32 : i32, i32, i32
  }
  func.func @transform_2(%arg0: i32, %arg1: i32) -> (i32, i32, i32) {
    %c0_i32 = arith.constant 0 : i32
    %c0_i32_0 = arith.constant 0 : i32
    %c0_i32_1 = arith.constant 0 : i32
    return %arg1, %c0_i32, %c0_i32_0 : i32, i32, i32
  }
  func.func @transform_3(%arg0: i32, %arg1: i32) -> (i32, i32, i32) {
    %c0_i32 = arith.constant 0 : i32
    %c0_i32_0 = arith.constant 0 : i32
    %c0_i32_1 = arith.constant 0 : i32
    %c0_i32_2 = arith.constant 0 : i32
    return %c0_i32, %c0_i32_0, %c0_i32_1 : i32, i32, i32
  }
  func.func @transform_4(%arg0: i32, %arg1: i32) -> (i32, i32) {
    %c0_i32 = arith.constant 0 : i32
    %c0_i32_0 = arith.constant 0 : i32
    %c0_i32_1 = arith.constant 0 : i32
    return %c0_i32, %c0_i32_0 : i32, i32
  }
  func.func @transform_5(%arg0: i32, %arg1: i32) -> (i32, i32, i32) {
    %c0_i32 = arith.constant 0 : i32
    %c0_i32_0 = arith.constant 0 : i32
    %c0_i32_1 = arith.constant 0 : i32
    %c0_i32_2 = arith.constant 0 : i32
    return %c0_i32, %c0_i32_0, %c0_i32_1 : i32, i32, i32
  }
  func.func @transform_6(%arg0: i32, %arg1: i32) -> (i32, i32) {
    %c0_i32 = arith.constant 0 : i32
    %c0_i32_0 = arith.constant 0 : i32
    %c0_i32_1 = arith.constant 0 : i32
    return %c0_i32, %c0_i32_0 : i32, i32
  }
  func.func @transform_7(%arg0: i32, %arg1: i32) -> (i32, i32) {
    %c0_i32 = arith.constant 0 : i32
    %c0_i32_0 = arith.constant 0 : i32
    %c0_i32_1 = arith.constant 0 : i32
    return %c0_i32, %c0_i32_0 : i32, i32
  }
  func.func @transform_8(%arg0: i32, %arg1: i32) -> (i32, i32, i32) {
    %c0_i32 = arith.constant 0 : i32
    %c0_i32_0 = arith.constant 0 : i32
    return %arg0, %arg1, %c0_i32 : i32, i32, i32
  }
}

</mosaic_0001>

<llo_original>
// kernel: tpu_custom_call.1
$region0: #{tpu_custom_call.1}
  #allocation0 [shape = 'u32[]', space=smem, size = 0x4, offset = 0x4, fixed_abs, tag = 'smem constant byte address 0x4 - core index']
  #allocation1 [shape = 'u32[72,128]{1,0:T(1,128)}', space=vmem, size = 0x9000, scoped, tag = 'internal scratch']
  %s0 = inlined_call_operand.hbm [shape: bf16[2,480,128], index: 0, kind: input, shape index: {}]
  %s1 = inlined_call_operand.hbm [shape: bf16[2,480,128], index: 1, kind: input, shape index: {}]
  %s2 = inlined_call_operand.vmem [shape: f32[2,288,1], index: 2, kind: input, shape index: {}]
  %s3 = inlined_call_operand.vmem [shape: bf16[3,384,128], index: 3, kind: input, shape index: {}]
  %s4 = inlined_call_operand.vmem [shape: f32[1,128], index: 4, kind: input, shape index: {}]
  %s5 = inlined_call_operand.hbm [shape: bf16[3,384,128], index: 5, kind: input, shape index: {}]
  %s6 = inlined_call_operand.vmem [shape: f32[1,128], index: 6, kind: input, shape index: {}]
  %s7 = inlined_call_operand.hbm [shape: bf16[128,128], index: 7, kind: input, shape index: {}]
  %s8 = inlined_call_operand.hbm [shape: f32[2,384,128], index: 8, kind: output, shape index: {}]
  %s9 = sld [smem:[#allocation0]]
  $region81: #{tpu_custom_call.1} parent=0
    _
  %s11 = ssub.s32 1, %s9
  %s12 = scalar_select 0, %s11, %s9
  $region1: #{tpu_custom_call.1} parent=0
    #allocation2 [shape = 'u8[98304]{0}', space=vmem, size = 0x18000, scoped, tag = 'input window, operand 0']
    #allocation3 [shape = 's32[2]{0}', space=sflag, size = 0x8, scoped, tag = 'scoped memory for tpu_custom_call.1']
    #allocation4 [shape = 's32[2]{0}', space=sflag, size = 0x8, scoped, tag = 'scoped memory for tpu_custom_call.1']
    #allocation5 [shape = 'u8[49152]{0}', space=vmem, size = 0xc000, scoped, tag = 'input window, operand 1']
    #allocation6 [shape = 's32[2]{0}', space=sflag, size = 0x8, scoped, tag = 'scoped memory for tpu_custom_call.1']
    #allocation7 [shape = 'u8[294912]{0}', space=vmem, size = 0x48000, scoped, tag = 'input window, operand 5, single buffered']
    #allocation8 [shape = 'u8[32768]{0}', space=vmem, size = 0x8000, scoped, tag = 'input window, operand 7, single buffered']
    #allocation9 [shape = 's32[1]{0}', space=sflag, size = 0x4, scoped, tag = 'scoped memory for tpu_custom_call.1']
    #allocation10 [shape = 'u8[196608]{0}', space=vmem, size = 0x30000, scoped, tag = 'output window, operand 0']
    %13 = vsyncpa [#allocation3], 0
    %s14 = scalar_lea.sflag [#allocation3], 1
    %15 = vsyncpa %s14, 0
    %16 = vsyncpa [#allocation6], 0
    %s17 = scalar_lea.sflag [#allocation6], 1
    %18 = vsyncpa %s17, 0
    %19 = vsyncpa [#allocation9], 0
    %20 = vsyncpa [#allocation4], 0
    %s21 = scalar_lea.sflag [#allocation4], 1
    %22 = vsyncpa %s21, 0
    loop: start=0, step=1, limit=6
    $region2: #{tpu_custom_call.1} parent=1 // loop_pre_header
      _
    $region3: #{tpu_custom_call.1} parent=1 // loop_header
      %s24 = sphi 0, %s28
      %p25 = scmp.ge.s32.totalorder %s24, 6
      %s31 = sphi 0, %s43
      %s32 = sphi 0, %s39
      %s33 = sphi 0, %s31
      %s34 = sphi 0, %s32
      %s35 = sphi 0, %s33
      %s36 = sphi 0, %s34
      %s48 = sphi 0, %s50
      %s51 = sphi 0, %s48
      %s52 = sphi 0, %s51
      %s68 = sphi 0, %s52
      %s80 = sphi 0, %s82
      %s83 = sphi 0, %s80
      %s84 = sphi 0, %s83
      %s100 = sphi 0, %s84
      %s106 = sphi 0, %s108
      %s109 = sphi 0, %s106
      %s110 = sphi 0, %s109
      %s126 = sphi 0, %s110
      %s130 = sphi 0, %s130
      %s132 = sphi 0, %s130
      %s133 = sphi 0, %s132
      %s147 = sphi 0, %s133
      %s151 = sphi 0, %s151
      %s153 = sphi 0, %s151
      %s154 = sphi 0, %s153
      %s168 = sphi 0, %s154
      %s172 = sphi 0, %s172
      %s174 = sphi 0, %s172
      %s175 = sphi 0, %s174
      %s189 = sphi 0, %s175
      %s193 = sphi 0, %s193
      %s195 = sphi 0, %s193
      %s196 = sphi 0, %s195
      %s210 = sphi 0, %s196
      %s214 = sphi 0, %s214
      %s216 = sphi 0, %s214
      %s217 = sphi 0, %s216
      %s231 = sphi 0, %s217
      %s239 = sphi 0, %s241
      %s242 = sphi 0, %s239
      %s243 = sphi 0, %s242
      %s259 = sphi 0, %s243
    $region4: #{tpu_custom_call.1} parent=1 // loop_header_branch
      %27 = sbr.rel (%p25) target = $region8
    $region5: #{tpu_custom_call.1} parent=1 // loop_body
      %s29 = ssub.s32 %s24, 1
      %s30 = ssub.s32 %s24, 2
      %s37 = sadd.s32 1, %s32
      %p38 = scmp.ge.s32.totalorder %s37, 2
      %s39 = scalar_select %p38, 0, %s37
      %s40 = sadd.s32 1, %s31
      %s41 = scalar_select %p38, %s40, %s31
      %p42 = scmp.ge.s32.totalorder %s41, 2
      %s43 = scalar_select %p42, 0, %s41
      %s44 = ssub.s32 %s31, %s43
      %s45 = ssub.s32 %s32, %s39
      %s46 = sor.u32 %s44, %s45
      %p47 = scmp.eq.s32.totalorder %s46, 0
      %s49 = sadd.s32 %s48, 1
      %s50 = scalar_select %p47, %s48, %s49
      %p53 = pneg %p47
      %p54 = scmp.eq.s32.totalorder %s24, 3
      %p55 = por %p53, %p54
      %p56 = scmp.ne.s32.totalorder %s48, %s51
      %p57 = scmp.eq.s32.totalorder %s24, 0
      %p58 = por %p56, %p57
      %p59 = scmp.ne.s32.totalorder %s48, %s51
      %p60 = scmp.eq.s32.totalorder %s29, 3
      %p61 = por %p59, %p60
      %p62 = scmp.ne.s32.totalorder %s51, %s52
      %p63 = scmp.eq.s32.totalorder %s29, 0
      %p64 = por %p62, %p63
      %p65 = scmp.ne.s32.totalorder %s51, %s52
      %p66 = scmp.eq.s32.totalorder %s30, 3
      %p67 = por %p65, %p66
      %p69 = scmp.ne.s32.totalorder %s52, %s68
      %p70 = scmp.eq.s32.totalorder %s30, 0
      %p71 = por %p69, %p70
      %s72 = sadd.s32 %s32, 1
      %s73 = smul.u32 %s72, 2
      %s74 = sadd.s32 %s39, 1
      %s75 = smul.u32 %s74, 2
      %s76 = ssub.s32 %s31, %s43
      %s77 = ssub.s32 %s73, %s75
      %s78 = sor.u32 %s76, %s77
      %p79 = scmp.eq.s32.totalorder %s78, 0
      %s81 = sadd.s32 %s80, 1
      %s82 = scalar_select %p79, %s80, %s81
      %p85 = pneg %p79
      %p86 = scmp.eq.s32.totalorder %s24, 3
      %p87 = por %p85, %p86
      %p88 = scmp.ne.s32.totalorder %s80, %s83
      %p89 = scmp.eq.s32.totalorder %s24, 0
      %p90 = por %p88, %p89
      %p91 = scmp.ne.s32.totalorder %s80, %s83
      %p92 = scmp.eq.s32.totalorder %s29, 3
      %p93 = por %p91, %p92
      %p94 = scmp.ne.s32.totalorder %s83, %s84
      %p95 = scmp.eq.s32.totalorder %s29, 0
      %p96 = por %p94, %p95
      %p97 = scmp.ne.s32.totalorder %s83, %s84
      %p98 = scmp.eq.s32.totalorder %s30, 3
      %p99 = por %p97, %p98
      %p101 = scmp.ne.s32.totalorder %s84, %s100
      %p102 = scmp.eq.s32.totalorder %s30, 0
      %p103 = por %p101, %p102
      %s104 = ssub.s32 %s32, %s39
      %p105 = scmp.eq.s32.totalorder %s104, 0
      %s107 = sadd.s32 %s106, 1
      %s108 = scalar_select %p105, %s106, %s107
      %p111 = pneg %p105
      %p112 = scmp.eq.s32.totalorder %s24, 3
      %p113 = por %p111, %p112
      %p114 = scmp.ne.s32.totalorder %s106, %s109
      %p115 = scmp.eq.s32.totalorder %s24, 0
      %p116 = por %p114, %p115
      %p117 = scmp.ne.s32.totalorder %s106, %s109
      %p118 = scmp.eq.s32.totalorder %s29, 3
      %p119 = por %p117, %p118
      %p120 = scmp.ne.s32.totalorder %s109, %s110
      %p121 = scmp.eq.s32.totalorder %s29, 0
      %p122 = por %p120, %p121
      %p123 = scmp.ne.s32.totalorder %s109, %s110
      %p124 = scmp.eq.s32.totalorder %s30, 3
      %p125 = por %p123, %p124
      %p127 = scmp.ne.s32.totalorder %s110, %s126
      %p128 = scmp.eq.s32.totalorder %s30, 0
      %p129 = por %p127, %p128
      %s131 = sadd.s32 %s130, 1
      %p134 = scmp.eq.s32.totalorder %s24, 3
      %p135 = scmp.ne.s32.totalorder %s130, %s132
      %p136 = scmp.eq.s32.totalorder %s24, 0
      %p137 = por %p135, %p136
      %p138 = scmp.ne.s32.totalorder %s130, %s132
      %p139 = scmp.eq.s32.totalorder %s29, 3
      %p140 = por %p138, %p139
      %p141 = scmp.ne.s32.totalorder %s132, %s133
      %p142 = scmp.eq.s32.totalorder %s29, 0
      %p143 = por %p141, %p142
      %p144 = scmp.ne.s32.totalorder %s132, %s133
      %p145 = scmp.eq.s32.totalorder %s30, 3
      %p146 = por %p144, %p145
      %p148 = scmp.ne.s32.totalorder %s133, %s147
      %p149 = scmp.eq.s32.totalorder %s30, 0
      %p150 = por %p148, %p149
      %s152 = sadd.s32 %s151, 1
      %p155 = scmp.eq.s32.totalorder %s24, 3
      %p156 = scmp.ne.s32.totalorder %s151, %s153
      %p157 = scmp.eq.s32.totalorder %s24, 0
      %p158 = por %p156, %p157
      %p159 = scmp.ne.s32.totalorder %s151, %s153
      %p160 = scmp.eq.s32.totalorder %s29, 3
      %p161 = por %p159, %p160
      %p162 = scmp.ne.s32.totalorder %s153, %s154
      %p163 = scmp.eq.s32.totalorder %s29, 0
      %p164 = por %p162, %p163
      %p165 = scmp.ne.s32.totalorder %s153, %s154
      %p166 = scmp.eq.s32.totalorder %s30, 3
      %p167 = por %p165, %p166
      %p169 = scmp.ne.s32.totalorder %s154, %s168
      %p170 = scmp.eq.s32.totalorder %s30, 0
      %p171 = por %p169, %p170
      %s173 = sadd.s32 %s172, 1
      %p176 = scmp.eq.s32.totalorder %s24, 3
      %p177 = scmp.ne.s32.totalorder %s172, %s174
      %p178 = scmp.eq.s32.totalorder %s24, 0
      %p179 = por %p177, %p178
      %p180 = scmp.ne.s32.totalorder %s172, %s174
      %p181 = scmp.eq.s32.totalorder %s29, 3
      %p182 = por %p180, %p181
      %p183 = scmp.ne.s32.totalorder %s174, %s175
      %p184 = scmp.eq.s32.totalorder %s29, 0
      %p185 = por %p183, %p184
      %p186 = scmp.ne.s32.totalorder %s174, %s175
      %p187 = scmp.eq.s32.totalorder %s30, 3
      %p188 = por %p186, %p187
      %p190 = scmp.ne.s32.totalorder %s175, %s189
      %p191 = scmp.eq.s32.totalorder %s30, 0
      %p192 = por %p190, %p191
      %s194 = sadd.s32 %s193, 1
      %p197 = scmp.eq.s32.totalorder %s24, 3
      %p198 = scmp.ne.s32.totalorder %s193, %s195
      %p199 = scmp.eq.s32.totalorder %s24, 0
      %p200 = por %p198, %p199
      %p201 = scmp.ne.s32.totalorder %s193, %s195
      %p202 = scmp.eq.s32.totalorder %s29, 3
      %p203 = por %p201, %p202
      %p204 = scmp.ne.s32.totalorder %s195, %s196
      %p205 = scmp.eq.s32.totalorder %s29, 0
      %p206 = por %p204, %p205
      %p207 = scmp.ne.s32.totalorder %s195, %s196
      %p208 = scmp.eq.s32.totalorder %s30, 3
      %p209 = por %p207, %p208
      %p211 = scmp.ne.s32.totalorder %s196, %s210
      %p212 = scmp.eq.s32.totalorder %s30, 0
      %p213 = por %p211, %p212
      %s215 = sadd.s32 %s214, 1
      %p218 = scmp.eq.s32.totalorder %s24, 3
      %p219 = scmp.ne.s32.totalorder %s214, %s216
      %p220 = scmp.eq.s32.totalorder %s24, 0
      %p221 = por %p219, %p220
      %p222 = scmp.ne.s32.totalorder %s214, %s216
      %p223 = scmp.eq.s32.totalorder %s29, 3
      %p224 = por %p222, %p223
      %p225 = scmp.ne.s32.totalorder %s216, %s217
      %p226 = scmp.eq.s32.totalorder %s29, 0
      %p227 = por %p225, %p226
      %p228 = scmp.ne.s32.totalorder %s216, %s217
      %p229 = scmp.eq.s32.totalorder %s30, 3
      %p230 = por %p228, %p229
      %p232 = scmp.ne.s32.totalorder %s217, %s231
      %p233 = scmp.eq.s32.totalorder %s30, 0
      %p234 = por %p232, %p233
      %s235 = ssub.s32 %s31, %s43
      %s236 = ssub.s32 %s32, %s39
      %s237 = sor.u32 %s235, %s236
      %p238 = scmp.eq.s32.totalorder %s237, 0
      %s240 = sadd.s32 %s239, 1
      %s241 = scalar_select %p238, %s239, %s240
      %p244 = pneg %p238
      %p245 = scmp.eq.s32.totalorder %s24, 3
      %p246 = por %p244, %p245
      %p247 = scmp.ne.s32.totalorder %s239, %s242
      %p248 = scmp.eq.s32.totalorder %s24, 0
      %p249 = por %p247, %p248
      %p250 = scmp.ne.s32.totalorder %s239, %s242
      %p251 = scmp.eq.s32.totalorder %s29, 3
      %p252 = por %p250, %p251
      %p253 = scmp.ne.s32.totalorder %s242, %s243
      %p254 = scmp.eq.s32.totalorder %s29, 0
      %p255 = por %p253, %p254
      %p256 = scmp.ne.s32.totalorder %s242, %s243
      %p257 = scmp.eq.s32.totalorder %s30, 3
      %p258 = por %p256, %p257
      %p260 = scmp.ne.s32.totalorder %s243, %s259
      %p261 = scmp.eq.s32.totalorder %s30, 0
      %p262 = por %p260, %p261
      %p263 = scmp.le.s32.totalorder 1, %s24
      %p264 = scmp.lt.s32.totalorder %s24, 5
      %p265 = pnand %p263, %p264
      %p266 = pneg %p265
      // Predicated region
      $region9: #{tpu_custom_call.1} parent=5 // pred_check
        _
      $region10: #{tpu_custom_call.1} parent=5 // pred_check_branch
        %268 = sbr.rel (%p265) target = $region12
      $region11: #{tpu_custom_call.1} parent=5 // pred_region
        %s269 = ssub.s32 %s24, 1
        // Predicated region
        $region13: #{tpu_custom_call.1} parent=11 // pred_check
          %p270 = pneg %p143
        $region14: #{tpu_custom_call.1} parent=11 // pred_check_branch
          %272 = sbr.rel (%p270) target = $region16
        $region15: #{tpu_custom_call.1} parent=11 // pred_region
          _
        $region16: #{tpu_custom_call.1} parent=11 // pred_fallthru
          _
        // Predicated region
        $region17: #{tpu_custom_call.1} parent=11 // pred_check
          %p273 = pneg %p164
        $region18: #{tpu_custom_call.1} parent=11 // pred_check_branch
          %275 = sbr.rel (%p273) target = $region20
        $region19: #{tpu_custom_call.1} parent=11 // pred_region
          _
        $region20: #{tpu_custom_call.1} parent=11 // pred_fallthru
          _
        // Predicated region
        $region21: #{tpu_custom_call.1} parent=11 // pred_check
          %p276 = pneg %p185
        $region22: #{tpu_custom_call.1} parent=11 // pred_check_branch
          %278 = sbr.rel (%p276) target = $region24
        $region23: #{tpu_custom_call.1} parent=11 // pred_region
          %280 = vsyncadd [#allocation6], 0
          %s281 = sshll.u32 %s5, 4
          %s282 = int_to_ptr.hbm [resolvable:$true] %s281
          %s283 = sshll.u32 [#allocation7], 4
          %s284 = int_to_ptr.vmem [resolvable:$true] %s283
          %289 = dma.hbm_to_vmem [thread:$0]  %s282, 9216, %s284, [#allocation6], 64, 64, 4
        $region24: #{tpu_custom_call.1} parent=11 // pred_fallthru
          _
        // Predicated region
        $region25: #{tpu_custom_call.1} parent=11 // pred_check
          %p290 = pneg %p206
        $region26: #{tpu_custom_call.1} parent=11 // pred_check_branch
          %292 = sbr.rel (%p290) target = $region28
        $region27: #{tpu_custom_call.1} parent=11 // pred_region
          _
        $region28: #{tpu_custom_call.1} parent=11 // pred_fallthru
          _
        // Predicated region
        $region29: #{tpu_custom_call.1} parent=11 // pred_check
          %p293 = pneg %p227
        $region30: #{tpu_custom_call.1} parent=11 // pred_check_branch
          %295 = sbr.rel (%p293) target = $region32
        $region31: #{tpu_custom_call.1} parent=11 // pred_region
          %297 = vsyncadd [#allocation9], 0
          %s298 = sshll.u32 %s7, 4
          %s299 = int_to_ptr.hbm [resolvable:$true] %s298
          %s300 = sshll.u32 [#allocation8], 4
          %s301 = int_to_ptr.vmem [resolvable:$true] %s300
          %306 = dma.hbm_to_vmem [thread:$0]  %s299, 1024, %s301, [#allocation9], 64, 64, 4
        $region32: #{tpu_custom_call.1} parent=11 // pred_fallthru
          _
      $region12: #{tpu_custom_call.1} parent=5 // pred_fallthru
        _
      %p307 = scmp.lt.s32.totalorder %s24, 4
      // Predicated region
      $region33: #{tpu_custom_call.1} parent=5 // pred_check
        %p308 = pneg %p307
      $region34: #{tpu_custom_call.1} parent=5 // pred_check_branch
        %310 = sbr.rel (%p308) target = $region36
      $region35: #{tpu_custom_call.1} parent=5 // pred_region
        // Predicated region
        $region37: #{tpu_custom_call.1} parent=35 // pred_check
          %p311 = pneg %p58
        $region38: #{tpu_custom_call.1} parent=35 // pred_check_branch
          %313 = sbr.rel (%p311) target = $region40
        $region39: #{tpu_custom_call.1} parent=35 // pred_region
          %s314 = sand.u32 %s48, 1
          %s315 = scalar_lea.sflag [#allocation3], %s314
          %s316 = sand.u32 %s48, 1
          %s317 = smul.addr %s316, 96
          %s318 = scalar_lea.vmem [#allocation2], %s317
          %s319 = smul.u32 24, %s32
          %s320 = ssub.s32 60, %s319
          %p321 = scmp.lt.s32.totalorder %s320, 24
          %s322 = scalar_select %p321, %s320, 24
          %s323 = smul.u32 4, %s322
          %s324 = ssub.s32 96, %s323
          %s325 = sshll.u32 %s324, 4
          %326 = vsyncadd %s315, %s325
          %p327 = scmp.ne.s32.totalorder 0, %s323
          %s328 = smul.addr %s31, 60
          %s329 = sadd.s32 %s319, %s328
          %s330 = smul.addr %s329, 4
          %s331 = scalar_lea.hbm %s0, %s330
          %s332 = smul.u32 4, %s322
          %s333 = sshll.u32 %s331, 4
          %s334 = int_to_ptr.hbm [resolvable:$true] %s333
          %s335 = sshll.u32 %s318, 4
          %s336 = int_to_ptr.vmem [resolvable:$true] %s335
          %s337 = sshll.u32 %s332, 4
          %341 = dma.hbm_to_vmem [thread:$0]  (%p327), %s334, %s337, %s336, %s315, 64, 64, 4
        $region40: #{tpu_custom_call.1} parent=35 // pred_fallthru
          _
        // Predicated region
        $region41: #{tpu_custom_call.1} parent=35 // pred_check
          %p342 = pneg %p90
        $region42: #{tpu_custom_call.1} parent=35 // pred_check_branch
          %344 = sbr.rel (%p342) target = $region44
        $region43: #{tpu_custom_call.1} parent=35 // pred_region
          %s345 = sand.u32 %s24, 1
          %s346 = scalar_lea.sflag [#allocation6], %s345
          %s347 = sand.u32 %s80, 1
          %s348 = smul.addr %s347, 48
          %s349 = scalar_lea.vmem [#allocation5], %s348
          %s350 = sadd.s32 %s32, 1
          %s351 = smul.u32 %s350, 2
          %s352 = smul.u32 12, %s351
          %354 = vsyncadd %s346, 0
          %s355 = smul.addr %s31, 60
          %s356 = sadd.s32 %s352, %s355
          %s357 = smul.addr %s356, 4
          %s358 = scalar_lea.hbm %s1, %s357
          %s359 = sshll.u32 %s358, 4
          %s360 = int_to_ptr.hbm [resolvable:$true] %s359
          %s361 = sshll.u32 %s349, 4
          %s362 = int_to_ptr.vmem [resolvable:$true] %s361
          %367 = dma.hbm_to_vmem [thread:$0]  %s360, 768, %s362, %s346, 64, 64, 4
        $region44: #{tpu_custom_call.1} parent=35 // pred_fallthru
          _
        // Predicated region
        $region45: #{tpu_custom_call.1} parent=35 // pred_check
          %p368 = pneg %p116
        $region46: #{tpu_custom_call.1} parent=35 // pred_check_branch
          %370 = sbr.rel (%p368) target = $region48
        $region47: #{tpu_custom_call.1} parent=35 // pred_region
          %p371 = scmp.lt.s32.totalorder %s32, 1
          %s372 = scalar_select %p371, %s32, 1
          %s373 = smul.addr %s372, 36
          %s374 = smul.addr %s373, 8
          %s375 = scalar_lea.vmem %s2, %s374
        $region48: #{tpu_custom_call.1} parent=35 // pred_fallthru
          _
      $region36: #{tpu_custom_call.1} parent=5 // pred_fallthru
        _
      %p376 = scmp.le.s32.totalorder 1, %s24
      %p377 = scmp.lt.s32.totalorder %s24, 5
      %p378 = pnand %p376, %p377
      %p379 = pneg %p378
      // Predicated region
      $region49: #{tpu_custom_call.1} parent=5 // pred_check
        _
      $region50: #{tpu_custom_call.1} parent=5 // pred_check_branch
        %381 = sbr.rel (%p378) target = $region52
      $region51: #{tpu_custom_call.1} parent=5 // pred_region
        %s382 = ssub.s32 %s24, 1
        %s383 = sand.u32 %s51, 1
        %s384 = scalar_lea.sflag [#allocation3], %s383
        %s385 = sand.u32 %s51, 1
        %s386 = smul.addr %s385, 96
        %s387 = scalar_lea.vmem [#allocation2], %s386
        // Predicated region
        $region53: #{tpu_custom_call.1} parent=51 // pred_check
          %p388 = pneg %p64
        $region54: #{tpu_custom_call.1} parent=51 // pred_check_branch
          %390 = sbr.rel (%p388) target = $region56
        $region55: #{tpu_custom_call.1} parent=51 // pred_region
          %392 = dma.done %s384, 1536
        $region56: #{tpu_custom_call.1} parent=51 // pred_fallthru
          _
        %s393 = sand.u32 %s29, 1
        %s394 = scalar_lea.sflag [#allocation6], %s393
        %s395 = sand.u32 %s83, 1
        %s396 = smul.addr %s395, 48
        %s397 = scalar_lea.vmem [#allocation5], %s396
        // Predicated region
        $region57: #{tpu_custom_call.1} parent=51 // pred_check
          %p398 = pneg %p96
        $region58: #{tpu_custom_call.1} parent=51 // pred_check_branch
          %400 = sbr.rel (%p398) target = $region60
        $region59: #{tpu_custom_call.1} parent=51 // pred_region
          %402 = dma.done %s394, 768
        $region60: #{tpu_custom_call.1} parent=51 // pred_fallthru
          _
        // Predicated region
        $region61: #{tpu_custom_call.1} parent=51 // pred_check
          %p403 = pneg %p185
        $region62: #{tpu_custom_call.1} parent=51 // pred_check_branch
          %405 = sbr.rel (%p403) target = $region64
        $region63: #{tpu_custom_call.1} parent=51 // pred_region
          %407 = dma.done [#allocation6], 9216
        $region64: #{tpu_custom_call.1} parent=51 // pred_fallthru
          _
        // Predicated region
        $region65: #{tpu_custom_call.1} parent=51 // pred_check
          %p408 = pneg %p227
        $region66: #{tpu_custom_call.1} parent=51 // pred_check_branch
          %410 = sbr.rel (%p408) target = $region68
        $region67: #{tpu_custom_call.1} parent=51 // pred_region
          %412 = dma.done [#allocation9], 1024
        $region68: #{tpu_custom_call.1} parent=51 // pred_fallthru
          _
        %s413 = sand.u32 %s51, 1
        %s414 = scalar_lea.sflag [#allocation3], %s413
        %s415 = sand.u32 %s51, 1
        %s416 = smul.addr %s415, 96
        %s417 = scalar_lea.vmem [#allocation2], %s416
        %p418 = pneg %p64
        %p419 = pneg %p61
        %s420 = sand.u32 %s29, 1
        %s421 = scalar_lea.sflag [#allocation6], %s420
        %s422 = sand.u32 %s83, 1
        %s423 = smul.addr %s422, 48
        %s424 = scalar_lea.vmem [#allocation5], %s423
        %p425 = pneg %p96
        %p426 = pneg %p93
        %p427 = scmp.lt.s32.totalorder %s34, 1
        %s428 = scalar_select %p427, %s34, 1
        %s429 = smul.addr %s428, 36
        %s430 = smul.addr %s429, 8
        %s431 = scalar_lea.vmem %s2, %s430
        %p432 = pneg %p122
        %p433 = pneg %p119
        %p434 = pneg %p143
        %p435 = pneg %p140
        %p436 = pneg %p164
        %p437 = pneg %p161
        %p438 = pneg %p185
        %p439 = pneg %p182
        %p440 = pneg %p206
        %p441 = pneg %p203
        %p442 = pneg %p227
        %p443 = pneg %p224
        %p444 = pneg %p255
        %p445 = pneg %p252
        %s446 = sand.u32 %s242, 1
        %s447 = scalar_lea.sflag [#allocation4], %s446
        %s448 = sand.u32 %s242, 1
        %s449 = smul.addr %s448, 192
        %s450 = scalar_lea.vmem [#allocation10], %s449
        %s451 = smul.u32 24, %s34
        %s452 = ssub.s32 60, %s451
        %p453 = scmp.lt.s32.totalorder %s452, 24
        %s454 = scalar_select %p453, %s452, 24
        %s455 = smul.u32 4, %s454
        %s456 = sadd.s32 %s34, 1
        %s457 = smul.u32 %s456, 2
        %s458 = smul.u32 12, %s457
        %p459 = scmp.lt.s32.totalorder %s34, 1
        %s460 = scalar_select %p459, %s34, 1
        %s461 = smul.addr %s460, 36
        %s462 = smul.addr %s461, 8
        %s463 = scalar_lea.vmem %s2, %s462
        %s464 = smul.u32 24, %s34
        %v465 = vld [vmem:[%s387] sm:$0xf]
        %v466 = vld [vmem:[%s387 + $0x4] sm:$0xf]
        %v467 = vld [vmem:[%s387 + $0x8] sm:$0xf]
        %v468 = vld [vmem:[%s387 + $0xc] sm:$0xf]
        %v469 = vld [vmem:[%s387 + $0x10] sm:$0xf]
        %v470 = vld [vmem:[%s387 + $0x14] sm:$0xf]
        %v471 = vld [vmem:[%s387 + $0x18] sm:$0xf]
        %v472 = vld [vmem:[%s387 + $0x1c] sm:$0xf]
        %v473 = vld [vmem:[%s387 + $0x20] sm:$0xf]
        %v474 = vld [vmem:[%s387 + $0x24] sm:$0xf]
        %v475 = vld [vmem:[%s387 + $0x28] sm:$0xf]
        %v476 = vld [vmem:[%s387 + $0x2c] sm:$0xf]
        %v477 = vld [vmem:[%s387 + $0x30] sm:$0xf]
        %v478 = vld [vmem:[%s387 + $0x34] sm:$0xf]
        %v479 = vld [vmem:[%s387 + $0x38] sm:$0xf]
        %v480 = vld [vmem:[%s387 + $0x3c] sm:$0xf]
        %v481 = vld [vmem:[%s387 + $0x40] sm:$0xf]
        %v482 = vld [vmem:[%s387 + $0x44] sm:$0xf]
        %v483 = vld [vmem:[%s387 + $0x48] sm:$0xf]
        %v484 = vld [vmem:[%s387 + $0x4c] sm:$0xf]
        %v485 = vld [vmem:[%s387 + $0x50] sm:$0xf]
        %v486 = vld [vmem:[%s387 + $0x54] sm:$0xf]
        %v487 = vld [vmem:[%s387 + $0x58] sm:$0xf]
        %v488 = vld [vmem:[%s387 + $0x5c] sm:$0xf]
        %v489 = vld [vmem:[%s397] sm:$0xf]
        %v490 = vld [vmem:[%s397 + $0x4] sm:$0xf]
        %v491 = vld [vmem:[%s397 + $0x8] sm:$0xf]
        %v492 = vld [vmem:[%s397 + $0xc] sm:$0xf]
        %v493 = vld [vmem:[%s397 + $0x10] sm:$0xf]
        %v494 = vld [vmem:[%s397 + $0x14] sm:$0xf]
        %v495 = vld [vmem:[%s397 + $0x18] sm:$0xf]
        %v496 = vld [vmem:[%s397 + $0x1c] sm:$0xf]
        %v497 = vld [vmem:[%s397 + $0x20] sm:$0xf]
        %v498 = vld [vmem:[%s397 + $0x24] sm:$0xf]
        %v499 = vld [vmem:[%s397 + $0x28] sm:$0xf]
        %v500 = vld [vmem:[%s397 + $0x2c] sm:$0xf]
        %v525 = vunpack.c.l.b16 %v465
        %v526 = vunpack.c.l.b16 %v466
        %v527 = vunpack.c.l.b16 %v467
        %v528 = vunpack.c.l.b16 %v468
        %v529 = vunpack.c.l.b16 %v469
        %v530 = vunpack.c.l.b16 %v470
        %v531 = vunpack.c.l.b16 %v471
        %v532 = vunpack.c.l.b16 %v472
        %v533 = vunpack.c.l.b16 %v473
        %v534 = vunpack.c.l.b16 %v474
        %v535 = vunpack.c.l.b16 %v475
        %v536 = vunpack.c.l.b16 %v476
        %v537 = vunpack.c.l.b16 %v477
        %v538 = vunpack.c.l.b16 %v478
        %v539 = vunpack.c.l.b16 %v479
        %v540 = vunpack.c.l.b16 %v480
        %v541 = vunpack.c.l.b16 %v481
        %v542 = vunpack.c.l.b16 %v482
        %v543 = vunpack.c.l.b16 %v483
        %v544 = vunpack.c.l.b16 %v484
        %v545 = vunpack.c.l.b16 %v485
        %v546 = vunpack.c.l.b16 %v486
        %v547 = vunpack.c.l.b16 %v487
        %v548 = vunpack.c.l.b16 %v488
        %v549 = vpack.c.b16 %v526, %v525
        %v550 = vpack.c.b16 %v528, %v527
        %v551 = vpack.c.b16 %v530, %v529
        %v552 = vpack.c.b16 %v532, %v531
        %v553 = vpack.c.b16 %v534, %v533
        %v554 = vpack.c.b16 %v536, %v535
        %v555 = vpack.c.b16 %v538, %v537
        %v556 = vpack.c.b16 %v540, %v539
        %v557 = vpack.c.b16 %v542, %v541
        %v558 = vpack.c.b16 %v544, %v543
        %v559 = vpack.c.b16 %v546, %v545
        %v560 = vpack.c.b16 %v548, %v547
        %v585 = vunpack.c.l.b16 %v489
        %v586 = vunpack.c.l.b16 %v490
        %v587 = vunpack.c.l.b16 %v491
        %v588 = vunpack.c.l.b16 %v492
        %v589 = vunpack.c.l.b16 %v493
        %v590 = vunpack.c.l.b16 %v494
        %v591 = vunpack.c.l.b16 %v495
        %v592 = vunpack.c.l.b16 %v496
        %v593 = vunpack.c.l.b16 %v497
        %v594 = vunpack.c.l.b16 %v498
        %v595 = vunpack.c.l.b16 %v499
        %v596 = vunpack.c.l.b16 %v500
        %v597 = vpack.c.b16 %v586, %v585
        %v598 = vpack.c.b16 %v588, %v587
        %v599 = vpack.c.b16 %v590, %v589
        %v600 = vpack.c.b16 %v592, %v591
        %v601 = vpack.c.b16 %v594, %v593
        %v602 = vpack.c.b16 %v596, %v595
        %v609 = vld [vmem:[#allocation8] sm:$0xf]
        %v610 = vld [vmem:[#allocation8 + $0x4] sm:$0xf]
        %v611 = vld [vmem:[#allocation8 + $0x8] sm:$0xf]
        %v612 = vld [vmem:[#allocation8 + $0xc] sm:$0xf]
        %v613 = vld [vmem:[#allocation8 + $0x10] sm:$0xf]
        %v614 = vld [vmem:[#allocation8 + $0x14] sm:$0xf]
        %v615 = vld [vmem:[#allocation8 + $0x18] sm:$0xf]
        %v616 = vld [vmem:[#allocation8 + $0x1c] sm:$0xf]
        %v617 = vld [vmem:[#allocation8 + $0x20] sm:$0xf]
        %v618 = vld [vmem:[#allocation8 + $0x24] sm:$0xf]
        %v619 = vld [vmem:[#allocation8 + $0x28] sm:$0xf]
        %v620 = vld [vmem:[#allocation8 + $0x2c] sm:$0xf]
        %v621 = vld [vmem:[#allocation8 + $0x30] sm:$0xf]
        %v622 = vld [vmem:[#allocation8 + $0x34] sm:$0xf]
        %v623 = vld [vmem:[#allocation8 + $0x38] sm:$0xf]
        %v624 = vld [vmem:[#allocation8 + $0x3c] sm:$0xf]
        %v641 = vunpack.c.l.b16 %v609
        %v642 = vunpack.c.l.b16 %v610
        %v643 = vunpack.c.l.b16 %v611
        %v644 = vunpack.c.l.b16 %v612
        %v645 = vunpack.c.l.b16 %v613
        %v646 = vunpack.c.l.b16 %v614
        %v647 = vunpack.c.l.b16 %v615
        %v648 = vunpack.c.l.b16 %v616
        %v649 = vunpack.c.l.b16 %v617
        %v650 = vunpack.c.l.b16 %v618
        %v651 = vunpack.c.l.b16 %v619
        %v652 = vunpack.c.l.b16 %v620
        %v653 = vunpack.c.l.b16 %v621
        %v654 = vunpack.c.l.b16 %v622
        %v655 = vunpack.c.l.b16 %v623
        %v656 = vunpack.c.l.b16 %v624
        %v657 = vpack.c.b16 %v642, %v641
        %v658 = vpack.c.b16 %v644, %v643
        %v659 = vpack.c.b16 %v646, %v645
        %v660 = vpack.c.b16 %v648, %v647
        %v661 = vpack.c.b16 %v650, %v649
        %v662 = vpack.c.b16 %v652, %v651
        %v663 = vpack.c.b16 %v654, %v653
        %v664 = vpack.c.b16 %v656, %v655
        %673 = vmatpush.bf16.msra.mxu0 %v664
        %674 = vmatpush.bf16.msra.mxu0 %v663
        %675 = vmatpush.bf16.msra.mxu0 %v662
        %676 = vmatpush.bf16.msra.mxu0 %v661
        %677 = vmatpush.bf16.msra.mxu0 %v660
        %678 = vmatpush.bf16.msra.mxu0 %v659
        %679 = vmatpush.bf16.msra.mxu0 %v658
        %680 = vmatpush.bf16.msra.mxu0 %v657
        %681 = vmatmul.bf16.gmra.mxu0 %v549
        %v682 = vpop.f32.mrf.mxu0
        %v683 = vpop.f32.mrf.mxu0
        %684 = vmatmul.bf16.gmra.mxu0 %v550
        %v685 = vpop.f32.mrf.mxu0
        %v686 = vpop.f32.mrf.mxu0
        %687 = vmatmul.bf16.gmra.mxu0 %v551
        %v688 = vpop.f32.mrf.mxu0
        %v689 = vpop.f32.mrf.mxu0
        %690 = vmatmul.bf16.gmra.mxu0 %v552
        %v691 = vpop.f32.mrf.mxu0
        %v692 = vadd.f32 0.0, %v691
        %v693 = vpop.f32.mrf.mxu0
        %v694 = vadd.f32 0.0, %v693
        %695 = vmatmul.bf16.gmra.mxu0 %v553
        %v696 = vpop.f32.mrf.mxu0
        %v697 = vadd.f32 0.0, %v696
        %v698 = vpop.f32.mrf.mxu0
        %v699 = vadd.f32 0.0, %v698
        %700 = vmatmul.bf16.gmra.mxu0 %v554
        %v701 = vpop.f32.mrf.mxu0
        %v702 = vadd.f32 0.0, %v701
        %v703 = vpop.f32.mrf.mxu0
        %v704 = vadd.f32 0.0, %v703
        %705 = vmatmul.bf16.gmra.mxu0 %v555
        %v706 = vpop.f32.mrf.mxu0
        %v707 = vadd.f32 0.0, %v706
        %v708 = vpop.f32.mrf.mxu0
        %v709 = vadd.f32 0.0, %v708
        %710 = vmatmul.bf16.gmra.mxu0 %v556
        %v711 = vpop.f32.mrf.mxu0
        %v712 = vadd.f32 0.0, %v711
        %v713 = vpop.f32.mrf.mxu0
        %v714 = vadd.f32 0.0, %v713
        %715 = vmatmul.bf16.gmra.mxu0 %v557
        %v716 = vpop.f32.mrf.mxu0
        %v717 = vadd.f32 0.0, %v716
        %v718 = vpop.f32.mrf.mxu0
        %v719 = vadd.f32 0.0, %v718
        %720 = vmatmul.bf16.gmra.mxu0 %v558
        %v721 = vpop.f32.mrf.mxu0
        %v722 = vadd.f32 0.0, %v721
        %v723 = vpop.f32.mrf.mxu0
        %v724 = vadd.f32 0.0, %v723
        %725 = vmatmul.bf16.gmra.mxu0 %v559
        %v726 = vpop.f32.mrf.mxu0
        %v727 = vadd.f32 0.0, %v726
        %v728 = vpop.f32.mrf.mxu0
        %v729 = vadd.f32 0.0, %v728
        %730 = vmatmul.bf16.gmra.mxu0 %v560
        %v731 = vpop.f32.mrf.mxu0
        %v732 = vadd.f32 0.0, %v731
        %v733 = vpop.f32.mrf.mxu0
        %v734 = vadd.f32 0.0, %v733
        %735 = vmatmul.bf16.gmra.mxu0 %v597
        %v736 = vpop.f32.mrf.mxu0
        %v737 = vadd.f32 0.0, %v736
        %v738 = vpop.f32.mrf.mxu0
        %v739 = vadd.f32 0.0, %v738
        %740 = vmatmul.bf16.gmra.mxu0 %v598
        %v741 = vpop.f32.mrf.mxu0
        %v742 = vadd.f32 0.0, %v741
        %v743 = vpop.f32.mrf.mxu0
        %v744 = vadd.f32 0.0, %v743
        %745 = vmatmul.bf16.gmra.mxu0 %v599
        %v746 = vpop.f32.mrf.mxu0
        %v747 = vadd.f32 0.0, %v746
        %v748 = vpop.f32.mrf.mxu0
        %v749 = vadd.f32 0.0, %v748
        %750 = vmatmul.bf16.gmra.mxu0 %v600
        %v751 = vpop.f32.mrf.mxu0
        %v752 = vadd.f32 0.0, %v751
        %v753 = vpop.f32.mrf.mxu0
        %754 = vmatmul.bf16.gmra.mxu0 %v601
        %v755 = vpop.f32.mrf.mxu0
        %v756 = vpop.f32.mrf.mxu0
        %757 = vmatmul.bf16.gmra.mxu0 %v602
        %v758 = vpop.f32.mrf.mxu0
        %v759 = vpop.f32.mrf.mxu0
        %760 = vdwg.mxu0
        %vm786 = vcmask 1045504
        %v787 = vrot.slane %v692, 2
        %v788 = vrot.slane %v694, 2
        %v789 = vsel %vm786, %v787, %v788
        %v790 = vrot.slane %v697, 2
        %v791 = vsel %vm786, %v788, %v790
        %v792 = vrot.slane %v699, 2
        %v793 = vsel %vm786, %v790, %v792
        %v794 = vrot.slane %v702, 2
        %v795 = vsel %vm786, %v792, %v794
        %v796 = vrot.slane %v704, 2
        %v797 = vsel %vm786, %v794, %v796
        %v798 = vrot.slane %v707, 2
        %v799 = vsel %vm786, %v796, %v798
        %v800 = vrot.slane %v709, 2
        %v801 = vsel %vm786, %v798, %v800
        %v802 = vrot.slane %v712, 2
        %v803 = vsel %vm786, %v800, %v802
        %v804 = vrot.slane %v714, 2
        %v805 = vsel %vm786, %v802, %v804
        %v806 = vrot.slane %v717, 2
        %v807 = vsel %vm786, %v804, %v806
        %v808 = vrot.slane %v719, 2
        %v809 = vsel %vm786, %v806, %v808
        %v810 = vrot.slane %v722, 2
        %v811 = vsel %vm786, %v808, %v810
        %v812 = vrot.slane %v724, 2
        %v813 = vsel %vm786, %v810, %v812
        %v814 = vrot.slane %v727, 2
        %v815 = vsel %vm786, %v812, %v814
        %v816 = vrot.slane %v729, 2
        %v817 = vsel %vm786, %v814, %v816
        %v818 = vrot.slane %v732, 2
        %v819 = vsel %vm786, %v816, %v818
        %v820 = vrot.slane %v734, 2
        %v821 = vsel %vm786, %v818, %v820
        %v822 = vrot.slane %v737, 2
        %v823 = vsel %vm786, %v820, %v822
        %v824 = vrot.slane %v739, 2
        %v825 = vsel %vm786, %v822, %v824
        %v826 = vrot.slane %v742, 2
        %v827 = vsel %vm786, %v824, %v826
        %v828 = vrot.slane %v744, 2
        %v829 = vsel %vm786, %v826, %v828
        %v830 = vrot.slane %v747, 2
        %v831 = vsel %vm786, %v828, %v830
        %v832 = vrot.slane %v749, 2
        %v833 = vsel %vm786, %v830, %v832
        %v834 = vrot.slane %v752, 2
        %v835 = vsel %vm786, %v832, %v834
        %v860 = vunpack.c.l.bf16 %v549
        %v861 = vunpack.c.h.bf16 %v549
        %v862 = vunpack.c.l.bf16 %v550
        %v863 = vunpack.c.h.bf16 %v550
        %v864 = vunpack.c.l.bf16 %v551
        %v865 = vunpack.c.h.bf16 %v551
        %v866 = vunpack.c.l.bf16 %v552
        %v867 = vunpack.c.h.bf16 %v552
        %v868 = vunpack.c.l.bf16 %v553
        %v869 = vunpack.c.h.bf16 %v553
        %v870 = vunpack.c.l.bf16 %v554
        %v871 = vunpack.c.h.bf16 %v554
        %v872 = vunpack.c.l.bf16 %v555
        %v873 = vunpack.c.h.bf16 %v555
        %v874 = vunpack.c.l.bf16 %v556
        %v875 = vunpack.c.h.bf16 %v556
        %v876 = vunpack.c.l.bf16 %v557
        %v877 = vunpack.c.h.bf16 %v557
        %v878 = vunpack.c.l.bf16 %v558
        %v879 = vunpack.c.h.bf16 %v558
        %v880 = vunpack.c.l.bf16 %v559
        %v881 = vunpack.c.h.bf16 %v559
        %v882 = vunpack.c.l.bf16 %v560
        %v883 = vunpack.c.h.bf16 %v560
        %v884 = vunpack.c.l.bf16 %v597
        %v885 = vunpack.c.h.bf16 %v597
        %v886 = vunpack.c.l.bf16 %v598
        %v887 = vunpack.c.h.bf16 %v598
        %v888 = vunpack.c.l.bf16 %v599
        %v889 = vunpack.c.h.bf16 %v599
        %v890 = vunpack.c.l.bf16 %v600
        %v891 = vunpack.c.h.bf16 %v600
        %v892 = vunpack.c.l.bf16 %v601
        %v893 = vunpack.c.h.bf16 %v601
        %v894 = vunpack.c.l.bf16 %v602
        %v895 = vunpack.c.h.bf16 %v602
        %v896 = vxor.u32 %v860, 2147483648
        %v897 = vxor.u32 %v861, 2147483648
        %v898 = vxor.u32 %v862, 2147483648
        %v899 = vxor.u32 %v863, 2147483648
        %v900 = vxor.u32 %v864, 2147483648
        %v901 = vxor.u32 %v865, 2147483648
        %v902 = vxor.u32 %v866, 2147483648
        %v903 = vxor.u32 %v867, 2147483648
        %v904 = vxor.u32 %v868, 2147483648
        %v905 = vxor.u32 %v869, 2147483648
        %v906 = vxor.u32 %v870, 2147483648
        %v907 = vxor.u32 %v871, 2147483648
        %v908 = vxor.u32 %v872, 2147483648
        %v909 = vxor.u32 %v873, 2147483648
        %v910 = vxor.u32 %v874, 2147483648
        %v911 = vxor.u32 %v875, 2147483648
        %v912 = vxor.u32 %v876, 2147483648
        %v913 = vxor.u32 %v877, 2147483648
        %v914 = vxor.u32 %v878, 2147483648
        %v915 = vxor.u32 %v879, 2147483648
        %v916 = vxor.u32 %v880, 2147483648
        %v917 = vxor.u32 %v881, 2147483648
        %v918 = vxor.u32 %v882, 2147483648
        %v919 = vxor.u32 %v883, 2147483648
        %v920 = vxor.u32 %v884, 2147483648
        %v921 = vxor.u32 %v885, 2147483648
        %v922 = vxor.u32 %v886, 2147483648
        %v923 = vxor.u32 %v887, 2147483648
        %v924 = vxor.u32 %v888, 2147483648
        %v925 = vxor.u32 %v889, 2147483648
        %v926 = vxor.u32 %v890, 2147483648
        %v927 = vxor.u32 %v891, 2147483648
        %v928 = vxor.u32 %v892, 2147483648
        %v929 = vxor.u32 %v893, 2147483648
        %v930 = vxor.u32 %v894, 2147483648
        %v931 = vxor.u32 %v895, 2147483648
        %v932 = vmul.f32 %v896, 1.442695
        %v933 = vpow.pop %v932
        %v934 = vmul.f32 %v897, 1.442695
        %v935 = vpow.pop %v934
        %v936 = vmul.f32 %v898, 1.442695
        %v937 = vpow.pop %v936
        %v938 = vmul.f32 %v899, 1.442695
        %v939 = vpow.pop %v938
        %v940 = vmul.f32 %v900, 1.442695
        %v941 = vpow.pop %v940
        %v942 = vmul.f32 %v901, 1.442695
        %v943 = vpow.pop %v942
        %v944 = vmul.f32 %v902, 1.442695
        %v945 = vpow.pop %v944
        %v946 = vmul.f32 %v903, 1.442695
        %v947 = vpow.pop %v946
        %v948 = vmul.f32 %v904, 1.442695
        %v949 = vpow.pop %v948
        %v950 = vmul.f32 %v905, 1.442695
        %v951 = vpow.pop %v950
        %v952 = vmul.f32 %v906, 1.442695
        %v953 = vpow.pop %v952
        %v954 = vmul.f32 %v907, 1.442695
        %v955 = vpow.pop %v954
        %v956 = vmul.f32 %v908, 1.442695
        %v957 = vpow.pop %v956
        %v958 = vmul.f32 %v909, 1.442695
        %v959 = vpow.pop %v958
        %v960 = vmul.f32 %v910, 1.442695
        %v961 = vpow.pop %v960
        %v962 = vmul.f32 %v911, 1.442695
        %v963 = vpow.pop %v962
        %v964 = vmul.f32 %v912, 1.442695
        %v965 = vpow.pop %v964
        %v966 = vmul.f32 %v913, 1.442695
        %v967 = vpow.pop %v966
        %v968 = vmul.f32 %v914, 1.442695
        %v969 = vpow.pop %v968
        %v970 = vmul.f32 %v915, 1.442695
        %v971 = vpow.pop %v970
        %v972 = vmul.f32 %v916, 1.442695
        %v973 = vpow.pop %v972
        %v974 = vmul.f32 %v917, 1.442695
        %v975 = vpow.pop %v974
        %v976 = vmul.f32 %v918, 1.442695
        %v977 = vpow.pop %v976
        %v978 = vmul.f32 %v919, 1.442695
        %v979 = vpow.pop %v978
        %v980 = vmul.f32 %v920, 1.442695
        %v981 = vpow.pop %v980
        %v982 = vmul.f32 %v921, 1.442695
        %v983 = vpow.pop %v982
        %v984 = vmul.f32 %v922, 1.442695
        %v985 = vpow.pop %v984
        %v986 = vmul.f32 %v923, 1.442695
        %v987 = vpow.pop %v986
        %v988 = vmul.f32 %v924, 1.442695
        %v989 = vpow.pop %v988
        %v990 = vmul.f32 %v925, 1.442695
        %v991 = vpow.pop %v990
        %v992 = vmul.f32 %v926, 1.442695
        %v993 = vpow.pop %v992
        %v994 = vmul.f32 %v927, 1.442695
        %v995 = vpow.pop %v994
        %v996 = vmul.f32 %v928, 1.442695
        %v997 = vpow.pop %v996
        %v998 = vmul.f32 %v929, 1.442695
        %v999 = vpow.pop %v998
        %v1000 = vmul.f32 %v930, 1.442695
        %v1001 = vpow.pop %v1000
        %v1002 = vmul.f32 %v931, 1.442695
        %v1003 = vpow.pop %v1002
        %v1004 = vadd.f32 %v933, 1.0
        %v1005 = vadd.f32 %v935, 1.0
        %v1006 = vadd.f32 %v937, 1.0
        %v1007 = vadd.f32 %v939, 1.0
        %v1008 = vadd.f32 %v941, 1.0
        %v1009 = vadd.f32 %v943, 1.0
        %v1010 = vadd.f32 %v945, 1.0
        %v1011 = vadd.f32 %v947, 1.0
        %v1012 = vadd.f32 %v949, 1.0
        %v1013 = vadd.f32 %v951, 1.0
        %v1014 = vadd.f32 %v953, 1.0
        %v1015 = vadd.f32 %v955, 1.0
        %v1016 = vadd.f32 %v957, 1.0
        %v1017 = vadd.f32 %v959, 1.0
        %v1018 = vadd.f32 %v961, 1.0
        %v1019 = vadd.f32 %v963, 1.0
        %v1020 = vadd.f32 %v965, 1.0
        %v1021 = vadd.f32 %v967, 1.0
        %v1022 = vadd.f32 %v969, 1.0
        %v1023 = vadd.f32 %v971, 1.0
        %v1024 = vadd.f32 %v973, 1.0
        %v1025 = vadd.f32 %v975, 1.0
        %v1026 = vadd.f32 %v977, 1.0
        %v1027 = vadd.f32 %v979, 1.0
        %v1028 = vadd.f32 %v981, 1.0
        %v1029 = vadd.f32 %v983, 1.0
        %v1030 = vadd.f32 %v985, 1.0
        %v1031 = vadd.f32 %v987, 1.0
        %v1032 = vadd.f32 %v989, 1.0
        %v1033 = vadd.f32 %v991, 1.0
        %v1034 = vadd.f32 %v993, 1.0
        %v1035 = vadd.f32 %v995, 1.0
        %v1036 = vadd.f32 %v997, 1.0
        %v1037 = vadd.f32 %v999, 1.0
        %v1038 = vadd.f32 %v1001, 1.0
        %v1039 = vadd.f32 %v1003, 1.0
        %v1040 = vrcp.pop %v1004
        %v1041 = vmul.f32 %v1004, %v1040
        %v1042 = vsub.f32 1.0, %v1041
        %v1043 = vmul.f32 %v1040, %v1042
        %v1044 = vadd.f32 %v1040, %v1043
        %vm1045 = vweird.f32 %v1004
        %vm1046 = vweird.f32 %v1040
        %vm1047 = vmor %vm1045, %vm1046
        %v1048 = vsel %vm1047, %v1040, %v1044
        %v1049 = vand.u32 2147483647, %v1004
        %vm1050 = vcmp.eq.f32.partialorder %v1049, 8.507059e+37
        %v1051 = vand.u32 %v1004, 2147483648
        %v1052 = vor.u32 1.1754944e-38, %v1051
        %v1053 = vsel %vm1050, %v1052, %v1048
        %v1054 = vmul.f32 1.0, %v1053
        %v1055 = vrcp.pop %v1005
        %v1056 = vmul.f32 %v1005, %v1055
        %v1057 = vsub.f32 1.0, %v1056
        %v1058 = vmul.f32 %v1055, %v1057
        %v1059 = vadd.f32 %v1055, %v1058
        %vm1060 = vweird.f32 %v1005
        %vm1061 = vweird.f32 %v1055
        %vm1062 = vmor %vm1060, %vm1061
        %v1063 = vsel %vm1062, %v1055, %v1059
        %v1064 = vand.u32 2147483647, %v1005
        %vm1065 = vcmp.eq.f32.partialorder %v1064, 8.507059e+37
        %v1066 = vand.u32 %v1005, 2147483648
        %v1067 = vor.u32 1.1754944e-38, %v1066
        %v1068 = vsel %vm1065, %v1067, %v1063
        %v1069 = vmul.f32 1.0, %v1068
        %v1070 = vrcp.pop %v1006
        %v1071 = vmul.f32 %v1006, %v1070
        %v1072 = vsub.f32 1.0, %v1071
        %v1073 = vmul.f32 %v1070, %v1072
        %v1074 = vadd.f32 %v1070, %v1073
        %vm1075 = vweird.f32 %v1006
        %vm1076 = vweird.f32 %v1070
        %vm1077 = vmor %vm1075, %vm1076
        %v1078 = vsel %vm1077, %v1070, %v1074
        %v1079 = vand.u32 2147483647, %v1006
        %vm1080 = vcmp.eq.f32.partialorder %v1079, 8.507059e+37
        %v1081 = vand.u32 %v1006, 2147483648
        %v1082 = vor.u32 1.1754944e-38, %v1081
        %v1083 = vsel %vm1080, %v1082, %v1078
        %v1084 = vmul.f32 1.0, %v1083
        %v1085 = vrcp.pop %v1007
        %v1086 = vmul.f32 %v1007, %v1085
        %v1087 = vsub.f32 1.0, %v1086
        %v1088 = vmul.f32 %v1085, %v1087
        %v1089 = vadd.f32 %v1085, %v1088
        %vm1090 = vweird.f32 %v1007
        %vm1091 = vweird.f32 %v1085
        %vm1092 = vmor %vm1090, %vm1091
        %v1093 = vsel %vm1092, %v1085, %v1089
        %v1094 = vand.u32 2147483647, %v1007
        %vm1095 = vcmp.eq.f32.partialorder %v1094, 8.507059e+37
        %v1096 = vand.u32 %v1007, 2147483648
        %v1097 = vor.u32 1.1754944e-38, %v1096
        %v1098 = vsel %vm1095, %v1097, %v1093
        %v1099 = vmul.f32 1.0, %v1098
        %v1100 = vrcp.pop %v1008
        %v1101 = vmul.f32 %v1008, %v1100
        %v1102 = vsub.f32 1.0, %v1101
        %v1103 = vmul.f32 %v1100, %v1102
        %v1104 = vadd.f32 %v1100, %v1103
        %vm1105 = vweird.f32 %v1008
        %vm1106 = vweird.f32 %v1100
        %vm1107 = vmor %vm1105, %vm1106
        %v1108 = vsel %vm1107, %v1100, %v1104
        %v1109 = vand.u32 2147483647, %v1008
        %vm1110 = vcmp.eq.f32.partialorder %v1109, 8.507059e+37
        %v1111 = vand.u32 %v1008, 2147483648
        %v1112 = vor.u32 1.1754944e-38, %v1111
        %v1113 = vsel %vm1110, %v1112, %v1108
        %v1114 = vmul.f32 1.0, %v1113
        %v1115 = vrcp.pop %v1009
        %v1116 = vmul.f32 %v1009, %v1115
        %v1117 = vsub.f32 1.0, %v1116
        %v1118 = vmul.f32 %v1115, %v1117
        %v1119 = vadd.f32 %v1115, %v1118
        %vm1120 = vweird.f32 %v1009
        %vm1121 = vweird.f32 %v1115
        %vm1122 = vmor %vm1120, %vm1121
        %v1123 = vsel %vm1122, %v1115, %v1119
        %v1124 = vand.u32 2147483647, %v1009
        %vm1125 = vcmp.eq.f32.partialorder %v1124, 8.507059e+37
        %v1126 = vand.u32 %v1009, 2147483648
        %v1127 = vor.u32 1.1754944e-38, %v1126
        %v1128 = vsel %vm1125, %v1127, %v1123
        %v1129 = vmul.f32 1.0, %v1128
        %v1130 = vrcp.pop %v1010
        %v1131 = vmul.f32 %v1010, %v1130
        %v1132 = vsub.f32 1.0, %v1131
        %v1133 = vmul.f32 %v1130, %v1132
        %v1134 = vadd.f32 %v1130, %v1133
        %vm1135 = vweird.f32 %v1010
        %vm1136 = vweird.f32 %v1130
        %vm1137 = vmor %vm1135, %vm1136
        %v1138 = vsel %vm1137, %v1130, %v1134
        %v1139 = vand.u32 2147483647, %v1010
        %vm1140 = vcmp.eq.f32.partialorder %v1139, 8.507059e+37
        %v1141 = vand.u32 %v1010, 2147483648
        %v1142 = vor.u32 1.1754944e-38, %v1141
        %v1143 = vsel %vm1140, %v1142, %v1138
        %v1144 = vmul.f32 1.0, %v1143
        %v1145 = vrcp.pop %v1011
        %v1146 = vmul.f32 %v1011, %v1145
        %v1147 = vsub.f32 1.0, %v1146
        %v1148 = vmul.f32 %v1145, %v1147
        %v1149 = vadd.f32 %v1145, %v1148
        %vm1150 = vweird.f32 %v1011
        %vm1151 = vweird.f32 %v1145
        %vm1152 = vmor %vm1150, %vm1151
        %v1153 = vsel %vm1152, %v1145, %v1149
        %v1154 = vand.u32 2147483647, %v1011
        %vm1155 = vcmp.eq.f32.partialorder %v1154, 8.507059e+37
        %v1156 = vand.u32 %v1011, 2147483648
        %v1157 = vor.u32 1.1754944e-38, %v1156
        %v1158 = vsel %vm1155, %v1157, %v1153
        %v1159 = vmul.f32 1.0, %v1158
        %v1160 = vrcp.pop %v1012
        %v1161 = vmul.f32 %v1012, %v1160
        %v1162 = vsub.f32 1.0, %v1161
        %v1163 = vmul.f32 %v1160, %v1162
        %v1164 = vadd.f32 %v1160, %v1163
        %vm1165 = vweird.f32 %v1012
        %vm1166 = vweird.f32 %v1160
        %vm1167 = vmor %vm1165, %vm1166
        %v1168 = vsel %vm1167, %v1160, %v1164
        %v1169 = vand.u32 2147483647, %v1012
        %vm1170 = vcmp.eq.f32.partialorder %v1169, 8.507059e+37
        %v1171 = vand.u32 %v1012, 2147483648
        %v1172 = vor.u32 1.1754944e-38, %v1171
        %v1173 = vsel %vm1170, %v1172, %v1168
        %v1174 = vmul.f32 1.0, %v1173
        %v1175 = vrcp.pop %v1013
        %v1176 = vmul.f32 %v1013, %v1175
        %v1177 = vsub.f32 1.0, %v1176
        %v1178 = vmul.f32 %v1175, %v1177
        %v1179 = vadd.f32 %v1175, %v1178
        %vm1180 = vweird.f32 %v1013
        %vm1181 = vweird.f32 %v1175
        %vm1182 = vmor %vm1180, %vm1181
        %v1183 = vsel %vm1182, %v1175, %v1179
        %v1184 = vand.u32 2147483647, %v1013
        %vm1185 = vcmp.eq.f32.partialorder %v1184, 8.507059e+37
        %v1186 = vand.u32 %v1013, 2147483648
        %v1187 = vor.u32 1.1754944e-38, %v1186
        %v1188 = vsel %vm1185, %v1187, %v1183
        %v1189 = vmul.f32 1.0, %v1188
        %v1190 = vrcp.pop %v1014
        %v1191 = vmul.f32 %v1014, %v1190
        %v1192 = vsub.f32 1.0, %v1191
        %v1193 = vmul.f32 %v1190, %v1192
        %v1194 = vadd.f32 %v1190, %v1193
        %vm1195 = vweird.f32 %v1014
        %vm1196 = vweird.f32 %v1190
        %vm1197 = vmor %vm1195, %vm1196
        %v1198 = vsel %vm1197, %v1190, %v1194
        %v1199 = vand.u32 2147483647, %v1014
        %vm1200 = vcmp.eq.f32.partialorder %v1199, 8.507059e+37
        %v1201 = vand.u32 %v1014, 2147483648
        %v1202 = vor.u32 1.1754944e-38, %v1201
        %v1203 = vsel %vm1200, %v1202, %v1198
        %v1204 = vmul.f32 1.0, %v1203
        %v1205 = vrcp.pop %v1015
        %v1206 = vmul.f32 %v1015, %v1205
        %v1207 = vsub.f32 1.0, %v1206
        %v1208 = vmul.f32 %v1205, %v1207
        %v1209 = vadd.f32 %v1205, %v1208
        %vm1210 = vweird.f32 %v1015
        %vm1211 = vweird.f32 %v1205
        %vm1212 = vmor %vm1210, %vm1211
        %v1213 = vsel %vm1212, %v1205, %v1209
        %v1214 = vand.u32 2147483647, %v1015
        %vm1215 = vcmp.eq.f32.partialorder %v1214, 8.507059e+37
        %v1216 = vand.u32 %v1015, 2147483648
        %v1217 = vor.u32 1.1754944e-38, %v1216
        %v1218 = vsel %vm1215, %v1217, %v1213
        %v1219 = vmul.f32 1.0, %v1218
        %v1220 = vrcp.pop %v1016
        %v1221 = vmul.f32 %v1016, %v1220
        %v1222 = vsub.f32 1.0, %v1221
        %v1223 = vmul.f32 %v1220, %v1222
        %v1224 = vadd.f32 %v1220, %v1223
        %vm1225 = vweird.f32 %v1016
        %vm1226 = vweird.f32 %v1220
        %vm1227 = vmor %vm1225, %vm1226
        %v1228 = vsel %vm1227, %v1220, %v1224
        %v1229 = vand.u32 2147483647, %v1016
        %vm1230 = vcmp.eq.f32.partialorder %v1229, 8.507059e+37
        %v1231 = vand.u32 %v1016, 2147483648
        %v1232 = vor.u32 1.1754944e-38, %v1231
        %v1233 = vsel %vm1230, %v1232, %v1228
        %v1234 = vmul.f32 1.0, %v1233
        %v1235 = vrcp.pop %v1017
        %v1236 = vmul.f32 %v1017, %v1235
        %v1237 = vsub.f32 1.0, %v1236
        %v1238 = vmul.f32 %v1235, %v1237
        %v1239 = vadd.f32 %v1235, %v1238
        %vm1240 = vweird.f32 %v1017
        %vm1241 = vweird.f32 %v1235
        %vm1242 = vmor %vm1240, %vm1241
        %v1243 = vsel %vm1242, %v1235, %v1239
        %v1244 = vand.u32 2147483647, %v1017
        %vm1245 = vcmp.eq.f32.partialorder %v1244, 8.507059e+37
        %v1246 = vand.u32 %v1017, 2147483648
        %v1247 = vor.u32 1.1754944e-38, %v1246
        %v1248 = vsel %vm1245, %v1247, %v1243
        %v1249 = vmul.f32 1.0, %v1248
        %v1250 = vrcp.pop %v1018
        %v1251 = vmul.f32 %v1018, %v1250
        %v1252 = vsub.f32 1.0, %v1251
        %v1253 = vmul.f32 %v1250, %v1252
        %v1254 = vadd.f32 %v1250, %v1253
        %vm1255 = vweird.f32 %v1018
        %vm1256 = vweird.f32 %v1250
        %vm1257 = vmor %vm1255, %vm1256
        %v1258 = vsel %vm1257, %v1250, %v1254
        %v1259 = vand.u32 2147483647, %v1018
        %vm1260 = vcmp.eq.f32.partialorder %v1259, 8.507059e+37
        %v1261 = vand.u32 %v1018, 2147483648
        %v1262 = vor.u32 1.1754944e-38, %v1261
        %v1263 = vsel %vm1260, %v1262, %v1258
        %v1264 = vmul.f32 1.0, %v1263
        %v1265 = vrcp.pop %v1019
        %v1266 = vmul.f32 %v1019, %v1265
        %v1267 = vsub.f32 1.0, %v1266
        %v1268 = vmul.f32 %v1265, %v1267
        %v1269 = vadd.f32 %v1265, %v1268
        %vm1270 = vweird.f32 %v1019
        %vm1271 = vweird.f32 %v1265
        %vm1272 = vmor %vm1270, %vm1271
        %v1273 = vsel %vm1272, %v1265, %v1269
        %v1274 = vand.u32 2147483647, %v1019
        %vm1275 = vcmp.eq.f32.partialorder %v1274, 8.507059e+37
        %v1276 = vand.u32 %v1019, 2147483648
        %v1277 = vor.u32 1.1754944e-38, %v1276
        %v1278 = vsel %vm1275, %v1277, %v1273
        %v1279 = vmul.f32 1.0, %v1278
        %v1280 = vrcp.pop %v1020
        %v1281 = vmul.f32 %v1020, %v1280
        %v1282 = vsub.f32 1.0, %v1281
        %v1283 = vmul.f32 %v1280, %v1282
        %v1284 = vadd.f32 %v1280, %v1283
        %vm1285 = vweird.f32 %v1020
        %vm1286 = vweird.f32 %v1280
        %vm1287 = vmor %vm1285, %vm1286
        %v1288 = vsel %vm1287, %v1280, %v1284
        %v1289 = vand.u32 2147483647, %v1020
        %vm1290 = vcmp.eq.f32.partialorder %v1289, 8.507059e+37
        %v1291 = vand.u32 %v1020, 2147483648
        %v1292 = vor.u32 1.1754944e-38, %v1291
        %v1293 = vsel %vm1290, %v1292, %v1288
        %v1294 = vmul.f32 1.0, %v1293
        %v1295 = vrcp.pop %v1021
        %v1296 = vmul.f32 %v1021, %v1295
        %v1297 = vsub.f32 1.0, %v1296
        %v1298 = vmul.f32 %v1295, %v1297
        %v1299 = vadd.f32 %v1295, %v1298
        %vm1300 = vweird.f32 %v1021
        %vm1301 = vweird.f32 %v1295
        %vm1302 = vmor %vm1300, %vm1301
        %v1303 = vsel %vm1302, %v1295, %v1299
        %v1304 = vand.u32 2147483647, %v1021
        %vm1305 = vcmp.eq.f32.partialorder %v1304, 8.507059e+37
        %v1306 = vand.u32 %v1021, 2147483648
        %v1307 = vor.u32 1.1754944e-38, %v1306
        %v1308 = vsel %vm1305, %v1307, %v1303
        %v1309 = vmul.f32 1.0, %v1308
        %v1310 = vrcp.pop %v1022
        %v1311 = vmul.f32 %v1022, %v1310
        %v1312 = vsub.f32 1.0, %v1311
        %v1313 = vmul.f32 %v1310, %v1312
        %v1314 = vadd.f32 %v1310, %v1313
        %vm1315 = vweird.f32 %v1022
        %vm1316 = vweird.f32 %v1310
        %vm1317 = vmor %vm1315, %vm1316
        %v1318 = vsel %vm1317, %v1310, %v1314
        %v1319 = vand.u32 2147483647, %v1022
        %vm1320 = vcmp.eq.f32.partialorder %v1319, 8.507059e+37
        %v1321 = vand.u32 %v1022, 2147483648
        %v1322 = vor.u32 1.1754944e-38, %v1321
        %v1323 = vsel %vm1320, %v1322, %v1318
        %v1324 = vmul.f32 1.0, %v1323
        %v1325 = vrcp.pop %v1023
        %v1326 = vmul.f32 %v1023, %v1325
        %v1327 = vsub.f32 1.0, %v1326
        %v1328 = vmul.f32 %v1325, %v1327
        %v1329 = vadd.f32 %v1325, %v1328
        %vm1330 = vweird.f32 %v1023
        %vm1331 = vweird.f32 %v1325
        %vm1332 = vmor %vm1330, %vm1331
        %v1333 = vsel %vm1332, %v1325, %v1329
        %v1334 = vand.u32 2147483647, %v1023
        %vm1335 = vcmp.eq.f32.partialorder %v1334, 8.507059e+37
        %v1336 = vand.u32 %v1023, 2147483648
        %v1337 = vor.u32 1.1754944e-38, %v1336
        %v1338 = vsel %vm1335, %v1337, %v1333
        %v1339 = vmul.f32 1.0, %v1338
        %v1340 = vrcp.pop %v1024
        %v1341 = vmul.f32 %v1024, %v1340
        %v1342 = vsub.f32 1.0, %v1341
        %v1343 = vmul.f32 %v1340, %v1342
        %v1344 = vadd.f32 %v1340, %v1343
        %vm1345 = vweird.f32 %v1024
        %vm1346 = vweird.f32 %v1340
        %vm1347 = vmor %vm1345, %vm1346
        %v1348 = vsel %vm1347, %v1340, %v1344
        %v1349 = vand.u32 2147483647, %v1024
        %vm1350 = vcmp.eq.f32.partialorder %v1349, 8.507059e+37
        %v1351 = vand.u32 %v1024, 2147483648
        %v1352 = vor.u32 1.1754944e-38, %v1351
        %v1353 = vsel %vm1350, %v1352, %v1348
        %v1354 = vmul.f32 1.0, %v1353
        %v1355 = vrcp.pop %v1025
        %v1356 = vmul.f32 %v1025, %v1355
        %v1357 = vsub.f32 1.0, %v1356
        %v1358 = vmul.f32 %v1355, %v1357
        %v1359 = vadd.f32 %v1355, %v1358
        %vm1360 = vweird.f32 %v1025
        %vm1361 = vweird.f32 %v1355
        %vm1362 = vmor %vm1360, %vm1361
        %v1363 = vsel %vm1362, %v1355, %v1359
        %v1364 = vand.u32 2147483647, %v1025
        %vm1365 = vcmp.eq.f32.partialorder %v1364, 8.507059e+37
        %v1366 = vand.u32 %v1025, 2147483648
        %v1367 = vor.u32 1.1754944e-38, %v1366
        %v1368 = vsel %vm1365, %v1367, %v1363
        %v1369 = vmul.f32 1.0, %v1368
        %v1370 = vrcp.pop %v1026
        %v1371 = vmul.f32 %v1026, %v1370
        %v1372 = vsub.f32 1.0, %v1371
        %v1373 = vmul.f32 %v1370, %v1372
        %v1374 = vadd.f32 %v1370, %v1373
        %vm1375 = vweird.f32 %v1026
        %vm1376 = vweird.f32 %v1370
        %vm1377 = vmor %vm1375, %vm1376
        %v1378 = vsel %vm1377, %v1370, %v1374
        %v1379 = vand.u32 2147483647, %v1026
        %vm1380 = vcmp.eq.f32.partialorder %v1379, 8.507059e+37
        %v1381 = vand.u32 %v1026, 2147483648
        %v1382 = vor.u32 1.1754944e-38, %v1381
        %v1383 = vsel %vm1380, %v1382, %v1378
        %v1384 = vmul.f32 1.0, %v1383
        %v1385 = vrcp.pop %v1027
        %v1386 = vmul.f32 %v1027, %v1385
        %v1387 = vsub.f32 1.0, %v1386
        %v1388 = vmul.f32 %v1385, %v1387
        %v1389 = vadd.f32 %v1385, %v1388
        %vm1390 = vweird.f32 %v1027
        %vm1391 = vweird.f32 %v1385
        %vm1392 = vmor %vm1390, %vm1391
        %v1393 = vsel %vm1392, %v1385, %v1389
        %v1394 = vand.u32 2147483647, %v1027
        %vm1395 = vcmp.eq.f32.partialorder %v1394, 8.507059e+37
        %v1396 = vand.u32 %v1027, 2147483648
        %v1397 = vor.u32 1.1754944e-38, %v1396
        %v1398 = vsel %vm1395, %v1397, %v1393
        %v1399 = vmul.f32 1.0, %v1398
        %v1400 = vrcp.pop %v1028
        %v1401 = vmul.f32 %v1028, %v1400
        %v1402 = vsub.f32 1.0, %v1401
        %v1403 = vmul.f32 %v1400, %v1402
        %v1404 = vadd.f32 %v1400, %v1403
        %vm1405 = vweird.f32 %v1028
        %vm1406 = vweird.f32 %v1400
        %vm1407 = vmor %vm1405, %vm1406
        %v1408 = vsel %vm1407, %v1400, %v1404
        %v1409 = vand.u32 2147483647, %v1028
        %vm1410 = vcmp.eq.f32.partialorder %v1409, 8.507059e+37
        %v1411 = vand.u32 %v1028, 2147483648
        %v1412 = vor.u32 1.1754944e-38, %v1411
        %v1413 = vsel %vm1410, %v1412, %v1408
        %v1414 = vmul.f32 1.0, %v1413
        %v1415 = vrcp.pop %v1029
        %v1416 = vmul.f32 %v1029, %v1415
        %v1417 = vsub.f32 1.0, %v1416
        %v1418 = vmul.f32 %v1415, %v1417
        %v1419 = vadd.f32 %v1415, %v1418
        %vm1420 = vweird.f32 %v1029
        %vm1421 = vweird.f32 %v1415
        %vm1422 = vmor %vm1420, %vm1421
        %v1423 = vsel %vm1422, %v1415, %v1419
        %v1424 = vand.u32 2147483647, %v1029
        %vm1425 = vcmp.eq.f32.partialorder %v1424, 8.507059e+37
        %v1426 = vand.u32 %v1029, 2147483648
        %v1427 = vor.u32 1.1754944e-38, %v1426
        %v1428 = vsel %vm1425, %v1427, %v1423
        %v1429 = vmul.f32 1.0, %v1428
        %v1430 = vrcp.pop %v1030
        %v1431 = vmul.f32 %v1030, %v1430
        %v1432 = vsub.f32 1.0, %v1431
        %v1433 = vmul.f32 %v1430, %v1432
        %v1434 = vadd.f32 %v1430, %v1433
        %vm1435 = vweird.f32 %v1030
        %vm1436 = vweird.f32 %v1430
        %vm1437 = vmor %vm1435, %vm1436
        %v1438 = vsel %vm1437, %v1430, %v1434
        %v1439 = vand.u32 2147483647, %v1030
        %vm1440 = vcmp.eq.f32.partialorder %v1439, 8.507059e+37
        %v1441 = vand.u32 %v1030, 2147483648
        %v1442 = vor.u32 1.1754944e-38, %v1441
        %v1443 = vsel %vm1440, %v1442, %v1438
        %v1444 = vmul.f32 1.0, %v1443
        %v1445 = vrcp.pop %v1031
        %v1446 = vmul.f32 %v1031, %v1445
        %v1447 = vsub.f32 1.0, %v1446
        %v1448 = vmul.f32 %v1445, %v1447
        %v1449 = vadd.f32 %v1445, %v1448
        %vm1450 = vweird.f32 %v1031
        %vm1451 = vweird.f32 %v1445
        %vm1452 = vmor %vm1450, %vm1451
        %v1453 = vsel %vm1452, %v1445, %v1449
        %v1454 = vand.u32 2147483647, %v1031
        %vm1455 = vcmp.eq.f32.partialorder %v1454, 8.507059e+37
        %v1456 = vand.u32 %v1031, 2147483648
        %v1457 = vor.u32 1.1754944e-38, %v1456
        %v1458 = vsel %vm1455, %v1457, %v1453
        %v1459 = vmul.f32 1.0, %v1458
        %v1460 = vrcp.pop %v1032
        %v1461 = vmul.f32 %v1032, %v1460
        %v1462 = vsub.f32 1.0, %v1461
        %v1463 = vmul.f32 %v1460, %v1462
        %v1464 = vadd.f32 %v1460, %v1463
        %vm1465 = vweird.f32 %v1032
        %vm1466 = vweird.f32 %v1460
        %vm1467 = vmor %vm1465, %vm1466
        %v1468 = vsel %vm1467, %v1460, %v1464
        %v1469 = vand.u32 2147483647, %v1032
        %vm1470 = vcmp.eq.f32.partialorder %v1469, 8.507059e+37
        %v1471 = vand.u32 %v1032, 2147483648
        %v1472 = vor.u32 1.1754944e-38, %v1471
        %v1473 = vsel %vm1470, %v1472, %v1468
        %v1474 = vmul.f32 1.0, %v1473
        %v1475 = vrcp.pop %v1033
        %v1476 = vmul.f32 %v1033, %v1475
        %v1477 = vsub.f32 1.0, %v1476
        %v1478 = vmul.f32 %v1475, %v1477
        %v1479 = vadd.f32 %v1475, %v1478
        %vm1480 = vweird.f32 %v1033
        %vm1481 = vweird.f32 %v1475
        %vm1482 = vmor %vm1480, %vm1481
        %v1483 = vsel %vm1482, %v1475, %v1479
        %v1484 = vand.u32 2147483647, %v1033
        %vm1485 = vcmp.eq.f32.partialorder %v1484, 8.507059e+37
        %v1486 = vand.u32 %v1033, 2147483648
        %v1487 = vor.u32 1.1754944e-38, %v1486
        %v1488 = vsel %vm1485, %v1487, %v1483
        %v1489 = vmul.f32 1.0, %v1488
        %v1490 = vrcp.pop %v1034
        %v1491 = vmul.f32 %v1034, %v1490
        %v1492 = vsub.f32 1.0, %v1491
        %v1493 = vmul.f32 %v1490, %v1492
        %v1494 = vadd.f32 %v1490, %v1493
        %vm1495 = vweird.f32 %v1034
        %vm1496 = vweird.f32 %v1490
        %vm1497 = vmor %vm1495, %vm1496
        %v1498 = vsel %vm1497, %v1490, %v1494
        %v1499 = vand.u32 2147483647, %v1034
        %vm1500 = vcmp.eq.f32.partialorder %v1499, 8.507059e+37
        %v1501 = vand.u32 %v1034, 2147483648
        %v1502 = vor.u32 1.1754944e-38, %v1501
        %v1503 = vsel %vm1500, %v1502, %v1498
        %v1504 = vmul.f32 1.0, %v1503
        %v1505 = vrcp.pop %v1035
        %v1506 = vmul.f32 %v1035, %v1505
        %v1507 = vsub.f32 1.0, %v1506
        %v1508 = vmul.f32 %v1505, %v1507
        %v1509 = vadd.f32 %v1505, %v1508
        %vm1510 = vweird.f32 %v1035
        %vm1511 = vweird.f32 %v1505
        %vm1512 = vmor %vm1510, %vm1511
        %v1513 = vsel %vm1512, %v1505, %v1509
        %v1514 = vand.u32 2147483647, %v1035
        %vm1515 = vcmp.eq.f32.partialorder %v1514, 8.507059e+37
        %v1516 = vand.u32 %v1035, 2147483648
        %v1517 = vor.u32 1.1754944e-38, %v1516
        %v1518 = vsel %vm1515, %v1517, %v1513
        %v1519 = vmul.f32 1.0, %v1518
        %v1520 = vrcp.pop %v1036
        %v1521 = vmul.f32 %v1036, %v1520
        %v1522 = vsub.f32 1.0, %v1521
        %v1523 = vmul.f32 %v1520, %v1522
        %v1524 = vadd.f32 %v1520, %v1523
        %vm1525 = vweird.f32 %v1036
        %vm1526 = vweird.f32 %v1520
        %vm1527 = vmor %vm1525, %vm1526
        %v1528 = vsel %vm1527, %v1520, %v1524
        %v1529 = vand.u32 2147483647, %v1036
        %vm1530 = vcmp.eq.f32.partialorder %v1529, 8.507059e+37
        %v1531 = vand.u32 %v1036, 2147483648
        %v1532 = vor.u32 1.1754944e-38, %v1531
        %v1533 = vsel %vm1530, %v1532, %v1528
        %v1534 = vmul.f32 1.0, %v1533
        %v1535 = vrcp.pop %v1037
        %v1536 = vmul.f32 %v1037, %v1535
        %v1537 = vsub.f32 1.0, %v1536
        %v1538 = vmul.f32 %v1535, %v1537
        %v1539 = vadd.f32 %v1535, %v1538
        %vm1540 = vweird.f32 %v1037
        %vm1541 = vweird.f32 %v1535
        %vm1542 = vmor %vm1540, %vm1541
        %v1543 = vsel %vm1542, %v1535, %v1539
        %v1544 = vand.u32 2147483647, %v1037
        %vm1545 = vcmp.eq.f32.partialorder %v1544, 8.507059e+37
        %v1546 = vand.u32 %v1037, 2147483648
        %v1547 = vor.u32 1.1754944e-38, %v1546
        %v1548 = vsel %vm1545, %v1547, %v1543
        %v1549 = vmul.f32 1.0, %v1548
        %v1550 = vrcp.pop %v1038
        %v1551 = vmul.f32 %v1038, %v1550
        %v1552 = vsub.f32 1.0, %v1551
        %v1553 = vmul.f32 %v1550, %v1552
        %v1554 = vadd.f32 %v1550, %v1553
        %vm1555 = vweird.f32 %v1038
        %vm1556 = vweird.f32 %v1550
        %vm1557 = vmor %vm1555, %vm1556
        %v1558 = vsel %vm1557, %v1550, %v1554
        %v1559 = vand.u32 2147483647, %v1038
        %vm1560 = vcmp.eq.f32.partialorder %v1559, 8.507059e+37
        %v1561 = vand.u32 %v1038, 2147483648
        %v1562 = vor.u32 1.1754944e-38, %v1561
        %v1563 = vsel %vm1560, %v1562, %v1558
        %v1564 = vmul.f32 1.0, %v1563
        %v1565 = vrcp.pop %v1039
        %v1566 = vmul.f32 %v1039, %v1565
        %v1567 = vsub.f32 1.0, %v1566
        %v1568 = vmul.f32 %v1565, %v1567
        %v1569 = vadd.f32 %v1565, %v1568
        %vm1570 = vweird.f32 %v1039
        %vm1571 = vweird.f32 %v1565
        %vm1572 = vmor %vm1570, %vm1571
        %v1573 = vsel %vm1572, %v1565, %v1569
        %v1574 = vand.u32 2147483647, %v1039
        %vm1575 = vcmp.eq.f32.partialorder %v1574, 8.507059e+37
        %v1576 = vand.u32 %v1039, 2147483648
        %v1577 = vor.u32 1.1754944e-38, %v1576
        %v1578 = vsel %vm1575, %v1577, %v1573
        %v1579 = vmul.f32 1.0, %v1578
        %v1580 = vmul.f32 %v860, %v1054
        %v1581 = vmul.f32 %v861, %v1069
        %v1582 = vmul.f32 %v862, %v1084
        %v1583 = vmul.f32 %v863, %v1099
        %v1584 = vmul.f32 %v864, %v1114
        %v1585 = vmul.f32 %v865, %v1129
        %v1586 = vmul.f32 %v866, %v1144
        %v1587 = vmul.f32 %v867, %v1159
        %v1588 = vmul.f32 %v868, %v1174
        %v1589 = vmul.f32 %v869, %v1189
        %v1590 = vmul.f32 %v870, %v1204
        %v1591 = vmul.f32 %v871, %v1219
        %v1592 = vmul.f32 %v872, %v1234
        %v1593 = vmul.f32 %v873, %v1249
        %v1594 = vmul.f32 %v874, %v1264
        %v1595 = vmul.f32 %v875, %v1279
        %v1596 = vmul.f32 %v876, %v1294
        %v1597 = vmul.f32 %v877, %v1309
        %v1598 = vmul.f32 %v878, %v1324
        %v1599 = vmul.f32 %v879, %v1339
        %v1600 = vmul.f32 %v880, %v1354
        %v1601 = vmul.f32 %v881, %v1369
        %v1602 = vmul.f32 %v882, %v1384
        %v1603 = vmul.f32 %v883, %v1399
        %v1604 = vmul.f32 %v884, %v1414
        %v1605 = vmul.f32 %v885, %v1429
        %v1606 = vmul.f32 %v886, %v1444
        %v1607 = vmul.f32 %v887, %v1459
        %v1608 = vmul.f32 %v888, %v1474
        %v1609 = vmul.f32 %v889, %v1489
        %v1610 = vmul.f32 %v890, %v1504
        %v1611 = vmul.f32 %v891, %v1519
        %v1612 = vmul.f32 %v892, %v1534
        %v1613 = vmul.f32 %v893, %v1549
        %v1614 = vmul.f32 %v894, %v1564
        %v1615 = vmul.f32 %v895, %v1579
        %v1616 = vpack.c.bf16 %v1580, %v1580
        %v1617 = vpack.c.bf16 %v1581, %v1581
        %v1618 = vpack.c.bf16 %v1582, %v1582
        %v1619 = vpack.c.bf16 %v1583, %v1583
        %v1620 = vpack.c.bf16 %v1584, %v1584
        %v1621 = vpack.c.bf16 %v1585, %v1585
        %v1622 = vpack.c.bf16 %v1586, %v1586
        %v1623 = vpack.c.bf16 %v1587, %v1587
        %v1624 = vpack.c.bf16 %v1588, %v1588
        %v1625 = vpack.c.bf16 %v1589, %v1589
        %v1626 = vpack.c.bf16 %v1590, %v1590
        %v1627 = vpack.c.bf16 %v1591, %v1591
        %v1628 = vpack.c.bf16 %v1592, %v1592
        %v1629 = vpack.c.bf16 %v1593, %v1593
        %v1630 = vpack.c.bf16 %v1594, %v1594
        %v1631 = vpack.c.bf16 %v1595, %v1595
        %v1632 = vpack.c.bf16 %v1596, %v1596
        %v1633 = vpack.c.bf16 %v1597, %v1597
        %v1634 = vpack.c.bf16 %v1598, %v1598
        %v1635 = vpack.c.bf16 %v1599, %v1599
        %v1636 = vpack.c.bf16 %v1600, %v1600
        %v1637 = vpack.c.bf16 %v1601, %v1601
        %v1638 = vpack.c.bf16 %v1602, %v1602
        %v1639 = vpack.c.bf16 %v1603, %v1603
        %v1640 = vpack.c.bf16 %v1604, %v1604
        %v1641 = vpack.c.bf16 %v1605, %v1605
        %v1642 = vpack.c.bf16 %v1606, %v1606
        %v1643 = vpack.c.bf16 %v1607, %v1607
        %v1644 = vpack.c.bf16 %v1608, %v1608
        %v1645 = vpack.c.bf16 %v1609, %v1609
        %v1646 = vpack.c.bf16 %v1610, %v1610
        %v1647 = vpack.c.bf16 %v1611, %v1611
        %v1648 = vpack.c.bf16 %v1612, %v1612
        %v1649 = vpack.c.bf16 %v1613, %v1613
        %v1650 = vpack.c.bf16 %v1614, %v1614
        %v1651 = vpack.c.bf16 %v1615, %v1615
        %vm1688 = vcmask 1046528
        %v1689 = vrot.slane %v1580, 1
        %v1690 = vrot.slane %v1581, 1
        %v1691 = vsel %vm1688, %v1689, %v1690
        %v1692 = vrot.slane %v1582, 1
        %v1693 = vsel %vm1688, %v1690, %v1692
        %v1694 = vrot.slane %v1583, 1
        %v1695 = vsel %vm1688, %v1692, %v1694
        %v1696 = vrot.slane %v1584, 1
        %v1697 = vsel %vm1688, %v1694, %v1696
        %v1698 = vrot.slane %v1585, 1
        %v1699 = vsel %vm1688, %v1696, %v1698
        %v1700 = vrot.slane %v1586, 1
        %v1701 = vsel %vm1688, %v1698, %v1700
        %v1702 = vrot.slane %v1587, 1
        %v1703 = vsel %vm1688, %v1700, %v1702
        %v1704 = vrot.slane %v1588, 1
        %v1705 = vsel %vm1688, %v1702, %v1704
        %v1706 = vrot.slane %v1589, 1
        %v1707 = vsel %vm1688, %v1704, %v1706
        %v1708 = vrot.slane %v1590, 1
        %v1709 = vsel %vm1688, %v1706, %v1708
        %v1710 = vrot.slane %v1591, 1
        %v1711 = vsel %vm1688, %v1708, %v1710
        %v1712 = vrot.slane %v1592, 1
        %v1713 = vsel %vm1688, %v1710, %v1712
        %v1714 = vrot.slane %v1593, 1
        %v1715 = vsel %vm1688, %v1712, %v1714
        %v1716 = vrot.slane %v1594, 1
        %v1717 = vsel %vm1688, %v1714, %v1716
        %v1718 = vrot.slane %v1595, 1
        %v1719 = vsel %vm1688, %v1716, %v1718
        %v1720 = vrot.slane %v1596, 1
        %v1721 = vsel %vm1688, %v1718, %v1720
        %v1722 = vrot.slane %v1597, 1
        %v1723 = vsel %vm1688, %v1720, %v1722
        %v1724 = vrot.slane %v1598, 1
        %v1725 = vsel %vm1688, %v1722, %v1724
        %v1726 = vrot.slane %v1599, 1
        %v1727 = vsel %vm1688, %v1724, %v1726
        %v1728 = vrot.slane %v1600, 1
        %v1729 = vsel %vm1688, %v1726, %v1728
        %v1730 = vrot.slane %v1601, 1
        %v1731 = vsel %vm1688, %v1728, %v1730
        %v1732 = vrot.slane %v1602, 1
        %v1733 = vsel %vm1688, %v1730, %v1732
        %v1734 = vrot.slane %v1603, 1
        %v1735 = vsel %vm1688, %v1732, %v1734
        %v1736 = vrot.slane %v1604, 1
        %v1737 = vsel %vm1688, %v1734, %v1736
        %v1738 = vrot.slane %v1605, 1
        %v1739 = vsel %vm1688, %v1736, %v1738
        %v1740 = vrot.slane %v1606, 1
        %v1741 = vsel %vm1688, %v1738, %v1740
        %v1742 = vrot.slane %v1607, 1
        %v1743 = vsel %vm1688, %v1740, %v1742
        %v1744 = vrot.slane %v1608, 1
        %v1745 = vsel %vm1688, %v1742, %v1744
        %v1746 = vrot.slane %v1609, 1
        %v1747 = vsel %vm1688, %v1744, %v1746
        %v1748 = vrot.slane %v1610, 1
        %v1749 = vsel %vm1688, %v1746, %v1748
        %v1750 = vrot.slane %v1611, 1
        %v1751 = vsel %vm1688, %v1748, %v1750
        %v1752 = vrot.slane %v1612, 1
        %v1753 = vsel %vm1688, %v1750, %v1752
        %v1754 = vrot.slane %v1613, 1
        %v1755 = vsel %vm1688, %v1752, %v1754
        %v1756 = vrot.slane %v1614, 1
        %v1757 = vsel %vm1688, %v1754, %v1756
        %v1758 = vrot.slane %v1615, 1
        %v1759 = vsel %vm1688, %v1756, %v1758
        %v1797 = vsel %vm1688, %v1758, %v1689
        %v1798 = vpack.c.bf16 %v1691, %v1691
        %v1799 = vpack.c.bf16 %v1693, %v1693
        %v1800 = vpack.c.bf16 %v1695, %v1695
        %v1801 = vpack.c.bf16 %v1697, %v1697
        %v1802 = vpack.c.bf16 %v1699, %v1699
        %v1803 = vpack.c.bf16 %v1701, %v1701
        %v1804 = vpack.c.bf16 %v1703, %v1703
        %v1805 = vpack.c.bf16 %v1705, %v1705
        %v1806 = vpack.c.bf16 %v1707, %v1707
        %v1807 = vpack.c.bf16 %v1709, %v1709
        %v1808 = vpack.c.bf16 %v1711, %v1711
        %v1809 = vpack.c.bf16 %v1713, %v1713
        %v1810 = vpack.c.bf16 %v1715, %v1715
        %v1811 = vpack.c.bf16 %v1717, %v1717
        %v1812 = vpack.c.bf16 %v1719, %v1719
        %v1813 = vpack.c.bf16 %v1721, %v1721
        %v1814 = vpack.c.bf16 %v1723, %v1723
        %v1815 = vpack.c.bf16 %v1725, %v1725
        %v1816 = vpack.c.bf16 %v1727, %v1727
        %v1817 = vpack.c.bf16 %v1729, %v1729
        %v1818 = vpack.c.bf16 %v1731, %v1731
        %v1819 = vpack.c.bf16 %v1733, %v1733
        %v1820 = vpack.c.bf16 %v1735, %v1735
        %v1821 = vpack.c.bf16 %v1737, %v1737
        %v1822 = vpack.c.bf16 %v1739, %v1739
        %v1823 = vpack.c.bf16 %v1741, %v1741
        %v1824 = vpack.c.bf16 %v1743, %v1743
        %v1825 = vpack.c.bf16 %v1745, %v1745
        %v1826 = vpack.c.bf16 %v1747, %v1747
        %v1827 = vpack.c.bf16 %v1749, %v1749
        %v1828 = vpack.c.bf16 %v1751, %v1751
        %v1829 = vpack.c.bf16 %v1753, %v1753
        %v1830 = vpack.c.bf16 %v1755, %v1755
        %v1831 = vpack.c.bf16 %v1757, %v1757
        %v1832 = vpack.c.bf16 %v1759, %v1759
        %v1833 = vpack.c.bf16 %v1797, %v1797
        %v1834 = vrot.slane %v1580, 2
        %v1835 = vrot.slane %v1581, 2
        %v1836 = vsel %vm786, %v1834, %v1835
        %v1837 = vrot.slane %v1582, 2
        %v1838 = vsel %vm786, %v1835, %v1837
        %v1839 = vrot.slane %v1583, 2
        %v1840 = vsel %vm786, %v1837, %v1839
        %v1841 = vrot.slane %v1584, 2
        %v1842 = vsel %vm786, %v1839, %v1841
        %v1843 = vrot.slane %v1585, 2
        %v1844 = vsel %vm786, %v1841, %v1843
        %v1845 = vrot.slane %v1586, 2
        %v1846 = vsel %vm786, %v1843, %v1845
        %v1847 = vrot.slane %v1587, 2
        %v1848 = vsel %vm786, %v1845, %v1847
        %v1849 = vrot.slane %v1588, 2
        %v1850 = vsel %vm786, %v1847, %v1849
        %v1851 = vrot.slane %v1589, 2
        %v1852 = vsel %vm786, %v1849, %v1851
        %v1853 = vrot.slane %v1590, 2
        %v1854 = vsel %vm786, %v1851, %v1853
        %v1855 = vrot.slane %v1591, 2
        %v1856 = vsel %vm786, %v1853, %v1855
        %v1857 = vrot.slane %v1592, 2
        %v1858 = vsel %vm786, %v1855, %v1857
        %v1859 = vrot.slane %v1593, 2
        %v1860 = vsel %vm786, %v1857, %v1859
        %v1861 = vrot.slane %v1594, 2
        %v1862 = vsel %vm786, %v1859, %v1861
        %v1863 = vrot.slane %v1595, 2
        %v1864 = vsel %vm786, %v1861, %v1863
        %v1865 = vrot.slane %v1596, 2
        %v1866 = vsel %vm786, %v1863, %v1865
        %v1867 = vrot.slane %v1597, 2
        %v1868 = vsel %vm786, %v1865, %v1867
        %v1869 = vrot.slane %v1598, 2
        %v1870 = vsel %vm786, %v1867, %v1869
        %v1871 = vrot.slane %v1599, 2
        %v1872 = vsel %vm786, %v1869, %v1871
        %v1873 = vrot.slane %v1600, 2
        %v1874 = vsel %vm786, %v1871, %v1873
        %v1875 = vrot.slane %v1601, 2
        %v1876 = vsel %vm786, %v1873, %v1875
        %v1877 = vrot.slane %v1602, 2
        %v1878 = vsel %vm786, %v1875, %v1877
        %v1879 = vrot.slane %v1603, 2
        %v1880 = vsel %vm786, %v1877, %v1879
        %v1881 = vrot.slane %v1604, 2
        %v1882 = vsel %vm786, %v1879, %v1881
        %v1883 = vrot.slane %v1605, 2
        %v1884 = vsel %vm786, %v1881, %v1883
        %v1885 = vrot.slane %v1606, 2
        %v1886 = vsel %vm786, %v1883, %v1885
        %v1887 = vrot.slane %v1607, 2
        %v1888 = vsel %vm786, %v1885, %v1887
        %v1889 = vrot.slane %v1608, 2
        %v1890 = vsel %vm786, %v1887, %v1889
        %v1891 = vrot.slane %v1609, 2
        %v1892 = vsel %vm786, %v1889, %v1891
        %v1893 = vrot.slane %v1610, 2
        %v1894 = vsel %vm786, %v1891, %v1893
        %v1895 = vrot.slane %v1611, 2
        %v1896 = vsel %vm786, %v1893, %v1895
        %v1897 = vrot.slane %v1612, 2
        %v1898 = vsel %vm786, %v1895, %v1897
        %v1899 = vrot.slane %v1613, 2
        %v1900 = vsel %vm786, %v1897, %v1899
        %v1901 = vrot.slane %v1614, 2
        %v1902 = vsel %vm786, %v1899, %v1901
        %v1903 = vrot.slane %v1615, 2
        %v1904 = vsel %vm786, %v1901, %v1903
        %v1942 = vsel %vm786, %v1903, %v1834
        %v1943 = vpack.c.bf16 %v1836, %v1836
        %v1944 = vpack.c.bf16 %v1838, %v1838
        %v1945 = vpack.c.bf16 %v1840, %v1840
        %v1946 = vpack.c.bf16 %v1842, %v1842
        %v1947 = vpack.c.bf16 %v1844, %v1844
        %v1948 = vpack.c.bf16 %v1846, %v1846
        %v1949 = vpack.c.bf16 %v1848, %v1848
        %v1950 = vpack.c.bf16 %v1850, %v1850
        %v1951 = vpack.c.bf16 %v1852, %v1852
        %v1952 = vpack.c.bf16 %v1854, %v1854
        %v1953 = vpack.c.bf16 %v1856, %v1856
        %v1954 = vpack.c.bf16 %v1858, %v1858
        %v1955 = vpack.c.bf16 %v1860, %v1860
        %v1956 = vpack.c.bf16 %v1862, %v1862
        %v1957 = vpack.c.bf16 %v1864, %v1864
        %v1958 = vpack.c.bf16 %v1866, %v1866
        %v1959 = vpack.c.bf16 %v1868, %v1868
        %v1960 = vpack.c.bf16 %v1870, %v1870
        %v1961 = vpack.c.bf16 %v1872, %v1872
        %v1962 = vpack.c.bf16 %v1874, %v1874
        %v1963 = vpack.c.bf16 %v1876, %v1876
        %v1964 = vpack.c.bf16 %v1878, %v1878
        %v1965 = vpack.c.bf16 %v1880, %v1880
        %v1966 = vpack.c.bf16 %v1882, %v1882
        %v1967 = vpack.c.bf16 %v1884, %v1884
        %v1968 = vpack.c.bf16 %v1886, %v1886
        %v1969 = vpack.c.bf16 %v1888, %v1888
        %v1970 = vpack.c.bf16 %v1890, %v1890
        %v1971 = vpack.c.bf16 %v1892, %v1892
        %v1972 = vpack.c.bf16 %v1894, %v1894
        %v1973 = vpack.c.bf16 %v1896, %v1896
        %v1974 = vpack.c.bf16 %v1898, %v1898
        %v1975 = vpack.c.bf16 %v1900, %v1900
        %v1976 = vpack.c.bf16 %v1902, %v1902
        %v1977 = vpack.c.bf16 %v1904, %v1904
        %v1978 = vpack.c.bf16 %v1942, %v1942
        %v2015 = vunpack.c.l.b16 %v1616
        %v2016 = vunpack.c.l.b16 %v1617
        %v2017 = vunpack.c.l.b16 %v1618
        %v2018 = vunpack.c.l.b16 %v1619
        %v2019 = vunpack.c.l.b16 %v1620
        %v2020 = vunpack.c.l.b16 %v1621
        %v2021 = vunpack.c.l.b16 %v1622
        %v2022 = vunpack.c.l.b16 %v1623
        %v2023 = vunpack.c.l.b16 %v1624
        %v2024 = vunpack.c.l.b16 %v1625
        %v2025 = vunpack.c.l.b16 %v1626
        %v2026 = vunpack.c.l.b16 %v1627
        %v2027 = vunpack.c.l.b16 %v1628
        %v2028 = vunpack.c.l.b16 %v1629
        %v2029 = vunpack.c.l.b16 %v1630
        %v2030 = vunpack.c.l.b16 %v1631
        %v2031 = vunpack.c.l.b16 %v1632
        %v2032 = vunpack.c.l.b16 %v1633
        %v2033 = vunpack.c.l.b16 %v1634
        %v2034 = vunpack.c.l.b16 %v1635
        %v2035 = vunpack.c.l.b16 %v1636
        %v2036 = vunpack.c.l.b16 %v1637
        %v2037 = vunpack.c.l.b16 %v1638
        %v2038 = vunpack.c.l.b16 %v1639
        %v2039 = vunpack.c.l.b16 %v1640
        %v2040 = vunpack.c.l.b16 %v1641
        %v2041 = vunpack.c.l.b16 %v1642
        %v2042 = vunpack.c.l.b16 %v1643
        %v2043 = vunpack.c.l.b16 %v1644
        %v2044 = vunpack.c.l.b16 %v1645
        %v2045 = vunpack.c.l.b16 %v1646
        %v2046 = vunpack.c.l.b16 %v1647
        %v2047 = vunpack.c.l.b16 %v1648
        %v2048 = vunpack.c.l.b16 %v1649
        %v2049 = vunpack.c.l.b16 %v1650
        %v2050 = vunpack.c.l.b16 %v1651
        %v2051 = vpack.c.b16 %v2016, %v2015
        %v2052 = vpack.c.b16 %v2018, %v2017
        %v2053 = vpack.c.b16 %v2020, %v2019
        %v2054 = vpack.c.b16 %v2022, %v2021
        %v2055 = vpack.c.b16 %v2024, %v2023
        %v2056 = vpack.c.b16 %v2026, %v2025
        %v2057 = vpack.c.b16 %v2028, %v2027
        %v2058 = vpack.c.b16 %v2030, %v2029
        %v2059 = vpack.c.b16 %v2032, %v2031
        %v2060 = vpack.c.b16 %v2034, %v2033
        %v2061 = vpack.c.b16 %v2036, %v2035
        %v2062 = vpack.c.b16 %v2038, %v2037
        %v2063 = vpack.c.b16 %v2040, %v2039
        %v2064 = vpack.c.b16 %v2042, %v2041
        %v2065 = vpack.c.b16 %v2044, %v2043
        %v2066 = vpack.c.b16 %v2046, %v2045
        %v2067 = vpack.c.b16 %v2048, %v2047
        %v2068 = vpack.c.b16 %v2050, %v2049
        %v2123 = vunpack.c.l.b16 %v1798
        %v2124 = vunpack.c.l.b16 %v1799
        %v2125 = vunpack.c.l.b16 %v1800
        %v2126 = vunpack.c.l.b16 %v1801
        %v2127 = vunpack.c.l.b16 %v1802
        %v2128 = vunpack.c.l.b16 %v1803
        %v2129 = vunpack.c.l.b16 %v1804
        %v2130 = vunpack.c.l.b16 %v1805
        %v2131 = vunpack.c.l.b16 %v1806
        %v2132 = vunpack.c.l.b16 %v1807
        %v2133 = vunpack.c.l.b16 %v1808
        %v2134 = vunpack.c.l.b16 %v1809
        %v2135 = vunpack.c.l.b16 %v1810
        %v2136 = vunpack.c.l.b16 %v1811
        %v2137 = vunpack.c.l.b16 %v1812
        %v2138 = vunpack.c.l.b16 %v1813
        %v2139 = vunpack.c.l.b16 %v1814
        %v2140 = vunpack.c.l.b16 %v1815
        %v2141 = vunpack.c.l.b16 %v1816
        %v2142 = vunpack.c.l.b16 %v1817
        %v2143 = vunpack.c.l.b16 %v1818
        %v2144 = vunpack.c.l.b16 %v1819
        %v2145 = vunpack.c.l.b16 %v1820
        %v2146 = vunpack.c.l.b16 %v1821
        %v2147 = vunpack.c.l.b16 %v1822
        %v2148 = vunpack.c.l.b16 %v1823
        %v2149 = vunpack.c.l.b16 %v1824
        %v2150 = vunpack.c.l.b16 %v1825
        %v2151 = vunpack.c.l.b16 %v1826
        %v2152 = vunpack.c.l.b16 %v1827
        %v2153 = vunpack.c.l.b16 %v1828
        %v2154 = vunpack.c.l.b16 %v1829
        %v2155 = vunpack.c.l.b16 %v1830
        %v2156 = vunpack.c.l.b16 %v1831
        %v2157 = vunpack.c.l.b16 %v1832
        %v2158 = vunpack.c.l.b16 %v1833
        %v2159 = vpack.c.b16 %v2124, %v2123
        %v2160 = vpack.c.b16 %v2126, %v2125
        %v2161 = vpack.c.b16 %v2128, %v2127
        %v2162 = vpack.c.b16 %v2130, %v2129
        %v2163 = vpack.c.b16 %v2132, %v2131
        %v2164 = vpack.c.b16 %v2134, %v2133
        %v2165 = vpack.c.b16 %v2136, %v2135
        %v2166 = vpack.c.b16 %v2138, %v2137
        %v2167 = vpack.c.b16 %v2140, %v2139
        %v2168 = vpack.c.b16 %v2142, %v2141
        %v2169 = vpack.c.b16 %v2144, %v2143
        %v2170 = vpack.c.b16 %v2146, %v2145
        %v2171 = vpack.c.b16 %v2148, %v2147
        %v2172 = vpack.c.b16 %v2150, %v2149
        %v2173 = vpack.c.b16 %v2152, %v2151
        %v2174 = vpack.c.b16 %v2154, %v2153
        %v2175 = vpack.c.b16 %v2156, %v2155
        %v2176 = vpack.c.b16 %v2158, %v2157
        %v2231 = vunpack.c.l.b16 %v1943
        %v2232 = vunpack.c.l.b16 %v1944
        %v2233 = vunpack.c.l.b16 %v1945
        %v2234 = vunpack.c.l.b16 %v1946
        %v2235 = vunpack.c.l.b16 %v1947
        %v2236 = vunpack.c.l.b16 %v1948
        %v2237 = vunpack.c.l.b16 %v1949
        %v2238 = vunpack.c.l.b16 %v1950
        %v2239 = vunpack.c.l.b16 %v1951
        %v2240 = vunpack.c.l.b16 %v1952
        %v2241 = vunpack.c.l.b16 %v1953
        %v2242 = vunpack.c.l.b16 %v1954
        %v2243 = vunpack.c.l.b16 %v1955
        %v2244 = vunpack.c.l.b16 %v1956
        %v2245 = vunpack.c.l.b16 %v1957
        %v2246 = vunpack.c.l.b16 %v1958
        %v2247 = vunpack.c.l.b16 %v1959
        %v2248 = vunpack.c.l.b16 %v1960
        %v2249 = vunpack.c.l.b16 %v1961
        %v2250 = vunpack.c.l.b16 %v1962
        %v2251 = vunpack.c.l.b16 %v1963
        %v2252 = vunpack.c.l.b16 %v1964
        %v2253 = vunpack.c.l.b16 %v1965
        %v2254 = vunpack.c.l.b16 %v1966
        %v2255 = vunpack.c.l.b16 %v1967
        %v2256 = vunpack.c.l.b16 %v1968
        %v2257 = vunpack.c.l.b16 %v1969
        %v2258 = vunpack.c.l.b16 %v1970
        %v2259 = vunpack.c.l.b16 %v1971
        %v2260 = vunpack.c.l.b16 %v1972
        %v2261 = vunpack.c.l.b16 %v1973
        %v2262 = vunpack.c.l.b16 %v1974
        %v2263 = vunpack.c.l.b16 %v1975
        %v2264 = vunpack.c.l.b16 %v1976
        %v2265 = vunpack.c.l.b16 %v1977
        %v2266 = vunpack.c.l.b16 %v1978
        %v2267 = vpack.c.b16 %v2232, %v2231
        %v2268 = vpack.c.b16 %v2234, %v2233
        %v2269 = vpack.c.b16 %v2236, %v2235
        %v2270 = vpack.c.b16 %v2238, %v2237
        %v2271 = vpack.c.b16 %v2240, %v2239
        %v2272 = vpack.c.b16 %v2242, %v2241
        %v2273 = vpack.c.b16 %v2244, %v2243
        %v2274 = vpack.c.b16 %v2246, %v2245
        %v2275 = vpack.c.b16 %v2248, %v2247
        %v2276 = vpack.c.b16 %v2250, %v2249
        %v2277 = vpack.c.b16 %v2252, %v2251
        %v2278 = vpack.c.b16 %v2254, %v2253
        %v2279 = vpack.c.b16 %v2256, %v2255
        %v2280 = vpack.c.b16 %v2258, %v2257
        %v2281 = vpack.c.b16 %v2260, %v2259
        %v2282 = vpack.c.b16 %v2262, %v2261
        %v2283 = vpack.c.b16 %v2264, %v2263
        %v2284 = vpack.c.b16 %v2266, %v2265
        %v2303 = vld [vmem:[%s3] sm:$0xf]
        %v2304 = vld [vmem:[%s3 + $0x4] sm:$0xf]
        %v2305 = vld [vmem:[%s3 + $0x8] sm:$0xf]
        %v2306 = vld [vmem:[%s3 + $0xc] sm:$0xf]
        %v2307 = vld [vmem:[%s3 + $0x10] sm:$0xf]
        %v2308 = vld [vmem:[%s3 + $0x14] sm:$0xf]
        %v2309 = vld [vmem:[%s3 + $0x18] sm:$0xf]
        %v2310 = vld [vmem:[%s3 + $0x1c] sm:$0xf]
        %v2311 = vld [vmem:[%s3 + $0x20] sm:$0xf]
        %v2312 = vld [vmem:[%s3 + $0x24] sm:$0xf]
        %v2313 = vld [vmem:[%s3 + $0x28] sm:$0xf]
        %v2314 = vld [vmem:[%s3 + $0x2c] sm:$0xf]
        %v2315 = vld [vmem:[%s3 + $0x30] sm:$0xf]
        %v2316 = vld [vmem:[%s3 + $0x34] sm:$0xf]
        %v2317 = vld [vmem:[%s3 + $0x38] sm:$0xf]
        %v2318 = vld [vmem:[%s3 + $0x3c] sm:$0xf]
        %v2319 = vld [vmem:[%s3 + $0x40] sm:$0xf]
        %v2320 = vld [vmem:[%s3 + $0x44] sm:$0xf]
        %v2321 = vld [vmem:[%s3 + $0x48] sm:$0xf]
        %v2322 = vld [vmem:[%s3 + $0x4c] sm:$0xf]
        %v2323 = vld [vmem:[%s3 + $0x50] sm:$0xf]
        %v2324 = vld [vmem:[%s3 + $0x54] sm:$0xf]
        %v2325 = vld [vmem:[%s3 + $0x58] sm:$0xf]
        %v2326 = vld [vmem:[%s3 + $0x5c] sm:$0xf]
        %v2327 = vld [vmem:[%s3 + $0x60] sm:$0xf]
        %v2328 = vld [vmem:[%s3 + $0x64] sm:$0xf]
        %v2329 = vld [vmem:[%s3 + $0x68] sm:$0xf]
        %v2330 = vld [vmem:[%s3 + $0x6c] sm:$0xf]
        %v2331 = vld [vmem:[%s3 + $0x70] sm:$0xf]
        %v2332 = vld [vmem:[%s3 + $0x74] sm:$0xf]
        %v2333 = vld [vmem:[%s3 + $0x78] sm:$0xf]
        %v2334 = vld [vmem:[%s3 + $0x7c] sm:$0xf]
        %v2335 = vld [vmem:[%s3 + $0x80] sm:$0xf]
        %v2336 = vld [vmem:[%s3 + $0x84] sm:$0xf]
        %v2337 = vld [vmem:[%s3 + $0x88] sm:$0xf]
        %v2338 = vld [vmem:[%s3 + $0x8c] sm:$0xf]
        %v2339 = vld [vmem:[%s3 + $0x90] sm:$0xf]
        %v2340 = vld [vmem:[%s3 + $0x94] sm:$0xf]
        %v2341 = vld [vmem:[%s3 + $0x98] sm:$0xf]
        %v2342 = vld [vmem:[%s3 + $0x9c] sm:$0xf]
        %v2343 = vld [vmem:[%s3 + $0xa0] sm:$0xf]
        %v2344 = vld [vmem:[%s3 + $0xa4] sm:$0xf]
        %v2345 = vld [vmem:[%s3 + $0xa8] sm:$0xf]
        %v2346 = vld [vmem:[%s3 + $0xac] sm:$0xf]
        %v2347 = vld [vmem:[%s3 + $0xb0] sm:$0xf]
        %v2348 = vld [vmem:[%s3 + $0xb4] sm:$0xf]
        %v2349 = vld [vmem:[%s3 + $0xb8] sm:$0xf]
        %v2350 = vld [vmem:[%s3 + $0xbc] sm:$0xf]
        %s2351 = scalar_lea.vmem %s3, 192
        %v2352 = vld [vmem:[%s2351] sm:$0xf]
        %v2353 = vld [vmem:[%s2351 + $0x4] sm:$0xf]
        %v2354 = vld [vmem:[%s2351 + $0x8] sm:$0xf]
        %v2355 = vld [vmem:[%s2351 + $0xc] sm:$0xf]
        %v2356 = vld [vmem:[%s2351 + $0x10] sm:$0xf]
        %v2357 = vld [vmem:[%s2351 + $0x14] sm:$0xf]
        %v2358 = vld [vmem:[%s2351 + $0x18] sm:$0xf]
        %v2359 = vld [vmem:[%s2351 + $0x1c] sm:$0xf]
        %v2360 = vld [vmem:[%s2351 + $0x20] sm:$0xf]
        %v2361 = vld [vmem:[%s2351 + $0x24] sm:$0xf]
        %v2362 = vld [vmem:[%s2351 + $0x28] sm:$0xf]
        %v2363 = vld [vmem:[%s2351 + $0x2c] sm:$0xf]
        %v2364 = vld [vmem:[%s2351 + $0x30] sm:$0xf]
        %v2365 = vld [vmem:[%s2351 + $0x34] sm:$0xf]
        %v2366 = vld [vmem:[%s2351 + $0x38] sm:$0xf]
        %v2367 = vld [vmem:[%s2351 + $0x3c] sm:$0xf]
        %v2368 = vld [vmem:[%s2351 + $0x40] sm:$0xf]
        %v2369 = vld [vmem:[%s2351 + $0x44] sm:$0xf]
        %v2370 = vld [vmem:[%s2351 + $0x48] sm:$0xf]
        %v2371 = vld [vmem:[%s2351 + $0x4c] sm:$0xf]
        %v2372 = vld [vmem:[%s2351 + $0x50] sm:$0xf]
        %v2373 = vld [vmem:[%s2351 + $0x54] sm:$0xf]
        %v2374 = vld [vmem:[%s2351 + $0x58] sm:$0xf]
        %v2375 = vld [vmem:[%s2351 + $0x5c] sm:$0xf]
        %v2376 = vld [vmem:[%s2351 + $0x60] sm:$0xf]
        %v2377 = vld [vmem:[%s2351 + $0x64] sm:$0xf]
        %v2378 = vld [vmem:[%s2351 + $0x68] sm:$0xf]
        %v2379 = vld [vmem:[%s2351 + $0x6c] sm:$0xf]
        %v2380 = vld [vmem:[%s2351 + $0x70] sm:$0xf]
        %v2381 = vld [vmem:[%s2351 + $0x74] sm:$0xf]
        %v2382 = vld [vmem:[%s2351 + $0x78] sm:$0xf]
        %v2383 = vld [vmem:[%s2351 + $0x7c] sm:$0xf]
        %v2384 = vld [vmem:[%s2351 + $0x80] sm:$0xf]
        %v2385 = vld [vmem:[%s2351 + $0x84] sm:$0xf]
        %v2386 = vld [vmem:[%s2351 + $0x88] sm:$0xf]
        %v2387 = vld [vmem:[%s2351 + $0x8c] sm:$0xf]
        %v2388 = vld [vmem:[%s2351 + $0x90] sm:$0xf]
        %v2389 = vld [vmem:[%s2351 + $0x94] sm:$0xf]
        %v2390 = vld [vmem:[%s2351 + $0x98] sm:$0xf]
        %v2391 = vld [vmem:[%s2351 + $0x9c] sm:$0xf]
        %v2392 = vld [vmem:[%s2351 + $0xa0] sm:$0xf]
        %v2393 = vld [vmem:[%s2351 + $0xa4] sm:$0xf]
        %v2394 = vld [vmem:[%s2351 + $0xa8] sm:$0xf]
        %v2395 = vld [vmem:[%s2351 + $0xac] sm:$0xf]
        %v2396 = vld [vmem:[%s2351 + $0xb0] sm:$0xf]
        %v2397 = vld [vmem:[%s2351 + $0xb4] sm:$0xf]
        %v2398 = vld [vmem:[%s2351 + $0xb8] sm:$0xf]
        %v2399 = vld [vmem:[%s2351 + $0xbc] sm:$0xf]
        %v2448 = vunpack.c.l.b16 %v2352
        %v2449 = vunpack.c.l.b16 %v2353
        %v2450 = vunpack.c.l.b16 %v2354
        %v2451 = vunpack.c.l.b16 %v2355
        %v2452 = vunpack.c.l.b16 %v2356
        %v2453 = vunpack.c.l.b16 %v2357
        %v2454 = vunpack.c.l.b16 %v2358
        %v2455 = vunpack.c.l.b16 %v2359
        %v2456 = vunpack.c.l.b16 %v2360
        %v2457 = vunpack.c.l.b16 %v2361
        %v2458 = vunpack.c.l.b16 %v2362
        %v2459 = vunpack.c.l.b16 %v2363
        %v2460 = vunpack.c.l.b16 %v2364
        %v2461 = vunpack.c.l.b16 %v2365
        %v2462 = vunpack.c.l.b16 %v2366
        %v2463 = vunpack.c.l.b16 %v2367
        %v2464 = vunpack.c.l.b16 %v2368
        %v2465 = vunpack.c.l.b16 %v2369
        %v2466 = vunpack.c.l.b16 %v2370
        %v2467 = vunpack.c.l.b16 %v2371
        %v2468 = vunpack.c.l.b16 %v2372
        %v2469 = vunpack.c.l.b16 %v2373
        %v2470 = vunpack.c.l.b16 %v2374
        %v2471 = vunpack.c.l.b16 %v2375
        %v2472 = vunpack.c.l.b16 %v2376
        %v2473 = vunpack.c.l.b16 %v2377
        %v2474 = vunpack.c.l.b16 %v2378
        %v2475 = vunpack.c.l.b16 %v2379
        %v2476 = vunpack.c.l.b16 %v2380
        %v2477 = vunpack.c.l.b16 %v2381
        %v2478 = vunpack.c.l.b16 %v2382
        %v2479 = vunpack.c.l.b16 %v2383
        %v2480 = vunpack.c.l.b16 %v2384
        %v2481 = vunpack.c.l.b16 %v2385
        %v2482 = vunpack.c.l.b16 %v2386
        %v2483 = vunpack.c.l.b16 %v2387
        %v2484 = vunpack.c.l.b16 %v2388
        %v2485 = vunpack.c.l.b16 %v2389
        %v2486 = vunpack.c.l.b16 %v2390
        %v2487 = vunpack.c.l.b16 %v2391
        %v2488 = vunpack.c.l.b16 %v2392
        %v2489 = vunpack.c.l.b16 %v2393
        %v2490 = vunpack.c.l.b16 %v2394
        %v2491 = vunpack.c.l.b16 %v2395
        %v2492 = vunpack.c.l.b16 %v2396
        %v2493 = vunpack.c.l.b16 %v2397
        %v2494 = vunpack.c.l.b16 %v2398
        %v2495 = vunpack.c.l.b16 %v2399
        %v2496 = vpack.c.b16 %v2449, %v2448
        %v2497 = vpack.c.b16 %v2451, %v2450
        %v2498 = vpack.c.b16 %v2453, %v2452
        %v2499 = vpack.c.b16 %v2455, %v2454
        %v2500 = vpack.c.b16 %v2457, %v2456
        %v2501 = vpack.c.b16 %v2459, %v2458
        %v2502 = vpack.c.b16 %v2461, %v2460
        %v2503 = vpack.c.b16 %v2463, %v2462
        %v2504 = vpack.c.b16 %v2465, %v2464
        %v2505 = vpack.c.b16 %v2467, %v2466
        %v2506 = vpack.c.b16 %v2469, %v2468
        %v2507 = vpack.c.b16 %v2471, %v2470
        %v2508 = vpack.c.b16 %v2473, %v2472
        %v2509 = vpack.c.b16 %v2475, %v2474
        %v2510 = vpack.c.b16 %v2477, %v2476
        %v2511 = vpack.c.b16 %v2479, %v2478
        %v2512 = vpack.c.b16 %v2481, %v2480
        %v2513 = vpack.c.b16 %v2483, %v2482
        %v2514 = vpack.c.b16 %v2485, %v2484
        %v2515 = vpack.c.b16 %v2487, %v2486
        %v2516 = vpack.c.b16 %v2489, %v2488
        %v2517 = vpack.c.b16 %v2491, %v2490
        %v2518 = vpack.c.b16 %v2493, %v2492
        %v2519 = vpack.c.b16 %v2495, %v2494
        %2544 = vmatpush.bf16.msra.mxu0 %v2503
        %2545 = vmatpush.bf16.msra.mxu0 %v2502
        %2546 = vmatpush.bf16.msra.mxu0 %v2501
        %2547 = vmatpush.bf16.msra.mxu0 %v2500
        %2548 = vmatpush.bf16.msra.mxu0 %v2499
        %2549 = vmatpush.bf16.msra.mxu0 %v2498
        %2550 = vmatpush.bf16.msra.mxu0 %v2497
        %2551 = vmatpush.bf16.msra.mxu0 %v2496
        %2552 = vmatmul.bf16.gmra.mxu0 %v2051
        %v2553 = vpop.f32.mrf.mxu0
        %v2554 = vadd.f32 0.0, %v2553
        %v2555 = vpop.f32.mrf.mxu0
        %v2556 = vadd.f32 0.0, %v2555
        %2557 = vmatmul.bf16.gmra.mxu0 %v2052
        %v2558 = vpop.f32.mrf.mxu0
        %v2559 = vadd.f32 0.0, %v2558
        %v2560 = vpop.f32.mrf.mxu0
        %v2561 = vadd.f32 0.0, %v2560
        %2562 = vmatmul.bf16.gmra.mxu0 %v2053
        %v2563 = vpop.f32.mrf.mxu0
        %v2564 = vadd.f32 0.0, %v2563
        %v2565 = vpop.f32.mrf.mxu0
        %v2566 = vadd.f32 0.0, %v2565
        %2567 = vmatmul.bf16.gmra.mxu0 %v2054
        %v2568 = vpop.f32.mrf.mxu0
        %v2569 = vadd.f32 0.0, %v2568
        %v2570 = vpop.f32.mrf.mxu0
        %v2571 = vadd.f32 0.0, %v2570
        %2572 = vmatmul.bf16.gmra.mxu0 %v2055
        %v2573 = vpop.f32.mrf.mxu0
        %v2574 = vadd.f32 0.0, %v2573
        %v2575 = vpop.f32.mrf.mxu0
        %v2576 = vadd.f32 0.0, %v2575
        %2577 = vmatmul.bf16.gmra.mxu0 %v2056
        %v2578 = vpop.f32.mrf.mxu0
        %v2579 = vadd.f32 0.0, %v2578
        %v2580 = vpop.f32.mrf.mxu0
        %v2581 = vadd.f32 0.0, %v2580
        %2582 = vmatmul.bf16.gmra.mxu0 %v2057
        %v2583 = vpop.f32.mrf.mxu0
        %v2584 = vadd.f32 0.0, %v2583
        %v2585 = vpop.f32.mrf.mxu0
        %v2586 = vadd.f32 0.0, %v2585
        %2587 = vmatmul.bf16.gmra.mxu0 %v2058
        %v2588 = vpop.f32.mrf.mxu0
        %v2589 = vadd.f32 0.0, %v2588
        %v2590 = vpop.f32.mrf.mxu0
        %v2591 = vadd.f32 0.0, %v2590
        %2592 = vmatmul.bf16.gmra.mxu0 %v2059
        %v2593 = vpop.f32.mrf.mxu0
        %v2594 = vadd.f32 0.0, %v2593
        %v2595 = vpop.f32.mrf.mxu0
        %v2596 = vadd.f32 0.0, %v2595
        %2597 = vmatmul.bf16.gmra.mxu0 %v2060
        %v2598 = vpop.f32.mrf.mxu0
        %v2599 = vadd.f32 0.0, %v2598
        %v2600 = vpop.f32.mrf.mxu0
        %v2601 = vadd.f32 0.0, %v2600
        %2602 = vmatmul.bf16.gmra.mxu0 %v2061
        %v2603 = vpop.f32.mrf.mxu0
        %v2604 = vadd.f32 0.0, %v2603
        %v2605 = vpop.f32.mrf.mxu0
        %v2606 = vadd.f32 0.0, %v2605
        %2607 = vmatmul.bf16.gmra.mxu0 %v2062
        %v2608 = vpop.f32.mrf.mxu0
        %v2609 = vadd.f32 0.0, %v2608
        %v2610 = vpop.f32.mrf.mxu0
        %v2611 = vadd.f32 0.0, %v2610
        %2612 = vmatmul.bf16.gmra.mxu0 %v2063
        %v2613 = vpop.f32.mrf.mxu0
        %v2614 = vadd.f32 0.0, %v2613
        %v2615 = vpop.f32.mrf.mxu0
        %v2616 = vadd.f32 0.0, %v2615
        %2617 = vmatmul.bf16.gmra.mxu0 %v2064
        %v2618 = vpop.f32.mrf.mxu0
        %v2619 = vadd.f32 0.0, %v2618
        %v2620 = vpop.f32.mrf.mxu0
        %v2621 = vadd.f32 0.0, %v2620
        %2622 = vmatmul.bf16.gmra.mxu0 %v2065
        %v2623 = vpop.f32.mrf.mxu0
        %v2624 = vadd.f32 0.0, %v2623
        %v2625 = vpop.f32.mrf.mxu0
        %v2626 = vadd.f32 0.0, %v2625
        %2627 = vmatmul.bf16.gmra.mxu0 %v2066
        %v2628 = vpop.f32.mrf.mxu0
        %v2629 = vadd.f32 0.0, %v2628
        %v2630 = vpop.f32.mrf.mxu0
        %v2631 = vadd.f32 0.0, %v2630
        %2632 = vmatmul.bf16.gmra.mxu0 %v2067
        %v2633 = vpop.f32.mrf.mxu0
        %v2634 = vadd.f32 0.0, %v2633
        %v2635 = vpop.f32.mrf.mxu0
        %v2636 = vadd.f32 0.0, %v2635
        %2637 = vmatmul.bf16.gmra.mxu0 %v2068
        %v2638 = vpop.f32.mrf.mxu0
        %v2639 = vadd.f32 0.0, %v2638
        %v2640 = vpop.f32.mrf.mxu0
        %v2641 = vadd.f32 0.0, %v2640
        %2642 = vdwg.mxu0
        %2643 = vmatpush.bf16.msra.mxu0 %v2511
        %2644 = vmatpush.bf16.msra.mxu0 %v2510
        %2645 = vmatpush.bf16.msra.mxu0 %v2509
        %2646 = vmatpush.bf16.msra.mxu0 %v2508
        %2647 = vmatpush.bf16.msra.mxu0 %v2507
        %2648 = vmatpush.bf16.msra.mxu0 %v2506
        %2649 = vmatpush.bf16.msra.mxu0 %v2505
        %2650 = vmatpush.bf16.msra.mxu0 %v2504
        %2651 = vmatmul.bf16.gmra.mxu0 %v2159
        %v2652 = vpop.f32.mrf.mxu0
        %v2653 = vadd.f32 %v2554, %v2652
        %v2654 = vpop.f32.mrf.mxu0
        %v2655 = vadd.f32 %v2556, %v2654
        %2656 = vmatmul.bf16.gmra.mxu0 %v2160
        %v2657 = vpop.f32.mrf.mxu0
        %v2658 = vadd.f32 %v2559, %v2657
        %v2659 = vpop.f32.mrf.mxu0
        %v2660 = vadd.f32 %v2561, %v2659
        %2661 = vmatmul.bf16.gmra.mxu0 %v2161
        %v2662 = vpop.f32.mrf.mxu0
        %v2663 = vadd.f32 %v2564, %v2662
        %v2664 = vpop.f32.mrf.mxu0
        %v2665 = vadd.f32 %v2566, %v2664
        %2666 = vmatmul.bf16.gmra.mxu0 %v2162
        %v2667 = vpop.f32.mrf.mxu0
        %v2668 = vadd.f32 %v2569, %v2667
        %v2669 = vpop.f32.mrf.mxu0
        %v2670 = vadd.f32 %v2571, %v2669
        %2671 = vmatmul.bf16.gmra.mxu0 %v2163
        %v2672 = vpop.f32.mrf.mxu0
        %v2673 = vadd.f32 %v2574, %v2672
        %v2674 = vpop.f32.mrf.mxu0
        %v2675 = vadd.f32 %v2576, %v2674
        %2676 = vmatmul.bf16.gmra.mxu0 %v2164
        %v2677 = vpop.f32.mrf.mxu0
        %v2678 = vadd.f32 %v2579, %v2677
        %v2679 = vpop.f32.mrf.mxu0
        %v2680 = vadd.f32 %v2581, %v2679
        %2681 = vmatmul.bf16.gmra.mxu0 %v2165
        %v2682 = vpop.f32.mrf.mxu0
        %v2683 = vadd.f32 %v2584, %v2682
        %v2684 = vpop.f32.mrf.mxu0
        %v2685 = vadd.f32 %v2586, %v2684
        %2686 = vmatmul.bf16.gmra.mxu0 %v2166
        %v2687 = vpop.f32.mrf.mxu0
        %v2688 = vadd.f32 %v2589, %v2687
        %v2689 = vpop.f32.mrf.mxu0
        %v2690 = vadd.f32 %v2591, %v2689
        %2691 = vmatmul.bf16.gmra.mxu0 %v2167
        %v2692 = vpop.f32.mrf.mxu0
        %v2693 = vadd.f32 %v2594, %v2692
        %v2694 = vpop.f32.mrf.mxu0
        %v2695 = vadd.f32 %v2596, %v2694
        %2696 = vmatmul.bf16.gmra.mxu0 %v2168
        %v2697 = vpop.f32.mrf.mxu0
        %v2698 = vadd.f32 %v2599, %v2697
        %v2699 = vpop.f32.mrf.mxu0
        %v2700 = vadd.f32 %v2601, %v2699
        %2701 = vmatmul.bf16.gmra.mxu0 %v2169
        %v2702 = vpop.f32.mrf.mxu0
        %v2703 = vadd.f32 %v2604, %v2702
        %v2704 = vpop.f32.mrf.mxu0
        %v2705 = vadd.f32 %v2606, %v2704
        %2706 = vmatmul.bf16.gmra.mxu0 %v2170
        %v2707 = vpop.f32.mrf.mxu0
        %v2708 = vadd.f32 %v2609, %v2707
        %v2709 = vpop.f32.mrf.mxu0
        %v2710 = vadd.f32 %v2611, %v2709
        %2711 = vmatmul.bf16.gmra.mxu0 %v2171
        %v2712 = vpop.f32.mrf.mxu0
        %v2713 = vadd.f32 %v2614, %v2712
        %v2714 = vpop.f32.mrf.mxu0
        %v2715 = vadd.f32 %v2616, %v2714
        %2716 = vmatmul.bf16.gmra.mxu0 %v2172
        %v2717 = vpop.f32.mrf.mxu0
        %v2718 = vadd.f32 %v2619, %v2717
        %v2719 = vpop.f32.mrf.mxu0
        %v2720 = vadd.f32 %v2621, %v2719
        %2721 = vmatmul.bf16.gmra.mxu0 %v2173
        %v2722 = vpop.f32.mrf.mxu0
        %v2723 = vadd.f32 %v2624, %v2722
        %v2724 = vpop.f32.mrf.mxu0
        %v2725 = vadd.f32 %v2626, %v2724
        %2726 = vmatmul.bf16.gmra.mxu0 %v2174
        %v2727 = vpop.f32.mrf.mxu0
        %v2728 = vadd.f32 %v2629, %v2727
        %v2729 = vpop.f32.mrf.mxu0
        %v2730 = vadd.f32 %v2631, %v2729
        %2731 = vmatmul.bf16.gmra.mxu0 %v2175
        %v2732 = vpop.f32.mrf.mxu0
        %v2733 = vadd.f32 %v2634, %v2732
        %v2734 = vpop.f32.mrf.mxu0
        %v2735 = vadd.f32 %v2636, %v2734
        %2736 = vmatmul.bf16.gmra.mxu0 %v2176
        %v2737 = vpop.f32.mrf.mxu0
        %v2738 = vadd.f32 %v2639, %v2737
        %v2739 = vpop.f32.mrf.mxu0
        %v2740 = vadd.f32 %v2641, %v2739
        %2741 = vdwg.mxu0
        %2742 = vmatpush.bf16.msra.mxu0 %v2519
        %2743 = vmatpush.bf16.msra.mxu0 %v2518
        %2744 = vmatpush.bf16.msra.mxu0 %v2517
        %2745 = vmatpush.bf16.msra.mxu0 %v2516
        %2746 = vmatpush.bf16.msra.mxu0 %v2515
        %2747 = vmatpush.bf16.msra.mxu0 %v2514
        %2748 = vmatpush.bf16.msra.mxu0 %v2513
        %2749 = vmatpush.bf16.msra.mxu0 %v2512
        %2750 = vmatmul.bf16.gmra.mxu0 %v2267
        %v2751 = vpop.f32.mrf.mxu0
        %v2752 = vadd.f32 %v2653, %v2751
        %v2753 = vpop.f32.mrf.mxu0
        %v2754 = vadd.f32 %v2655, %v2753
        %2755 = vmatmul.bf16.gmra.mxu0 %v2268
        %v2756 = vpop.f32.mrf.mxu0
        %v2757 = vadd.f32 %v2658, %v2756
        %v2758 = vpop.f32.mrf.mxu0
        %v2759 = vadd.f32 %v2660, %v2758
        %2760 = vmatmul.bf16.gmra.mxu0 %v2269
        %v2761 = vpop.f32.mrf.mxu0
        %v2762 = vadd.f32 %v2663, %v2761
        %v2763 = vpop.f32.mrf.mxu0
        %v2764 = vadd.f32 %v2665, %v2763
        %2765 = vmatmul.bf16.gmra.mxu0 %v2270
        %v2766 = vpop.f32.mrf.mxu0
        %v2767 = vadd.f32 %v2668, %v2766
        %v2768 = vpop.f32.mrf.mxu0
        %v2769 = vadd.f32 %v2670, %v2768
        %2770 = vmatmul.bf16.gmra.mxu0 %v2271
        %v2771 = vpop.f32.mrf.mxu0
        %v2772 = vadd.f32 %v2673, %v2771
        %v2773 = vpop.f32.mrf.mxu0
        %v2774 = vadd.f32 %v2675, %v2773
        %2775 = vmatmul.bf16.gmra.mxu0 %v2272
        %v2776 = vpop.f32.mrf.mxu0
        %v2777 = vadd.f32 %v2678, %v2776
        %v2778 = vpop.f32.mrf.mxu0
        %v2779 = vadd.f32 %v2680, %v2778
        %2780 = vmatmul.bf16.gmra.mxu0 %v2273
        %v2781 = vpop.f32.mrf.mxu0
        %v2782 = vadd.f32 %v2683, %v2781
        %v2783 = vpop.f32.mrf.mxu0
        %v2784 = vadd.f32 %v2685, %v2783
        %2785 = vmatmul.bf16.gmra.mxu0 %v2274
        %v2786 = vpop.f32.mrf.mxu0
        %v2787 = vadd.f32 %v2688, %v2786
        %v2788 = vpop.f32.mrf.mxu0
        %v2789 = vadd.f32 %v2690, %v2788
        %2790 = vmatmul.bf16.gmra.mxu0 %v2275
        %v2791 = vpop.f32.mrf.mxu0
        %v2792 = vadd.f32 %v2693, %v2791
        %v2793 = vpop.f32.mrf.mxu0
        %v2794 = vadd.f32 %v2695, %v2793
        %2795 = vmatmul.bf16.gmra.mxu0 %v2276
        %v2796 = vpop.f32.mrf.mxu0
        %v2797 = vadd.f32 %v2698, %v2796
        %v2798 = vpop.f32.mrf.mxu0
        %v2799 = vadd.f32 %v2700, %v2798
        %2800 = vmatmul.bf16.gmra.mxu0 %v2277
        %v2801 = vpop.f32.mrf.mxu0
        %v2802 = vadd.f32 %v2703, %v2801
        %v2803 = vpop.f32.mrf.mxu0
        %v2804 = vadd.f32 %v2705, %v2803
        %2805 = vmatmul.bf16.gmra.mxu0 %v2278
        %v2806 = vpop.f32.mrf.mxu0
        %v2807 = vadd.f32 %v2708, %v2806
        %v2808 = vpop.f32.mrf.mxu0
        %v2809 = vadd.f32 %v2710, %v2808
        %2810 = vmatmul.bf16.gmra.mxu0 %v2279
        %v2811 = vpop.f32.mrf.mxu0
        %v2812 = vadd.f32 %v2713, %v2811
        %v2813 = vpop.f32.mrf.mxu0
        %v2814 = vadd.f32 %v2715, %v2813
        %2815 = vmatmul.bf16.gmra.mxu0 %v2280
        %v2816 = vpop.f32.mrf.mxu0
        %v2817 = vadd.f32 %v2718, %v2816
        %v2818 = vpop.f32.mrf.mxu0
        %v2819 = vadd.f32 %v2720, %v2818
        %2820 = vmatmul.bf16.gmra.mxu0 %v2281
        %v2821 = vpop.f32.mrf.mxu0
        %v2822 = vadd.f32 %v2723, %v2821
        %v2823 = vpop.f32.mrf.mxu0
        %v2824 = vadd.f32 %v2725, %v2823
        %2825 = vmatmul.bf16.gmra.mxu0 %v2282
        %v2826 = vpop.f32.mrf.mxu0
        %v2827 = vadd.f32 %v2728, %v2826
        %v2828 = vpop.f32.mrf.mxu0
        %v2829 = vadd.f32 %v2730, %v2828
        %2830 = vmatmul.bf16.gmra.mxu0 %v2283
        %v2831 = vpop.f32.mrf.mxu0
        %v2832 = vadd.f32 %v2733, %v2831
        %v2833 = vpop.f32.mrf.mxu0
        %v2834 = vadd.f32 %v2735, %v2833
        %2835 = vmatmul.bf16.gmra.mxu0 %v2284
        %v2836 = vpop.f32.mrf.mxu0
        %v2837 = vadd.f32 %v2738, %v2836
        %v2838 = vpop.f32.mrf.mxu0
        %v2839 = vadd.f32 %v2740, %v2838
        %2840 = vdwg.mxu0
        %v2889 = vunpack.c.l.b16 %v2303
        %v2890 = vunpack.c.l.b16 %v2304
        %v2891 = vunpack.c.l.b16 %v2305
        %v2892 = vunpack.c.l.b16 %v2306
        %v2893 = vunpack.c.l.b16 %v2307
        %v2894 = vunpack.c.l.b16 %v2308
        %v2895 = vunpack.c.l.b16 %v2309
        %v2896 = vunpack.c.l.b16 %v2310
        %v2897 = vunpack.c.l.b16 %v2311
        %v2898 = vunpack.c.l.b16 %v2312
        %v2899 = vunpack.c.l.b16 %v2313
        %v2900 = vunpack.c.l.b16 %v2314
        %v2901 = vunpack.c.l.b16 %v2315
        %v2902 = vunpack.c.l.b16 %v2316
        %v2903 = vunpack.c.l.b16 %v2317
        %v2904 = vunpack.c.l.b16 %v2318
        %v2905 = vunpack.c.l.b16 %v2319
        %v2906 = vunpack.c.l.b16 %v2320
        %v2907 = vunpack.c.l.b16 %v2321
        %v2908 = vunpack.c.l.b16 %v2322
        %v2909 = vunpack.c.l.b16 %v2323
        %v2910 = vunpack.c.l.b16 %v2324
        %v2911 = vunpack.c.l.b16 %v2325
        %v2912 = vunpack.c.l.b16 %v2326
        %v2913 = vunpack.c.l.b16 %v2327
        %v2914 = vunpack.c.l.b16 %v2328
        %v2915 = vunpack.c.l.b16 %v2329
        %v2916 = vunpack.c.l.b16 %v2330
        %v2917 = vunpack.c.l.b16 %v2331
        %v2918 = vunpack.c.l.b16 %v2332
        %v2919 = vunpack.c.l.b16 %v2333
        %v2920 = vunpack.c.l.b16 %v2334
        %v2921 = vunpack.c.l.b16 %v2335
        %v2922 = vunpack.c.l.b16 %v2336
        %v2923 = vunpack.c.l.b16 %v2337
        %v2924 = vunpack.c.l.b16 %v2338
        %v2925 = vunpack.c.l.b16 %v2339
        %v2926 = vunpack.c.l.b16 %v2340
        %v2927 = vunpack.c.l.b16 %v2341
        %v2928 = vunpack.c.l.b16 %v2342
        %v2929 = vunpack.c.l.b16 %v2343
        %v2930 = vunpack.c.l.b16 %v2344
        %v2931 = vunpack.c.l.b16 %v2345
        %v2932 = vunpack.c.l.b16 %v2346
        %v2933 = vunpack.c.l.b16 %v2347
        %v2934 = vunpack.c.l.b16 %v2348
        %v2935 = vunpack.c.l.b16 %v2349
        %v2936 = vunpack.c.l.b16 %v2350
        %v2937 = vpack.c.b16 %v2890, %v2889
        %v2938 = vpack.c.b16 %v2892, %v2891
        %v2939 = vpack.c.b16 %v2894, %v2893
        %v2940 = vpack.c.b16 %v2896, %v2895
        %v2941 = vpack.c.b16 %v2898, %v2897
        %v2942 = vpack.c.b16 %v2900, %v2899
        %v2943 = vpack.c.b16 %v2902, %v2901
        %v2944 = vpack.c.b16 %v2904, %v2903
        %v2945 = vpack.c.b16 %v2906, %v2905
        %v2946 = vpack.c.b16 %v2908, %v2907
        %v2947 = vpack.c.b16 %v2910, %v2909
        %v2948 = vpack.c.b16 %v2912, %v2911
        %v2949 = vpack.c.b16 %v2914, %v2913
        %v2950 = vpack.c.b16 %v2916, %v2915
        %v2951 = vpack.c.b16 %v2918, %v2917
        %v2952 = vpack.c.b16 %v2920, %v2919
        %v2953 = vpack.c.b16 %v2922, %v2921
        %v2954 = vpack.c.b16 %v2924, %v2923
        %v2955 = vpack.c.b16 %v2926, %v2925
        %v2956 = vpack.c.b16 %v2928, %v2927
        %v2957 = vpack.c.b16 %v2930, %v2929
        %v2958 = vpack.c.b16 %v2932, %v2931
        %v2959 = vpack.c.b16 %v2934, %v2933
        %v2960 = vpack.c.b16 %v2936, %v2935
        %2985 = vmatpush.bf16.msra.mxu0 %v2944
        %2986 = vmatpush.bf16.msra.mxu0 %v2943
        %2987 = vmatpush.bf16.msra.mxu0 %v2942
        %2988 = vmatpush.bf16.msra.mxu0 %v2941
        %2989 = vmatpush.bf16.msra.mxu0 %v2940
        %2990 = vmatpush.bf16.msra.mxu0 %v2939
        %2991 = vmatpush.bf16.msra.mxu0 %v2938
        %2992 = vmatpush.bf16.msra.mxu0 %v2937
        %2993 = vmatmul.bf16.gmra.mxu0 %v2051
        %v2994 = vpop.f32.mrf.mxu0
        %v2995 = vadd.f32 %v2759, %v2994
        %v2996 = vpop.f32.mrf.mxu0
        %v2997 = vadd.f32 %v2762, %v2996
        %2998 = vmatmul.bf16.gmra.mxu0 %v2052
        %v2999 = vpop.f32.mrf.mxu0
        %v3000 = vadd.f32 %v2764, %v2999
        %v3001 = vpop.f32.mrf.mxu0
        %v3002 = vadd.f32 %v2767, %v3001
        %3003 = vmatmul.bf16.gmra.mxu0 %v2053
        %v3004 = vpop.f32.mrf.mxu0
        %v3005 = vadd.f32 %v2769, %v3004
        %v3006 = vpop.f32.mrf.mxu0
        %v3007 = vadd.f32 %v2772, %v3006
        %3008 = vmatmul.bf16.gmra.mxu0 %v2054
        %v3009 = vpop.f32.mrf.mxu0
        %v3010 = vadd.f32 %v2774, %v3009
        %v3011 = vpop.f32.mrf.mxu0
        %v3012 = vadd.f32 %v2777, %v3011
        %3013 = vmatmul.bf16.gmra.mxu0 %v2055
        %v3014 = vpop.f32.mrf.mxu0
        %v3015 = vadd.f32 %v2779, %v3014
        %v3016 = vpop.f32.mrf.mxu0
        %v3017 = vadd.f32 %v2782, %v3016
        %3018 = vmatmul.bf16.gmra.mxu0 %v2056
        %v3019 = vpop.f32.mrf.mxu0
        %v3020 = vadd.f32 %v2784, %v3019
        %v3021 = vpop.f32.mrf.mxu0
        %v3022 = vadd.f32 %v2787, %v3021
        %3023 = vmatmul.bf16.gmra.mxu0 %v2057
        %v3024 = vpop.f32.mrf.mxu0
        %v3025 = vadd.f32 %v2789, %v3024
        %v3026 = vpop.f32.mrf.mxu0
        %v3027 = vadd.f32 %v2792, %v3026
        %3028 = vmatmul.bf16.gmra.mxu0 %v2058
        %v3029 = vpop.f32.mrf.mxu0
        %v3030 = vadd.f32 %v2794, %v3029
        %v3031 = vpop.f32.mrf.mxu0
        %v3032 = vadd.f32 %v2797, %v3031
        %3033 = vmatmul.bf16.gmra.mxu0 %v2059
        %v3034 = vpop.f32.mrf.mxu0
        %v3035 = vadd.f32 %v2799, %v3034
        %v3036 = vpop.f32.mrf.mxu0
        %v3037 = vadd.f32 %v2802, %v3036
        %3038 = vmatmul.bf16.gmra.mxu0 %v2060
        %v3039 = vpop.f32.mrf.mxu0
        %v3040 = vadd.f32 %v2804, %v3039
        %v3041 = vpop.f32.mrf.mxu0
        %v3042 = vadd.f32 %v2807, %v3041
        %3043 = vmatmul.bf16.gmra.mxu0 %v2061
        %v3044 = vpop.f32.mrf.mxu0
        %v3045 = vadd.f32 %v2809, %v3044
        %v3046 = vpop.f32.mrf.mxu0
        %v3047 = vadd.f32 %v2812, %v3046
        %3048 = vmatmul.bf16.gmra.mxu0 %v2062
        %v3049 = vpop.f32.mrf.mxu0
        %v3050 = vadd.f32 %v2814, %v3049
        %v3051 = vpop.f32.mrf.mxu0
        %v3052 = vadd.f32 %v2817, %v3051
        %3053 = vmatmul.bf16.gmra.mxu0 %v2063
        %v3054 = vpop.f32.mrf.mxu0
        %v3055 = vadd.f32 %v2819, %v3054
        %v3056 = vpop.f32.mrf.mxu0
        %v3057 = vadd.f32 %v2822, %v3056
        %3058 = vmatmul.bf16.gmra.mxu0 %v2064
        %v3059 = vpop.f32.mrf.mxu0
        %v3060 = vadd.f32 %v2824, %v3059
        %v3061 = vpop.f32.mrf.mxu0
        %v3062 = vadd.f32 %v2827, %v3061
        %3063 = vmatmul.bf16.gmra.mxu0 %v2065
        %v3064 = vpop.f32.mrf.mxu0
        %v3065 = vadd.f32 %v2829, %v3064
        %v3066 = vpop.f32.mrf.mxu0
        %v3067 = vadd.f32 %v2832, %v3066
        %3068 = vmatmul.bf16.gmra.mxu0 %v2066
        %v3069 = vpop.f32.mrf.mxu0
        %v3070 = vadd.f32 %v2834, %v3069
        %v3071 = vpop.f32.mrf.mxu0
        %v3072 = vadd.f32 %v2837, %v3071
        %3073 = vmatmul.bf16.gmra.mxu0 %v2067
        %v3074 = vpop.f32.mrf.mxu0
        %v3075 = vadd.f32 %v2839, %v3074
        %v3076 = vpop.f32.mrf.mxu0
        %v3077 = vadd.f32 %v2752, %v3076
        %3078 = vmatmul.bf16.gmra.mxu0 %v2068
        %v3079 = vpop.f32.mrf.mxu0
        %v3080 = vadd.f32 %v2754, %v3079
        %v3081 = vpop.f32.mrf.mxu0
        %v3082 = vadd.f32 %v2757, %v3081
        %3083 = vdwg.mxu0
        %3084 = vmatpush.bf16.msra.mxu0 %v2952
        %3085 = vmatpush.bf16.msra.mxu0 %v2951
        %3086 = vmatpush.bf16.msra.mxu0 %v2950
        %3087 = vmatpush.bf16.msra.mxu0 %v2949
        %3088 = vmatpush.bf16.msra.mxu0 %v2948
        %3089 = vmatpush.bf16.msra.mxu0 %v2947
        %3090 = vmatpush.bf16.msra.mxu0 %v2946
        %3091 = vmatpush.bf16.msra.mxu0 %v2945
        %3092 = vmatmul.bf16.gmra.mxu0 %v2159
        %v3093 = vpop.f32.mrf.mxu0
        %v3094 = vadd.f32 %v2995, %v3093
        %v3095 = vpop.f32.mrf.mxu0
        %v3096 = vadd.f32 %v2997, %v3095
        %3097 = vmatmul.bf16.gmra.mxu0 %v2160
        %v3098 = vpop.f32.mrf.mxu0
        %v3099 = vadd.f32 %v3000, %v3098
        %v3100 = vpop.f32.mrf.mxu0
        %v3101 = vadd.f32 %v3002, %v3100
        %3102 = vmatmul.bf16.gmra.mxu0 %v2161
        %v3103 = vpop.f32.mrf.mxu0
        %v3104 = vadd.f32 %v3005, %v3103
        %v3105 = vpop.f32.mrf.mxu0
        %v3106 = vadd.f32 %v3007, %v3105
        %3107 = vmatmul.bf16.gmra.mxu0 %v2162
        %v3108 = vpop.f32.mrf.mxu0
        %v3109 = vadd.f32 %v3010, %v3108
        %v3110 = vpop.f32.mrf.mxu0
        %v3111 = vadd.f32 %v3012, %v3110
        %3112 = vmatmul.bf16.gmra.mxu0 %v2163
        %v3113 = vpop.f32.mrf.mxu0
        %v3114 = vadd.f32 %v3015, %v3113
        %v3115 = vpop.f32.mrf.mxu0
        %v3116 = vadd.f32 %v3017, %v3115
        %3117 = vmatmul.bf16.gmra.mxu0 %v2164
        %v3118 = vpop.f32.mrf.mxu0
        %v3119 = vadd.f32 %v3020, %v3118
        %v3120 = vpop.f32.mrf.mxu0
        %v3121 = vadd.f32 %v3022, %v3120
        %3122 = vmatmul.bf16.gmra.mxu0 %v2165
        %v3123 = vpop.f32.mrf.mxu0
        %v3124 = vadd.f32 %v3025, %v3123
        %v3125 = vpop.f32.mrf.mxu0
        %v3126 = vadd.f32 %v3027, %v3125
        %3127 = vmatmul.bf16.gmra.mxu0 %v2166
        %v3128 = vpop.f32.mrf.mxu0
        %v3129 = vadd.f32 %v3030, %v3128
        %v3130 = vpop.f32.mrf.mxu0
        %v3131 = vadd.f32 %v3032, %v3130
        %3132 = vmatmul.bf16.gmra.mxu0 %v2167
        %v3133 = vpop.f32.mrf.mxu0
        %v3134 = vadd.f32 %v3035, %v3133
        %v3135 = vpop.f32.mrf.mxu0
        %v3136 = vadd.f32 %v3037, %v3135
        %3137 = vmatmul.bf16.gmra.mxu0 %v2168
        %v3138 = vpop.f32.mrf.mxu0
        %v3139 = vadd.f32 %v3040, %v3138
        %v3140 = vpop.f32.mrf.mxu0
        %v3141 = vadd.f32 %v3042, %v3140
        %3142 = vmatmul.bf16.gmra.mxu0 %v2169
        %v3143 = vpop.f32.mrf.mxu0
        %v3144 = vadd.f32 %v3045, %v3143
        %v3145 = vpop.f32.mrf.mxu0
        %v3146 = vadd.f32 %v3047, %v3145
        %3147 = vmatmul.bf16.gmra.mxu0 %v2170
        %v3148 = vpop.f32.mrf.mxu0
        %v3149 = vadd.f32 %v3050, %v3148
        %v3150 = vpop.f32.mrf.mxu0
        %v3151 = vadd.f32 %v3052, %v3150
        %3152 = vmatmul.bf16.gmra.mxu0 %v2171
        %v3153 = vpop.f32.mrf.mxu0
        %v3154 = vadd.f32 %v3055, %v3153
        %v3155 = vpop.f32.mrf.mxu0
        %v3156 = vadd.f32 %v3057, %v3155
        %3157 = vmatmul.bf16.gmra.mxu0 %v2172
        %v3158 = vpop.f32.mrf.mxu0
        %v3159 = vadd.f32 %v3060, %v3158
        %v3160 = vpop.f32.mrf.mxu0
        %v3161 = vadd.f32 %v3062, %v3160
        %3162 = vmatmul.bf16.gmra.mxu0 %v2173
        %v3163 = vpop.f32.mrf.mxu0
        %v3164 = vadd.f32 %v3065, %v3163
        %v3165 = vpop.f32.mrf.mxu0
        %v3166 = vadd.f32 %v3067, %v3165
        %3167 = vmatmul.bf16.gmra.mxu0 %v2174
        %v3168 = vpop.f32.mrf.mxu0
        %v3169 = vadd.f32 %v3070, %v3168
        %v3170 = vpop.f32.mrf.mxu0
        %v3171 = vadd.f32 %v3072, %v3170
        %3172 = vmatmul.bf16.gmra.mxu0 %v2175
        %v3173 = vpop.f32.mrf.mxu0
        %v3174 = vadd.f32 %v3075, %v3173
        %v3175 = vpop.f32.mrf.mxu0
        %v3176 = vadd.f32 %v3077, %v3175
        %3177 = vmatmul.bf16.gmra.mxu0 %v2176
        %v3178 = vpop.f32.mrf.mxu0
        %v3179 = vadd.f32 %v3080, %v3178
        %v3180 = vpop.f32.mrf.mxu0
        %v3181 = vadd.f32 %v3082, %v3180
        %3182 = vdwg.mxu0
        %3183 = vmatpush.bf16.msra.mxu0 %v2960
        %3184 = vmatpush.bf16.msra.mxu0 %v2959
        %3185 = vmatpush.bf16.msra.mxu0 %v2958
        %3186 = vmatpush.bf16.msra.mxu0 %v2957
        %3187 = vmatpush.bf16.msra.mxu0 %v2956
        %3188 = vmatpush.bf16.msra.mxu0 %v2955
        %3189 = vmatpush.bf16.msra.mxu0 %v2954
        %3190 = vmatpush.bf16.msra.mxu0 %v2953
        %3191 = vmatmul.bf16.gmra.mxu0 %v2267
        %v3192 = vpop.f32.mrf.mxu0
        %v3193 = vadd.f32 %v3094, %v3192
        %v3194 = vpop.f32.mrf.mxu0
        %v3195 = vadd.f32 %v3096, %v3194
        %3196 = vmatmul.bf16.gmra.mxu0 %v2268
        %v3197 = vpop.f32.mrf.mxu0
        %v3198 = vadd.f32 %v3099, %v3197
        %v3199 = vpop.f32.mrf.mxu0
        %v3200 = vadd.f32 %v3101, %v3199
        %3201 = vmatmul.bf16.gmra.mxu0 %v2269
        %v3202 = vpop.f32.mrf.mxu0
        %v3203 = vadd.f32 %v3104, %v3202
        %v3204 = vpop.f32.mrf.mxu0
        %v3205 = vadd.f32 %v3106, %v3204
        %3206 = vmatmul.bf16.gmra.mxu0 %v2270
        %v3207 = vpop.f32.mrf.mxu0
        %v3208 = vadd.f32 %v3109, %v3207
        %v3209 = vpop.f32.mrf.mxu0
        %v3210 = vadd.f32 %v3111, %v3209
        %3211 = vmatmul.bf16.gmra.mxu0 %v2271
        %v3212 = vpop.f32.mrf.mxu0
        %v3213 = vadd.f32 %v3114, %v3212
        %v3214 = vpop.f32.mrf.mxu0
        %v3215 = vadd.f32 %v3116, %v3214
        %3216 = vmatmul.bf16.gmra.mxu0 %v2272
        %v3217 = vpop.f32.mrf.mxu0
        %v3218 = vadd.f32 %v3119, %v3217
        %v3219 = vpop.f32.mrf.mxu0
        %v3220 = vadd.f32 %v3121, %v3219
        %3221 = vmatmul.bf16.gmra.mxu0 %v2273
        %v3222 = vpop.f32.mrf.mxu0
        %v3223 = vadd.f32 %v3124, %v3222
        %v3224 = vpop.f32.mrf.mxu0
        %v3225 = vadd.f32 %v3126, %v3224
        %3226 = vmatmul.bf16.gmra.mxu0 %v2274
        %v3227 = vpop.f32.mrf.mxu0
        %v3228 = vadd.f32 %v3129, %v3227
        %v3229 = vpop.f32.mrf.mxu0
        %v3230 = vadd.f32 %v3131, %v3229
        %3231 = vmatmul.bf16.gmra.mxu0 %v2275
        %v3232 = vpop.f32.mrf.mxu0
        %v3233 = vadd.f32 %v3134, %v3232
        %v3234 = vpop.f32.mrf.mxu0
        %v3235 = vadd.f32 %v3136, %v3234
        %3236 = vmatmul.bf16.gmra.mxu0 %v2276
        %v3237 = vpop.f32.mrf.mxu0
        %v3238 = vadd.f32 %v3139, %v3237
        %v3239 = vpop.f32.mrf.mxu0
        %v3240 = vadd.f32 %v3141, %v3239
        %3241 = vmatmul.bf16.gmra.mxu0 %v2277
        %v3242 = vpop.f32.mrf.mxu0
        %v3243 = vadd.f32 %v3144, %v3242
        %v3244 = vpop.f32.mrf.mxu0
        %v3245 = vadd.f32 %v3146, %v3244
        %3246 = vmatmul.bf16.gmra.mxu0 %v2278
        %v3247 = vpop.f32.mrf.mxu0
        %v3248 = vadd.f32 %v3149, %v3247
        %v3249 = vpop.f32.mrf.mxu0
        %v3250 = vadd.f32 %v3151, %v3249
        %3251 = vmatmul.bf16.gmra.mxu0 %v2279
        %v3252 = vpop.f32.mrf.mxu0
        %v3253 = vadd.f32 %v3154, %v3252
        %v3254 = vpop.f32.mrf.mxu0
        %v3255 = vadd.f32 %v3156, %v3254
        %3256 = vmatmul.bf16.gmra.mxu0 %v2280
        %v3257 = vpop.f32.mrf.mxu0
        %v3258 = vadd.f32 %v3159, %v3257
        %v3259 = vpop.f32.mrf.mxu0
        %v3260 = vadd.f32 %v3161, %v3259
        %3261 = vmatmul.bf16.gmra.mxu0 %v2281
        %v3262 = vpop.f32.mrf.mxu0
        %v3263 = vadd.f32 %v3164, %v3262
        %v3264 = vpop.f32.mrf.mxu0
        %v3265 = vadd.f32 %v3166, %v3264
        %3266 = vmatmul.bf16.gmra.mxu0 %v2282
        %v3267 = vpop.f32.mrf.mxu0
        %v3268 = vadd.f32 %v3169, %v3267
        %v3269 = vpop.f32.mrf.mxu0
        %v3270 = vadd.f32 %v3171, %v3269
        %3271 = vmatmul.bf16.gmra.mxu0 %v2283
        %v3272 = vpop.f32.mrf.mxu0
        %v3273 = vadd.f32 %v3174, %v3272
        %v3274 = vpop.f32.mrf.mxu0
        %v3275 = vadd.f32 %v3176, %v3274
        %3276 = vmatmul.bf16.gmra.mxu0 %v2284
        %v3277 = vpop.f32.mrf.mxu0
        %v3278 = vadd.f32 %v3179, %v3277
        %v3279 = vpop.f32.mrf.mxu0
        %v3280 = vadd.f32 %v3181, %v3279
        %3281 = vdwg.mxu0
        %s3282 = scalar_lea.vmem %s3, 384
        %v3283 = vld [vmem:[%s3282] sm:$0xf]
        %v3284 = vld [vmem:[%s3282 + $0x4] sm:$0xf]
        %v3285 = vld [vmem:[%s3282 + $0x8] sm:$0xf]
        %v3286 = vld [vmem:[%s3282 + $0xc] sm:$0xf]
        %v3287 = vld [vmem:[%s3282 + $0x10] sm:$0xf]
        %v3288 = vld [vmem:[%s3282 + $0x14] sm:$0xf]
        %v3289 = vld [vmem:[%s3282 + $0x18] sm:$0xf]
        %v3290 = vld [vmem:[%s3282 + $0x1c] sm:$0xf]
        %v3291 = vld [vmem:[%s3282 + $0x20] sm:$0xf]
        %v3292 = vld [vmem:[%s3282 + $0x24] sm:$0xf]
        %v3293 = vld [vmem:[%s3282 + $0x28] sm:$0xf]
        %v3294 = vld [vmem:[%s3282 + $0x2c] sm:$0xf]
        %v3295 = vld [vmem:[%s3282 + $0x30] sm:$0xf]
        %v3296 = vld [vmem:[%s3282 + $0x34] sm:$0xf]
        %v3297 = vld [vmem:[%s3282 + $0x38] sm:$0xf]
        %v3298 = vld [vmem:[%s3282 + $0x3c] sm:$0xf]
        %v3299 = vld [vmem:[%s3282 + $0x40] sm:$0xf]
        %v3300 = vld [vmem:[%s3282 + $0x44] sm:$0xf]
        %v3301 = vld [vmem:[%s3282 + $0x48] sm:$0xf]
        %v3302 = vld [vmem:[%s3282 + $0x4c] sm:$0xf]
        %v3303 = vld [vmem:[%s3282 + $0x50] sm:$0xf]
        %v3304 = vld [vmem:[%s3282 + $0x54] sm:$0xf]
        %v3305 = vld [vmem:[%s3282 + $0x58] sm:$0xf]
        %v3306 = vld [vmem:[%s3282 + $0x5c] sm:$0xf]
        %v3307 = vld [vmem:[%s3282 + $0x60] sm:$0xf]
        %v3308 = vld [vmem:[%s3282 + $0x64] sm:$0xf]
        %v3309 = vld [vmem:[%s3282 + $0x68] sm:$0xf]
        %v3310 = vld [vmem:[%s3282 + $0x6c] sm:$0xf]
        %v3311 = vld [vmem:[%s3282 + $0x70] sm:$0xf]
        %v3312 = vld [vmem:[%s3282 + $0x74] sm:$0xf]
        %v3313 = vld [vmem:[%s3282 + $0x78] sm:$0xf]
        %v3314 = vld [vmem:[%s3282 + $0x7c] sm:$0xf]
        %v3315 = vld [vmem:[%s3282 + $0x80] sm:$0xf]
        %v3316 = vld [vmem:[%s3282 + $0x84] sm:$0xf]
        %v3317 = vld [vmem:[%s3282 + $0x88] sm:$0xf]
        %v3318 = vld [vmem:[%s3282 + $0x8c] sm:$0xf]
        %v3319 = vld [vmem:[%s3282 + $0x90] sm:$0xf]
        %v3320 = vld [vmem:[%s3282 + $0x94] sm:$0xf]
        %v3321 = vld [vmem:[%s3282 + $0x98] sm:$0xf]
        %v3322 = vld [vmem:[%s3282 + $0x9c] sm:$0xf]
        %v3323 = vld [vmem:[%s3282 + $0xa0] sm:$0xf]
        %v3324 = vld [vmem:[%s3282 + $0xa4] sm:$0xf]
        %v3325 = vld [vmem:[%s3282 + $0xa8] sm:$0xf]
        %v3326 = vld [vmem:[%s3282 + $0xac] sm:$0xf]
        %v3327 = vld [vmem:[%s3282 + $0xb0] sm:$0xf]
        %v3328 = vld [vmem:[%s3282 + $0xb4] sm:$0xf]
        %v3329 = vld [vmem:[%s3282 + $0xb8] sm:$0xf]
        %v3330 = vld [vmem:[%s3282 + $0xbc] sm:$0xf]
        %v3379 = vunpack.c.l.b16 %v3283
        %v3380 = vunpack.c.l.b16 %v3284
        %v3381 = vunpack.c.l.b16 %v3285
        %v3382 = vunpack.c.l.b16 %v3286
        %v3383 = vunpack.c.l.b16 %v3287
        %v3384 = vunpack.c.l.b16 %v3288
        %v3385 = vunpack.c.l.b16 %v3289
        %v3386 = vunpack.c.l.b16 %v3290
        %v3387 = vunpack.c.l.b16 %v3291
        %v3388 = vunpack.c.l.b16 %v3292
        %v3389 = vunpack.c.l.b16 %v3293
        %v3390 = vunpack.c.l.b16 %v3294
        %v3391 = vunpack.c.l.b16 %v3295
        %v3392 = vunpack.c.l.b16 %v3296
        %v3393 = vunpack.c.l.b16 %v3297
        %v3394 = vunpack.c.l.b16 %v3298
        %v3395 = vunpack.c.l.b16 %v3299
        %v3396 = vunpack.c.l.b16 %v3300
        %v3397 = vunpack.c.l.b16 %v3301
        %v3398 = vunpack.c.l.b16 %v3302
        %v3399 = vunpack.c.l.b16 %v3303
        %v3400 = vunpack.c.l.b16 %v3304
        %v3401 = vunpack.c.l.b16 %v3305
        %v3402 = vunpack.c.l.b16 %v3306
        %v3403 = vunpack.c.l.b16 %v3307
        %v3404 = vunpack.c.l.b16 %v3308
        %v3405 = vunpack.c.l.b16 %v3309
        %v3406 = vunpack.c.l.b16 %v3310
        %v3407 = vunpack.c.l.b16 %v3311
        %v3408 = vunpack.c.l.b16 %v3312
        %v3409 = vunpack.c.l.b16 %v3313
        %v3410 = vunpack.c.l.b16 %v3314
        %v3411 = vunpack.c.l.b16 %v3315
        %v3412 = vunpack.c.l.b16 %v3316
        %v3413 = vunpack.c.l.b16 %v3317
        %v3414 = vunpack.c.l.b16 %v3318
        %v3415 = vunpack.c.l.b16 %v3319
        %v3416 = vunpack.c.l.b16 %v3320
        %v3417 = vunpack.c.l.b16 %v3321
        %v3418 = vunpack.c.l.b16 %v3322
        %v3419 = vunpack.c.l.b16 %v3323
        %v3420 = vunpack.c.l.b16 %v3324
        %v3421 = vunpack.c.l.b16 %v3325
        %v3422 = vunpack.c.l.b16 %v3326
        %v3423 = vunpack.c.l.b16 %v3327
        %v3424 = vunpack.c.l.b16 %v3328
        %v3425 = vunpack.c.l.b16 %v3329
        %v3426 = vunpack.c.l.b16 %v3330
        %v3427 = vpack.c.b16 %v3380, %v3379
        %v3428 = vpack.c.b16 %v3382, %v3381
        %v3429 = vpack.c.b16 %v3384, %v3383
        %v3430 = vpack.c.b16 %v3386, %v3385
        %v3431 = vpack.c.b16 %v3388, %v3387
        %v3432 = vpack.c.b16 %v3390, %v3389
        %v3433 = vpack.c.b16 %v3392, %v3391
        %v3434 = vpack.c.b16 %v3394, %v3393
        %v3435 = vpack.c.b16 %v3396, %v3395
        %v3436 = vpack.c.b16 %v3398, %v3397
        %v3437 = vpack.c.b16 %v3400, %v3399
        %v3438 = vpack.c.b16 %v3402, %v3401
        %v3439 = vpack.c.b16 %v3404, %v3403
        %v3440 = vpack.c.b16 %v3406, %v3405
        %v3441 = vpack.c.b16 %v3408, %v3407
        %v3442 = vpack.c.b16 %v3410, %v3409
        %v3443 = vpack.c.b16 %v3412, %v3411
        %v3444 = vpack.c.b16 %v3414, %v3413
        %v3445 = vpack.c.b16 %v3416, %v3415
        %v3446 = vpack.c.b16 %v3418, %v3417
        %v3447 = vpack.c.b16 %v3420, %v3419
        %v3448 = vpack.c.b16 %v3422, %v3421
        %v3449 = vpack.c.b16 %v3424, %v3423
        %v3450 = vpack.c.b16 %v3426, %v3425
        %3475 = vmatpush.bf16.msra.mxu0 %v3434
        %3476 = vmatpush.bf16.msra.mxu0 %v3433
        %3477 = vmatpush.bf16.msra.mxu0 %v3432
        %3478 = vmatpush.bf16.msra.mxu0 %v3431
        %3479 = vmatpush.bf16.msra.mxu0 %v3430
        %3480 = vmatpush.bf16.msra.mxu0 %v3429
        %3481 = vmatpush.bf16.msra.mxu0 %v3428
        %3482 = vmatpush.bf16.msra.mxu0 %v3427
        %3483 = vmatmul.bf16.gmra.mxu0 %v2051
        %v3484 = vpop.f32.mrf.mxu0
        %v3485 = vadd.f32 0.0, %v3484
        %v3486 = vpop.f32.mrf.mxu0
        %v3487 = vadd.f32 0.0, %v3486
        %3488 = vmatmul.bf16.gmra.mxu0 %v2052
        %v3489 = vpop.f32.mrf.mxu0
        %v3490 = vadd.f32 0.0, %v3489
        %v3491 = vpop.f32.mrf.mxu0
        %v3492 = vadd.f32 0.0, %v3491
        %3493 = vmatmul.bf16.gmra.mxu0 %v2053
        %v3494 = vpop.f32.mrf.mxu0
        %v3495 = vadd.f32 0.0, %v3494
        %v3496 = vpop.f32.mrf.mxu0
        %v3497 = vadd.f32 0.0, %v3496
        %3498 = vmatmul.bf16.gmra.mxu0 %v2054
        %v3499 = vpop.f32.mrf.mxu0
        %v3500 = vadd.f32 0.0, %v3499
        %v3501 = vpop.f32.mrf.mxu0
        %v3502 = vadd.f32 0.0, %v3501
        %3503 = vmatmul.bf16.gmra.mxu0 %v2055
        %v3504 = vpop.f32.mrf.mxu0
        %v3505 = vadd.f32 0.0, %v3504
        %v3506 = vpop.f32.mrf.mxu0
        %v3507 = vadd.f32 0.0, %v3506
        %3508 = vmatmul.bf16.gmra.mxu0 %v2056
        %v3509 = vpop.f32.mrf.mxu0
        %v3510 = vadd.f32 0.0, %v3509
        %v3511 = vpop.f32.mrf.mxu0
        %v3512 = vadd.f32 0.0, %v3511
        %3513 = vmatmul.bf16.gmra.mxu0 %v2057
        %v3514 = vpop.f32.mrf.mxu0
        %v3515 = vadd.f32 0.0, %v3514
        %v3516 = vpop.f32.mrf.mxu0
        %v3517 = vadd.f32 0.0, %v3516
        %3518 = vmatmul.bf16.gmra.mxu0 %v2058
        %v3519 = vpop.f32.mrf.mxu0
        %v3520 = vadd.f32 0.0, %v3519
        %v3521 = vpop.f32.mrf.mxu0
        %v3522 = vadd.f32 0.0, %v3521
        %3523 = vmatmul.bf16.gmra.mxu0 %v2059
        %v3524 = vpop.f32.mrf.mxu0
        %v3525 = vadd.f32 0.0, %v3524
        %v3526 = vpop.f32.mrf.mxu0
        %v3527 = vadd.f32 0.0, %v3526
        %3528 = vmatmul.bf16.gmra.mxu0 %v2060
        %v3529 = vpop.f32.mrf.mxu0
        %v3530 = vadd.f32 0.0, %v3529
        %v3531 = vpop.f32.mrf.mxu0
        %v3532 = vadd.f32 0.0, %v3531
        %3533 = vmatmul.bf16.gmra.mxu0 %v2061
        %v3534 = vpop.f32.mrf.mxu0
        %v3535 = vadd.f32 0.0, %v3534
        %v3536 = vpop.f32.mrf.mxu0
        %v3537 = vadd.f32 0.0, %v3536
        %3538 = vmatmul.bf16.gmra.mxu0 %v2062
        %v3539 = vpop.f32.mrf.mxu0
        %v3540 = vadd.f32 0.0, %v3539
        %v3541 = vpop.f32.mrf.mxu0
        %v3542 = vadd.f32 0.0, %v3541
        %3543 = vmatmul.bf16.gmra.mxu0 %v2063
        %v3544 = vpop.f32.mrf.mxu0
        %v3545 = vadd.f32 0.0, %v3544
        %v3546 = vpop.f32.mrf.mxu0
        %v3547 = vadd.f32 0.0, %v3546
        %3548 = vmatmul.bf16.gmra.mxu0 %v2064
        %v3549 = vpop.f32.mrf.mxu0
        %v3550 = vadd.f32 0.0, %v3549
        %v3551 = vpop.f32.mrf.mxu0
        %v3552 = vadd.f32 0.0, %v3551
        %3553 = vmatmul.bf16.gmra.mxu0 %v2065
        %v3554 = vpop.f32.mrf.mxu0
        %v3555 = vadd.f32 0.0, %v3554
        %v3556 = vpop.f32.mrf.mxu0
        %v3557 = vadd.f32 0.0, %v3556
        %3558 = vmatmul.bf16.gmra.mxu0 %v2066
        %v3559 = vpop.f32.mrf.mxu0
        %v3560 = vadd.f32 0.0, %v3559
        %v3561 = vpop.f32.mrf.mxu0
        %v3562 = vadd.f32 0.0, %v3561
        %3563 = vmatmul.bf16.gmra.mxu0 %v2067
        %v3564 = vpop.f32.mrf.mxu0
        %v3565 = vadd.f32 0.0, %v3564
        %v3566 = vpop.f32.mrf.mxu0
        %v3567 = vadd.f32 0.0, %v3566
        %3568 = vmatmul.bf16.gmra.mxu0 %v2068
        %v3569 = vpop.f32.mrf.mxu0
        %v3570 = vadd.f32 0.0, %v3569
        %v3571 = vpop.f32.mrf.mxu0
        %v3572 = vadd.f32 0.0, %v3571
        %3573 = vdwg.mxu0
        %3574 = vmatpush.bf16.msra.mxu0 %v3442
        %3575 = vmatpush.bf16.msra.mxu0 %v3441
        %3576 = vmatpush.bf16.msra.mxu0 %v3440
        %3577 = vmatpush.bf16.msra.mxu0 %v3439
        %3578 = vmatpush.bf16.msra.mxu0 %v3438
        %3579 = vmatpush.bf16.msra.mxu0 %v3437
        %3580 = vmatpush.bf16.msra.mxu0 %v3436
        %3581 = vmatpush.bf16.msra.mxu0 %v3435
        %3582 = vmatmul.bf16.gmra.mxu0 %v2159
        %v3583 = vpop.f32.mrf.mxu0
        %v3584 = vadd.f32 %v3485, %v3583
        %v3585 = vpop.f32.mrf.mxu0
        %v3586 = vadd.f32 %v3487, %v3585
        %3587 = vmatmul.bf16.gmra.mxu0 %v2160
        %v3588 = vpop.f32.mrf.mxu0
        %v3589 = vadd.f32 %v3490, %v3588
        %v3590 = vpop.f32.mrf.mxu0
        %v3591 = vadd.f32 %v3492, %v3590
        %3592 = vmatmul.bf16.gmra.mxu0 %v2161
        %v3593 = vpop.f32.mrf.mxu0
        %v3594 = vadd.f32 %v3495, %v3593
        %v3595 = vpop.f32.mrf.mxu0
        %v3596 = vadd.f32 %v3497, %v3595
        %3597 = vmatmul.bf16.gmra.mxu0 %v2162
        %v3598 = vpop.f32.mrf.mxu0
        %v3599 = vadd.f32 %v3500, %v3598
        %v3600 = vpop.f32.mrf.mxu0
        %v3601 = vadd.f32 %v3502, %v3600
        %3602 = vmatmul.bf16.gmra.mxu0 %v2163
        %v3603 = vpop.f32.mrf.mxu0
        %v3604 = vadd.f32 %v3505, %v3603
        %v3605 = vpop.f32.mrf.mxu0
        %v3606 = vadd.f32 %v3507, %v3605
        %3607 = vmatmul.bf16.gmra.mxu0 %v2164
        %v3608 = vpop.f32.mrf.mxu0
        %v3609 = vadd.f32 %v3510, %v3608
        %v3610 = vpop.f32.mrf.mxu0
        %v3611 = vadd.f32 %v3512, %v3610
        %3612 = vmatmul.bf16.gmra.mxu0 %v2165
        %v3613 = vpop.f32.mrf.mxu0
        %v3614 = vadd.f32 %v3515, %v3613
        %v3615 = vpop.f32.mrf.mxu0
        %v3616 = vadd.f32 %v3517, %v3615
        %3617 = vmatmul.bf16.gmra.mxu0 %v2166
        %v3618 = vpop.f32.mrf.mxu0
        %v3619 = vadd.f32 %v3520, %v3618
        %v3620 = vpop.f32.mrf.mxu0
        %v3621 = vadd.f32 %v3522, %v3620
        %3622 = vmatmul.bf16.gmra.mxu0 %v2167
        %v3623 = vpop.f32.mrf.mxu0
        %v3624 = vadd.f32 %v3525, %v3623
        %v3625 = vpop.f32.mrf.mxu0
        %v3626 = vadd.f32 %v3527, %v3625
        %3627 = vmatmul.bf16.gmra.mxu0 %v2168
        %v3628 = vpop.f32.mrf.mxu0
        %v3629 = vadd.f32 %v3530, %v3628
        %v3630 = vpop.f32.mrf.mxu0
        %v3631 = vadd.f32 %v3532, %v3630
        %3632 = vmatmul.bf16.gmra.mxu0 %v2169
        %v3633 = vpop.f32.mrf.mxu0
        %v3634 = vadd.f32 %v3535, %v3633
        %v3635 = vpop.f32.mrf.mxu0
        %v3636 = vadd.f32 %v3537, %v3635
        %3637 = vmatmul.bf16.gmra.mxu0 %v2170
        %v3638 = vpop.f32.mrf.mxu0
        %v3639 = vadd.f32 %v3540, %v3638
        %v3640 = vpop.f32.mrf.mxu0
        %v3641 = vadd.f32 %v3542, %v3640
        %3642 = vmatmul.bf16.gmra.mxu0 %v2171
        %v3643 = vpop.f32.mrf.mxu0
        %v3644 = vadd.f32 %v3545, %v3643
        %v3645 = vpop.f32.mrf.mxu0
        %v3646 = vadd.f32 %v3547, %v3645
        %3647 = vmatmul.bf16.gmra.mxu0 %v2172
        %v3648 = vpop.f32.mrf.mxu0
        %v3649 = vadd.f32 %v3550, %v3648
        %v3650 = vpop.f32.mrf.mxu0
        %v3651 = vadd.f32 %v3552, %v3650
        %3652 = vmatmul.bf16.gmra.mxu0 %v2173
        %v3653 = vpop.f32.mrf.mxu0
        %v3654 = vadd.f32 %v3555, %v3653
        %v3655 = vpop.f32.mrf.mxu0
        %v3656 = vadd.f32 %v3557, %v3655
        %3657 = vmatmul.bf16.gmra.mxu0 %v2174
        %v3658 = vpop.f32.mrf.mxu0
        %v3659 = vadd.f32 %v3560, %v3658
        %v3660 = vpop.f32.mrf.mxu0
        %v3661 = vadd.f32 %v3562, %v3660
        %3662 = vmatmul.bf16.gmra.mxu0 %v2175
        %v3663 = vpop.f32.mrf.mxu0
        %v3664 = vadd.f32 %v3565, %v3663
        %v3665 = vpop.f32.mrf.mxu0
        %v3666 = vadd.f32 %v3567, %v3665
        %3667 = vmatmul.bf16.gmra.mxu0 %v2176
        %v3668 = vpop.f32.mrf.mxu0
        %v3669 = vadd.f32 %v3570, %v3668
        %v3670 = vpop.f32.mrf.mxu0
        %v3671 = vadd.f32 %v3572, %v3670
        %3672 = vdwg.mxu0
        %3673 = vmatpush.bf16.msra.mxu0 %v3450
        %3674 = vmatpush.bf16.msra.mxu0 %v3449
        %3675 = vmatpush.bf16.msra.mxu0 %v3448
        %3676 = vmatpush.bf16.msra.mxu0 %v3447
        %3677 = vmatpush.bf16.msra.mxu0 %v3446
        %3678 = vmatpush.bf16.msra.mxu0 %v3445
        %3679 = vmatpush.bf16.msra.mxu0 %v3444
        %3680 = vmatpush.bf16.msra.mxu0 %v3443
        %3681 = vmatmul.bf16.gmra.mxu0 %v2267
        %v3682 = vpop.f32.mrf.mxu0
        %v3683 = vadd.f32 %v3584, %v3682
        %v3684 = vpop.f32.mrf.mxu0
        %v3685 = vadd.f32 %v3586, %v3684
        %3686 = vmatmul.bf16.gmra.mxu0 %v2268
        %v3687 = vpop.f32.mrf.mxu0
        %v3688 = vadd.f32 %v3589, %v3687
        %v3689 = vpop.f32.mrf.mxu0
        %v3690 = vadd.f32 %v3591, %v3689
        %3691 = vmatmul.bf16.gmra.mxu0 %v2269
        %v3692 = vpop.f32.mrf.mxu0
        %v3693 = vadd.f32 %v3594, %v3692
        %v3694 = vpop.f32.mrf.mxu0
        %v3695 = vadd.f32 %v3596, %v3694
        %3696 = vmatmul.bf16.gmra.mxu0 %v2270
        %v3697 = vpop.f32.mrf.mxu0
        %v3698 = vadd.f32 %v3599, %v3697
        %v3699 = vpop.f32.mrf.mxu0
        %v3700 = vadd.f32 %v3601, %v3699
        %3701 = vmatmul.bf16.gmra.mxu0 %v2271
        %v3702 = vpop.f32.mrf.mxu0
        %v3703 = vadd.f32 %v3604, %v3702
        %v3704 = vpop.f32.mrf.mxu0
        %v3705 = vadd.f32 %v3606, %v3704
        %3706 = vmatmul.bf16.gmra.mxu0 %v2272
        %v3707 = vpop.f32.mrf.mxu0
        %v3708 = vadd.f32 %v3609, %v3707
        %v3709 = vpop.f32.mrf.mxu0
        %v3710 = vadd.f32 %v3611, %v3709
        %3711 = vmatmul.bf16.gmra.mxu0 %v2273
        %v3712 = vpop.f32.mrf.mxu0
        %v3713 = vadd.f32 %v3614, %v3712
        %v3714 = vpop.f32.mrf.mxu0
        %v3715 = vadd.f32 %v3616, %v3714
        %3716 = vmatmul.bf16.gmra.mxu0 %v2274
        %v3717 = vpop.f32.mrf.mxu0
        %v3718 = vadd.f32 %v3619, %v3717
        %v3719 = vpop.f32.mrf.mxu0
        %v3720 = vadd.f32 %v3621, %v3719
        %3721 = vmatmul.bf16.gmra.mxu0 %v2275
        %v3722 = vpop.f32.mrf.mxu0
        %v3723 = vadd.f32 %v3624, %v3722
        %v3724 = vpop.f32.mrf.mxu0
        %v3725 = vadd.f32 %v3626, %v3724
        %3726 = vmatmul.bf16.gmra.mxu0 %v2276
        %v3727 = vpop.f32.mrf.mxu0
        %v3728 = vadd.f32 %v3629, %v3727
        %v3729 = vpop.f32.mrf.mxu0
        %v3730 = vadd.f32 %v3631, %v3729
        %3731 = vmatmul.bf16.gmra.mxu0 %v2277
        %v3732 = vpop.f32.mrf.mxu0
        %v3733 = vadd.f32 %v3634, %v3732
        %v3734 = vpop.f32.mrf.mxu0
        %v3735 = vadd.f32 %v3636, %v3734
        %3736 = vmatmul.bf16.gmra.mxu0 %v2278
        %v3737 = vpop.f32.mrf.mxu0
        %v3738 = vadd.f32 %v3639, %v3737
        %v3739 = vpop.f32.mrf.mxu0
        %v3740 = vadd.f32 %v3641, %v3739
        %3741 = vmatmul.bf16.gmra.mxu0 %v2279
        %v3742 = vpop.f32.mrf.mxu0
        %v3743 = vadd.f32 %v3644, %v3742
        %v3744 = vpop.f32.mrf.mxu0
        %v3745 = vadd.f32 %v3646, %v3744
        %3746 = vmatmul.bf16.gmra.mxu0 %v2280
        %v3747 = vpop.f32.mrf.mxu0
        %v3748 = vadd.f32 %v3649, %v3747
        %v3749 = vpop.f32.mrf.mxu0
        %v3750 = vadd.f32 %v3651, %v3749
        %3751 = vmatmul.bf16.gmra.mxu0 %v2281
        %v3752 = vpop.f32.mrf.mxu0
        %v3753 = vadd.f32 %v3654, %v3752
        %v3754 = vpop.f32.mrf.mxu0
        %v3755 = vadd.f32 %v3656, %v3754
        %3756 = vmatmul.bf16.gmra.mxu0 %v2282
        %v3757 = vpop.f32.mrf.mxu0
        %v3758 = vadd.f32 %v3659, %v3757
        %v3759 = vpop.f32.mrf.mxu0
        %v3760 = vadd.f32 %v3661, %v3759
        %3761 = vmatmul.bf16.gmra.mxu0 %v2283
        %v3762 = vpop.f32.mrf.mxu0
        %v3763 = vadd.f32 %v3664, %v3762
        %v3764 = vpop.f32.mrf.mxu0
        %v3765 = vadd.f32 %v3666, %v3764
        %3766 = vmatmul.bf16.gmra.mxu0 %v2284
        %v3767 = vpop.f32.mrf.mxu0
        %v3768 = vadd.f32 %v3669, %v3767
        %v3769 = vpop.f32.mrf.mxu0
        %v3770 = vadd.f32 %v3671, %v3769
        %3771 = vdwg.mxu0
        %v3772 = vadd.f32 %v3193, %v3698
        %v3773 = vadd.f32 %v3195, %v3700
        %v3774 = vadd.f32 %v3198, %v3703
        %v3775 = vadd.f32 %v3200, %v3705
        %v3776 = vadd.f32 %v3203, %v3708
        %v3777 = vadd.f32 %v3205, %v3710
        %v3778 = vadd.f32 %v3208, %v3713
        %v3779 = vadd.f32 %v3210, %v3715
        %v3780 = vadd.f32 %v3213, %v3718
        %v3781 = vadd.f32 %v3215, %v3720
        %v3782 = vadd.f32 %v3218, %v3723
        %v3783 = vadd.f32 %v3220, %v3725
        %v3784 = vadd.f32 %v3223, %v3728
        %v3785 = vadd.f32 %v3225, %v3730
        %v3786 = vadd.f32 %v3228, %v3733
        %v3787 = vadd.f32 %v3230, %v3735
        %v3788 = vadd.f32 %v3233, %v3738
        %v3789 = vadd.f32 %v3235, %v3740
        %v3790 = vadd.f32 %v3238, %v3743
        %v3791 = vadd.f32 %v3240, %v3745
        %v3792 = vadd.f32 %v3243, %v3748
        %v3793 = vadd.f32 %v3245, %v3750
        %v3794 = vadd.f32 %v3248, %v3753
        %v3795 = vadd.f32 %v3250, %v3755
        %v3796 = vadd.f32 %v3253, %v3758
        %v3797 = vadd.f32 %v3255, %v3760
        %v3798 = vadd.f32 %v3258, %v3763
        %v3799 = vadd.f32 %v3260, %v3765
        %v3800 = vadd.f32 %v3263, %v3768
        %v3801 = vadd.f32 %v3265, %v3770
        %v3802 = vadd.f32 %v3268, %v3683
        %v3803 = vadd.f32 %v3270, %v3685
        %v3804 = vadd.f32 %v3273, %v3688
        %v3805 = vadd.f32 %v3275, %v3690
        %v3806 = vadd.f32 %v3278, %v3693
        %v3807 = vadd.f32 %v3280, %v3695
        %v3808 = vld [vmem:[%s4] sm:$0x1]
        %v3810 = vperm.slane %v3808, 0
        %v3812 = vadd.f32 %v3772, %v3810
        %v3813 = vadd.f32 %v3773, %v3810
        %v3814 = vadd.f32 %v3774, %v3810
        %v3815 = vadd.f32 %v3775, %v3810
        %v3816 = vadd.f32 %v3776, %v3810
        %v3817 = vadd.f32 %v3777, %v3810
        %v3818 = vadd.f32 %v3778, %v3810
        %v3819 = vadd.f32 %v3779, %v3810
        %v3820 = vadd.f32 %v3780, %v3810
        %v3821 = vadd.f32 %v3781, %v3810
        %v3822 = vadd.f32 %v3782, %v3810
        %v3823 = vadd.f32 %v3783, %v3810
        %v3824 = vadd.f32 %v3784, %v3810
        %v3825 = vadd.f32 %v3785, %v3810
        %v3826 = vadd.f32 %v3786, %v3810
        %v3827 = vadd.f32 %v3787, %v3810
        %v3828 = vadd.f32 %v3788, %v3810
        %v3829 = vadd.f32 %v3789, %v3810
        %v3830 = vadd.f32 %v3790, %v3810
        %v3831 = vadd.f32 %v3791, %v3810
        %v3832 = vadd.f32 %v3792, %v3810
        %v3833 = vadd.f32 %v3793, %v3810
        %v3834 = vadd.f32 %v3794, %v3810
        %v3835 = vadd.f32 %v3795, %v3810
        %v3836 = vadd.f32 %v3796, %v3810
        %v3837 = vadd.f32 %v3797, %v3810
        %v3838 = vadd.f32 %v3798, %v3810
        %v3839 = vadd.f32 %v3799, %v3810
        %v3840 = vadd.f32 %v3800, %v3810
        %v3841 = vadd.f32 %v3801, %v3810
        %v3842 = vadd.f32 %v3802, %v3810
        %v3843 = vadd.f32 %v3803, %v3810
        %v3844 = vadd.f32 %v3804, %v3810
        %v3845 = vadd.f32 %v3805, %v3810
        %v3846 = vadd.f32 %v3806, %v3810
        %v3847 = vadd.f32 %v3807, %v3810
        %v3848 = vxor.u32 %v3812, 2147483648
        %v3849 = vxor.u32 %v3813, 2147483648
        %v3850 = vxor.u32 %v3814, 2147483648
        %v3851 = vxor.u32 %v3815, 2147483648
        %v3852 = vxor.u32 %v3816, 2147483648
        %v3853 = vxor.u32 %v3817, 2147483648
        %v3854 = vxor.u32 %v3818, 2147483648
        %v3855 = vxor.u32 %v3819, 2147483648
        %v3856 = vxor.u32 %v3820, 2147483648
        %v3857 = vxor.u32 %v3821, 2147483648
        %v3858 = vxor.u32 %v3822, 2147483648
        %v3859 = vxor.u32 %v3823, 2147483648
        %v3860 = vxor.u32 %v3824, 2147483648
        %v3861 = vxor.u32 %v3825, 2147483648
        %v3862 = vxor.u32 %v3826, 2147483648
        %v3863 = vxor.u32 %v3827, 2147483648
        %v3864 = vxor.u32 %v3828, 2147483648
        %v3865 = vxor.u32 %v3829, 2147483648
        %v3866 = vxor.u32 %v3830, 2147483648
        %v3867 = vxor.u32 %v3831, 2147483648
        %v3868 = vxor.u32 %v3832, 2147483648
        %v3869 = vxor.u32 %v3833, 2147483648
        %v3870 = vxor.u32 %v3834, 2147483648
        %v3871 = vxor.u32 %v3835, 2147483648
        %v3872 = vxor.u32 %v3836, 2147483648
        %v3873 = vxor.u32 %v3837, 2147483648
        %v3874 = vxor.u32 %v3838, 2147483648
        %v3875 = vxor.u32 %v3839, 2147483648
        %v3876 = vxor.u32 %v3840, 2147483648
        %v3877 = vxor.u32 %v3841, 2147483648
        %v3878 = vxor.u32 %v3842, 2147483648
        %v3879 = vxor.u32 %v3843, 2147483648
        %v3880 = vxor.u32 %v3844, 2147483648
        %v3881 = vxor.u32 %v3845, 2147483648
        %v3882 = vxor.u32 %v3846, 2147483648
        %v3883 = vxor.u32 %v3847, 2147483648
        %v3884 = vmul.f32 %v3848, 1.442695
        %v3885 = vpow.pop %v3884
        %v3886 = vmul.f32 %v3849, 1.442695
        %v3887 = vpow.pop %v3886
        %v3888 = vmul.f32 %v3850, 1.442695
        %v3889 = vpow.pop %v3888
        %v3890 = vmul.f32 %v3851, 1.442695
        %v3891 = vpow.pop %v3890
        %v3892 = vmul.f32 %v3852, 1.442695
        %v3893 = vpow.pop %v3892
        %v3894 = vmul.f32 %v3853, 1.442695
        %v3895 = vpow.pop %v3894
        %v3896 = vmul.f32 %v3854, 1.442695
        %v3897 = vpow.pop %v3896
        %v3898 = vmul.f32 %v3855, 1.442695
        %v3899 = vpow.pop %v3898
        %v3900 = vmul.f32 %v3856, 1.442695
        %v3901 = vpow.pop %v3900
        %v3902 = vmul.f32 %v3857, 1.442695
        %v3903 = vpow.pop %v3902
        %v3904 = vmul.f32 %v3858, 1.442695
        %v3905 = vpow.pop %v3904
        %v3906 = vmul.f32 %v3859, 1.442695
        %v3907 = vpow.pop %v3906
        %v3908 = vmul.f32 %v3860, 1.442695
        %v3909 = vpow.pop %v3908
        %v3910 = vmul.f32 %v3861, 1.442695
        %v3911 = vpow.pop %v3910
        %v3912 = vmul.f32 %v3862, 1.442695
        %v3913 = vpow.pop %v3912
        %v3914 = vmul.f32 %v3863, 1.442695
        %v3915 = vpow.pop %v3914
        %v3916 = vmul.f32 %v3864, 1.442695
        %v3917 = vpow.pop %v3916
        %v3918 = vmul.f32 %v3865, 1.442695
        %v3919 = vpow.pop %v3918
        %v3920 = vmul.f32 %v3866, 1.442695
        %v3921 = vpow.pop %v3920
        %v3922 = vmul.f32 %v3867, 1.442695
        %v3923 = vpow.pop %v3922
        %v3924 = vmul.f32 %v3868, 1.442695
        %v3925 = vpow.pop %v3924
        %v3926 = vmul.f32 %v3869, 1.442695
        %v3927 = vpow.pop %v3926
        %v3928 = vmul.f32 %v3870, 1.442695
        %v3929 = vpow.pop %v3928
        %v3930 = vmul.f32 %v3871, 1.442695
        %v3931 = vpow.pop %v3930
        %v3932 = vmul.f32 %v3872, 1.442695
        %v3933 = vpow.pop %v3932
        %v3934 = vmul.f32 %v3873, 1.442695
        %v3935 = vpow.pop %v3934
        %v3936 = vmul.f32 %v3874, 1.442695
        %v3937 = vpow.pop %v3936
        %v3938 = vmul.f32 %v3875, 1.442695
        %v3939 = vpow.pop %v3938
        %v3940 = vmul.f32 %v3876, 1.442695
        %v3941 = vpow.pop %v3940
        %v3942 = vmul.f32 %v3877, 1.442695
        %v3943 = vpow.pop %v3942
        %v3944 = vmul.f32 %v3878, 1.442695
        %v3945 = vpow.pop %v3944
        %v3946 = vmul.f32 %v3879, 1.442695
        %v3947 = vpow.pop %v3946
        %v3948 = vmul.f32 %v3880, 1.442695
        %v3949 = vpow.pop %v3948
        %v3950 = vmul.f32 %v3881, 1.442695
        %v3951 = vpow.pop %v3950
        %v3952 = vmul.f32 %v3882, 1.442695
        %v3953 = vpow.pop %v3952
        %v3954 = vmul.f32 %v3883, 1.442695
        %v3955 = vpow.pop %v3954
        %v3956 = vadd.f32 %v3885, 1.0
        %v3957 = vadd.f32 %v3887, 1.0
        %v3958 = vadd.f32 %v3889, 1.0
        %v3959 = vadd.f32 %v3891, 1.0
        %v3960 = vadd.f32 %v3893, 1.0
        %v3961 = vadd.f32 %v3895, 1.0
        %v3962 = vadd.f32 %v3897, 1.0
        %v3963 = vadd.f32 %v3899, 1.0
        %v3964 = vadd.f32 %v3901, 1.0
        %v3965 = vadd.f32 %v3903, 1.0
        %v3966 = vadd.f32 %v3905, 1.0
        %v3967 = vadd.f32 %v3907, 1.0
        %v3968 = vadd.f32 %v3909, 1.0
        %v3969 = vadd.f32 %v3911, 1.0
        %v3970 = vadd.f32 %v3913, 1.0
        %v3971 = vadd.f32 %v3915, 1.0
        %v3972 = vadd.f32 %v3917, 1.0
        %v3973 = vadd.f32 %v3919, 1.0
        %v3974 = vadd.f32 %v3921, 1.0
        %v3975 = vadd.f32 %v3923, 1.0
        %v3976 = vadd.f32 %v3925, 1.0
        %v3977 = vadd.f32 %v3927, 1.0
        %v3978 = vadd.f32 %v3929, 1.0
        %v3979 = vadd.f32 %v3931, 1.0
        %v3980 = vadd.f32 %v3933, 1.0
        %v3981 = vadd.f32 %v3935, 1.0
        %v3982 = vadd.f32 %v3937, 1.0
        %v3983 = vadd.f32 %v3939, 1.0
        %v3984 = vadd.f32 %v3941, 1.0
        %v3985 = vadd.f32 %v3943, 1.0
        %v3986 = vadd.f32 %v3945, 1.0
        %v3987 = vadd.f32 %v3947, 1.0
        %v3988 = vadd.f32 %v3949, 1.0
        %v3989 = vadd.f32 %v3951, 1.0
        %v3990 = vadd.f32 %v3953, 1.0
        %v3991 = vadd.f32 %v3955, 1.0
        %v3992 = vrcp.pop %v3956
        %v3993 = vmul.f32 %v3956, %v3992
        %v3994 = vsub.f32 1.0, %v3993
        %v3995 = vmul.f32 %v3992, %v3994
        %v3996 = vadd.f32 %v3992, %v3995
        %vm3997 = vweird.f32 %v3956
        %vm3998 = vweird.f32 %v3992
        %vm3999 = vmor %vm3997, %vm3998
        %v4000 = vsel %vm3999, %v3992, %v3996
        %v4001 = vand.u32 2147483647, %v3956
        %vm4002 = vcmp.eq.f32.partialorder %v4001, 8.507059e+37
        %v4003 = vand.u32 %v3956, 2147483648
        %v4004 = vor.u32 1.1754944e-38, %v4003
        %v4005 = vsel %vm4002, %v4004, %v4000
        %v4006 = vmul.f32 1.0, %v4005
        %v4007 = vrcp.pop %v3957
        %v4008 = vmul.f32 %v3957, %v4007
        %v4009 = vsub.f32 1.0, %v4008
        %v4010 = vmul.f32 %v4007, %v4009
        %v4011 = vadd.f32 %v4007, %v4010
        %vm4012 = vweird.f32 %v3957
        %vm4013 = vweird.f32 %v4007
        %vm4014 = vmor %vm4012, %vm4013
        %v4015 = vsel %vm4014, %v4007, %v4011
        %v4016 = vand.u32 2147483647, %v3957
        %vm4017 = vcmp.eq.f32.partialorder %v4016, 8.507059e+37
        %v4018 = vand.u32 %v3957, 2147483648
        %v4019 = vor.u32 1.1754944e-38, %v4018
        %v4020 = vsel %vm4017, %v4019, %v4015
        %v4021 = vmul.f32 1.0, %v4020
        %v4022 = vrcp.pop %v3958
        %v4023 = vmul.f32 %v3958, %v4022
        %v4024 = vsub.f32 1.0, %v4023
        %v4025 = vmul.f32 %v4022, %v4024
        %v4026 = vadd.f32 %v4022, %v4025
        %vm4027 = vweird.f32 %v3958
        %vm4028 = vweird.f32 %v4022
        %vm4029 = vmor %vm4027, %vm4028
        %v4030 = vsel %vm4029, %v4022, %v4026
        %v4031 = vand.u32 2147483647, %v3958
        %vm4032 = vcmp.eq.f32.partialorder %v4031, 8.507059e+37
        %v4033 = vand.u32 %v3958, 2147483648
        %v4034 = vor.u32 1.1754944e-38, %v4033
        %v4035 = vsel %vm4032, %v4034, %v4030
        %v4036 = vmul.f32 1.0, %v4035
        %v4037 = vrcp.pop %v3959
        %v4038 = vmul.f32 %v3959, %v4037
        %v4039 = vsub.f32 1.0, %v4038
        %v4040 = vmul.f32 %v4037, %v4039
        %v4041 = vadd.f32 %v4037, %v4040
        %vm4042 = vweird.f32 %v3959
        %vm4043 = vweird.f32 %v4037
        %vm4044 = vmor %vm4042, %vm4043
        %v4045 = vsel %vm4044, %v4037, %v4041
        %v4046 = vand.u32 2147483647, %v3959
        %vm4047 = vcmp.eq.f32.partialorder %v4046, 8.507059e+37
        %v4048 = vand.u32 %v3959, 2147483648
        %v4049 = vor.u32 1.1754944e-38, %v4048
        %v4050 = vsel %vm4047, %v4049, %v4045
        %v4051 = vmul.f32 1.0, %v4050
        %v4052 = vrcp.pop %v3960
        %v4053 = vmul.f32 %v3960, %v4052
        %v4054 = vsub.f32 1.0, %v4053
        %v4055 = vmul.f32 %v4052, %v4054
        %v4056 = vadd.f32 %v4052, %v4055
        %vm4057 = vweird.f32 %v3960
        %vm4058 = vweird.f32 %v4052
        %vm4059 = vmor %vm4057, %vm4058
        %v4060 = vsel %vm4059, %v4052, %v4056
        %v4061 = vand.u32 2147483647, %v3960
        %vm4062 = vcmp.eq.f32.partialorder %v4061, 8.507059e+37
        %v4063 = vand.u32 %v3960, 2147483648
        %v4064 = vor.u32 1.1754944e-38, %v4063
        %v4065 = vsel %vm4062, %v4064, %v4060
        %v4066 = vmul.f32 1.0, %v4065
        %v4067 = vrcp.pop %v3961
        %v4068 = vmul.f32 %v3961, %v4067
        %v4069 = vsub.f32 1.0, %v4068
        %v4070 = vmul.f32 %v4067, %v4069
        %v4071 = vadd.f32 %v4067, %v4070
        %vm4072 = vweird.f32 %v3961
        %vm4073 = vweird.f32 %v4067
        %vm4074 = vmor %vm4072, %vm4073
        %v4075 = vsel %vm4074, %v4067, %v4071
        %v4076 = vand.u32 2147483647, %v3961
        %vm4077 = vcmp.eq.f32.partialorder %v4076, 8.507059e+37
        %v4078 = vand.u32 %v3961, 2147483648
        %v4079 = vor.u32 1.1754944e-38, %v4078
        %v4080 = vsel %vm4077, %v4079, %v4075
        %v4081 = vmul.f32 1.0, %v4080
        %v4082 = vrcp.pop %v3962
        %v4083 = vmul.f32 %v3962, %v4082
        %v4084 = vsub.f32 1.0, %v4083
        %v4085 = vmul.f32 %v4082, %v4084
        %v4086 = vadd.f32 %v4082, %v4085
        %vm4087 = vweird.f32 %v3962
        %vm4088 = vweird.f32 %v4082
        %vm4089 = vmor %vm4087, %vm4088
        %v4090 = vsel %vm4089, %v4082, %v4086
        %v4091 = vand.u32 2147483647, %v3962
        %vm4092 = vcmp.eq.f32.partialorder %v4091, 8.507059e+37
        %v4093 = vand.u32 %v3962, 2147483648
        %v4094 = vor.u32 1.1754944e-38, %v4093
        %v4095 = vsel %vm4092, %v4094, %v4090
        %v4096 = vmul.f32 1.0, %v4095
        %v4097 = vrcp.pop %v3963
        %v4098 = vmul.f32 %v3963, %v4097
        %v4099 = vsub.f32 1.0, %v4098
        %v4100 = vmul.f32 %v4097, %v4099
        %v4101 = vadd.f32 %v4097, %v4100
        %vm4102 = vweird.f32 %v3963
        %vm4103 = vweird.f32 %v4097
        %vm4104 = vmor %vm4102, %vm4103
        %v4105 = vsel %vm4104, %v4097, %v4101
        %v4106 = vand.u32 2147483647, %v3963
        %vm4107 = vcmp.eq.f32.partialorder %v4106, 8.507059e+37
        %v4108 = vand.u32 %v3963, 2147483648
        %v4109 = vor.u32 1.1754944e-38, %v4108
        %v4110 = vsel %vm4107, %v4109, %v4105
        %v4111 = vmul.f32 1.0, %v4110
        %v4112 = vrcp.pop %v3964
        %v4113 = vmul.f32 %v3964, %v4112
        %v4114 = vsub.f32 1.0, %v4113
        %v4115 = vmul.f32 %v4112, %v4114
        %v4116 = vadd.f32 %v4112, %v4115
        %vm4117 = vweird.f32 %v3964
        %vm4118 = vweird.f32 %v4112
        %vm4119 = vmor %vm4117, %vm4118
        %v4120 = vsel %vm4119, %v4112, %v4116
        %v4121 = vand.u32 2147483647, %v3964
        %vm4122 = vcmp.eq.f32.partialorder %v4121, 8.507059e+37
        %v4123 = vand.u32 %v3964, 2147483648
        %v4124 = vor.u32 1.1754944e-38, %v4123
        %v4125 = vsel %vm4122, %v4124, %v4120
        %v4126 = vmul.f32 1.0, %v4125
        %v4127 = vrcp.pop %v3965
        %v4128 = vmul.f32 %v3965, %v4127
        %v4129 = vsub.f32 1.0, %v4128
        %v4130 = vmul.f32 %v4127, %v4129
        %v4131 = vadd.f32 %v4127, %v4130
        %vm4132 = vweird.f32 %v3965
        %vm4133 = vweird.f32 %v4127
        %vm4134 = vmor %vm4132, %vm4133
        %v4135 = vsel %vm4134, %v4127, %v4131
        %v4136 = vand.u32 2147483647, %v3965
        %vm4137 = vcmp.eq.f32.partialorder %v4136, 8.507059e+37
        %v4138 = vand.u32 %v3965, 2147483648
        %v4139 = vor.u32 1.1754944e-38, %v4138
        %v4140 = vsel %vm4137, %v4139, %v4135
        %v4141 = vmul.f32 1.0, %v4140
        %v4142 = vrcp.pop %v3966
        %v4143 = vmul.f32 %v3966, %v4142
        %v4144 = vsub.f32 1.0, %v4143
        %v4145 = vmul.f32 %v4142, %v4144
        %v4146 = vadd.f32 %v4142, %v4145
        %vm4147 = vweird.f32 %v3966
        %vm4148 = vweird.f32 %v4142
        %vm4149 = vmor %vm4147, %vm4148
        %v4150 = vsel %vm4149, %v4142, %v4146
        %v4151 = vand.u32 2147483647, %v3966
        %vm4152 = vcmp.eq.f32.partialorder %v4151, 8.507059e+37
        %v4153 = vand.u32 %v3966, 2147483648
        %v4154 = vor.u32 1.1754944e-38, %v4153
        %v4155 = vsel %vm4152, %v4154, %v4150
        %v4156 = vmul.f32 1.0, %v4155
        %v4157 = vrcp.pop %v3967
        %v4158 = vmul.f32 %v3967, %v4157
        %v4159 = vsub.f32 1.0, %v4158
        %v4160 = vmul.f32 %v4157, %v4159
        %v4161 = vadd.f32 %v4157, %v4160
        %vm4162 = vweird.f32 %v3967
        %vm4163 = vweird.f32 %v4157
        %vm4164 = vmor %vm4162, %vm4163
        %v4165 = vsel %vm4164, %v4157, %v4161
        %v4166 = vand.u32 2147483647, %v3967
        %vm4167 = vcmp.eq.f32.partialorder %v4166, 8.507059e+37
        %v4168 = vand.u32 %v3967, 2147483648
        %v4169 = vor.u32 1.1754944e-38, %v4168
        %v4170 = vsel %vm4167, %v4169, %v4165
        %v4171 = vmul.f32 1.0, %v4170
        %v4172 = vrcp.pop %v3968
        %v4173 = vmul.f32 %v3968, %v4172
        %v4174 = vsub.f32 1.0, %v4173
        %v4175 = vmul.f32 %v4172, %v4174
        %v4176 = vadd.f32 %v4172, %v4175
        %vm4177 = vweird.f32 %v3968
        %vm4178 = vweird.f32 %v4172
        %vm4179 = vmor %vm4177, %vm4178
        %v4180 = vsel %vm4179, %v4172, %v4176
        %v4181 = vand.u32 2147483647, %v3968
        %vm4182 = vcmp.eq.f32.partialorder %v4181, 8.507059e+37
        %v4183 = vand.u32 %v3968, 2147483648
        %v4184 = vor.u32 1.1754944e-38, %v4183
        %v4185 = vsel %vm4182, %v4184, %v4180
        %v4186 = vmul.f32 1.0, %v4185
        %v4187 = vrcp.pop %v3969
        %v4188 = vmul.f32 %v3969, %v4187
        %v4189 = vsub.f32 1.0, %v4188
        %v4190 = vmul.f32 %v4187, %v4189
        %v4191 = vadd.f32 %v4187, %v4190
        %vm4192 = vweird.f32 %v3969
        %vm4193 = vweird.f32 %v4187
        %vm4194 = vmor %vm4192, %vm4193
        %v4195 = vsel %vm4194, %v4187, %v4191
        %v4196 = vand.u32 2147483647, %v3969
        %vm4197 = vcmp.eq.f32.partialorder %v4196, 8.507059e+37
        %v4198 = vand.u32 %v3969, 2147483648
        %v4199 = vor.u32 1.1754944e-38, %v4198
        %v4200 = vsel %vm4197, %v4199, %v4195
        %v4201 = vmul.f32 1.0, %v4200
        %v4202 = vrcp.pop %v3970
        %v4203 = vmul.f32 %v3970, %v4202
        %v4204 = vsub.f32 1.0, %v4203
        %v4205 = vmul.f32 %v4202, %v4204
        %v4206 = vadd.f32 %v4202, %v4205
        %vm4207 = vweird.f32 %v3970
        %vm4208 = vweird.f32 %v4202
        %vm4209 = vmor %vm4207, %vm4208
        %v4210 = vsel %vm4209, %v4202, %v4206
        %v4211 = vand.u32 2147483647, %v3970
        %vm4212 = vcmp.eq.f32.partialorder %v4211, 8.507059e+37
        %v4213 = vand.u32 %v3970, 2147483648
        %v4214 = vor.u32 1.1754944e-38, %v4213
        %v4215 = vsel %vm4212, %v4214, %v4210
        %v4216 = vmul.f32 1.0, %v4215
        %v4217 = vrcp.pop %v3971
        %v4218 = vmul.f32 %v3971, %v4217
        %v4219 = vsub.f32 1.0, %v4218
        %v4220 = vmul.f32 %v4217, %v4219
        %v4221 = vadd.f32 %v4217, %v4220
        %vm4222 = vweird.f32 %v3971
        %vm4223 = vweird.f32 %v4217
        %vm4224 = vmor %vm4222, %vm4223
        %v4225 = vsel %vm4224, %v4217, %v4221
        %v4226 = vand.u32 2147483647, %v3971
        %vm4227 = vcmp.eq.f32.partialorder %v4226, 8.507059e+37
        %v4228 = vand.u32 %v3971, 2147483648
        %v4229 = vor.u32 1.1754944e-38, %v4228
        %v4230 = vsel %vm4227, %v4229, %v4225
        %v4231 = vmul.f32 1.0, %v4230
        %v4232 = vrcp.pop %v3972
        %v4233 = vmul.f32 %v3972, %v4232
        %v4234 = vsub.f32 1.0, %v4233
        %v4235 = vmul.f32 %v4232, %v4234
        %v4236 = vadd.f32 %v4232, %v4235
        %vm4237 = vweird.f32 %v3972
        %vm4238 = vweird.f32 %v4232
        %vm4239 = vmor %vm4237, %vm4238
        %v4240 = vsel %vm4239, %v4232, %v4236
        %v4241 = vand.u32 2147483647, %v3972
        %vm4242 = vcmp.eq.f32.partialorder %v4241, 8.507059e+37
        %v4243 = vand.u32 %v3972, 2147483648
        %v4244 = vor.u32 1.1754944e-38, %v4243
        %v4245 = vsel %vm4242, %v4244, %v4240
        %v4246 = vmul.f32 1.0, %v4245
        %v4247 = vrcp.pop %v3973
        %v4248 = vmul.f32 %v3973, %v4247
        %v4249 = vsub.f32 1.0, %v4248
        %v4250 = vmul.f32 %v4247, %v4249
        %v4251 = vadd.f32 %v4247, %v4250
        %vm4252 = vweird.f32 %v3973
        %vm4253 = vweird.f32 %v4247
        %vm4254 = vmor %vm4252, %vm4253
        %v4255 = vsel %vm4254, %v4247, %v4251
        %v4256 = vand.u32 2147483647, %v3973
        %vm4257 = vcmp.eq.f32.partialorder %v4256, 8.507059e+37
        %v4258 = vand.u32 %v3973, 2147483648
        %v4259 = vor.u32 1.1754944e-38, %v4258
        %v4260 = vsel %vm4257, %v4259, %v4255
        %v4261 = vmul.f32 1.0, %v4260
        %v4262 = vrcp.pop %v3974
        %v4263 = vmul.f32 %v3974, %v4262
        %v4264 = vsub.f32 1.0, %v4263
        %v4265 = vmul.f32 %v4262, %v4264
        %v4266 = vadd.f32 %v4262, %v4265
        %vm4267 = vweird.f32 %v3974
        %vm4268 = vweird.f32 %v4262
        %vm4269 = vmor %vm4267, %vm4268
        %v4270 = vsel %vm4269, %v4262, %v4266
        %v4271 = vand.u32 2147483647, %v3974
        %vm4272 = vcmp.eq.f32.partialorder %v4271, 8.507059e+37
        %v4273 = vand.u32 %v3974, 2147483648
        %v4274 = vor.u32 1.1754944e-38, %v4273
        %v4275 = vsel %vm4272, %v4274, %v4270
        %v4276 = vmul.f32 1.0, %v4275
        %v4277 = vrcp.pop %v3975
        %v4278 = vmul.f32 %v3975, %v4277
        %v4279 = vsub.f32 1.0, %v4278
        %v4280 = vmul.f32 %v4277, %v4279
        %v4281 = vadd.f32 %v4277, %v4280
        %vm4282 = vweird.f32 %v3975
        %vm4283 = vweird.f32 %v4277
        %vm4284 = vmor %vm4282, %vm4283
        %v4285 = vsel %vm4284, %v4277, %v4281
        %v4286 = vand.u32 2147483647, %v3975
        %vm4287 = vcmp.eq.f32.partialorder %v4286, 8.507059e+37
        %v4288 = vand.u32 %v3975, 2147483648
        %v4289 = vor.u32 1.1754944e-38, %v4288
        %v4290 = vsel %vm4287, %v4289, %v4285
        %v4291 = vmul.f32 1.0, %v4290
        %v4292 = vrcp.pop %v3976
        %v4293 = vmul.f32 %v3976, %v4292
        %v4294 = vsub.f32 1.0, %v4293
        %v4295 = vmul.f32 %v4292, %v4294
        %v4296 = vadd.f32 %v4292, %v4295
        %vm4297 = vweird.f32 %v3976
        %vm4298 = vweird.f32 %v4292
        %vm4299 = vmor %vm4297, %vm4298
        %v4300 = vsel %vm4299, %v4292, %v4296
        %v4301 = vand.u32 2147483647, %v3976
        %vm4302 = vcmp.eq.f32.partialorder %v4301, 8.507059e+37
        %v4303 = vand.u32 %v3976, 2147483648
        %v4304 = vor.u32 1.1754944e-38, %v4303
        %v4305 = vsel %vm4302, %v4304, %v4300
        %v4306 = vmul.f32 1.0, %v4305
        %v4307 = vrcp.pop %v3977
        %v4308 = vmul.f32 %v3977, %v4307
        %v4309 = vsub.f32 1.0, %v4308
        %v4310 = vmul.f32 %v4307, %v4309
        %v4311 = vadd.f32 %v4307, %v4310
        %vm4312 = vweird.f32 %v3977
        %vm4313 = vweird.f32 %v4307
        %vm4314 = vmor %vm4312, %vm4313
        %v4315 = vsel %vm4314, %v4307, %v4311
        %v4316 = vand.u32 2147483647, %v3977
        %vm4317 = vcmp.eq.f32.partialorder %v4316, 8.507059e+37
        %v4318 = vand.u32 %v3977, 2147483648
        %v4319 = vor.u32 1.1754944e-38, %v4318
        %v4320 = vsel %vm4317, %v4319, %v4315
        %v4321 = vmul.f32 1.0, %v4320
        %v4322 = vrcp.pop %v3978
        %v4323 = vmul.f32 %v3978, %v4322
        %v4324 = vsub.f32 1.0, %v4323
        %v4325 = vmul.f32 %v4322, %v4324
        %v4326 = vadd.f32 %v4322, %v4325
        %vm4327 = vweird.f32 %v3978
        %vm4328 = vweird.f32 %v4322
        %vm4329 = vmor %vm4327, %vm4328
        %v4330 = vsel %vm4329, %v4322, %v4326
        %v4331 = vand.u32 2147483647, %v3978
        %vm4332 = vcmp.eq.f32.partialorder %v4331, 8.507059e+37
        %v4333 = vand.u32 %v3978, 2147483648
        %v4334 = vor.u32 1.1754944e-38, %v4333
        %v4335 = vsel %vm4332, %v4334, %v4330
        %v4336 = vmul.f32 1.0, %v4335
        %v4337 = vrcp.pop %v3979
        %v4338 = vmul.f32 %v3979, %v4337
        %v4339 = vsub.f32 1.0, %v4338
        %v4340 = vmul.f32 %v4337, %v4339
        %v4341 = vadd.f32 %v4337, %v4340
        %vm4342 = vweird.f32 %v3979
        %vm4343 = vweird.f32 %v4337
        %vm4344 = vmor %vm4342, %vm4343
        %v4345 = vsel %vm4344, %v4337, %v4341
        %v4346 = vand.u32 2147483647, %v3979
        %vm4347 = vcmp.eq.f32.partialorder %v4346, 8.507059e+37
        %v4348 = vand.u32 %v3979, 2147483648
        %v4349 = vor.u32 1.1754944e-38, %v4348
        %v4350 = vsel %vm4347, %v4349, %v4345
        %v4351 = vmul.f32 1.0, %v4350
        %v4352 = vrcp.pop %v3980
        %v4353 = vmul.f32 %v3980, %v4352
        %v4354 = vsub.f32 1.0, %v4353
        %v4355 = vmul.f32 %v4352, %v4354
        %v4356 = vadd.f32 %v4352, %v4355
        %vm4357 = vweird.f32 %v3980
        %vm4358 = vweird.f32 %v4352
        %vm4359 = vmor %vm4357, %vm4358
        %v4360 = vsel %vm4359, %v4352, %v4356
        %v4361 = vand.u32 2147483647, %v3980
        %vm4362 = vcmp.eq.f32.partialorder %v4361, 8.507059e+37
        %v4363 = vand.u32 %v3980, 2147483648
        %v4364 = vor.u32 1.1754944e-38, %v4363
        %v4365 = vsel %vm4362, %v4364, %v4360
        %v4366 = vmul.f32 1.0, %v4365
        %v4367 = vrcp.pop %v3981
        %v4368 = vmul.f32 %v3981, %v4367
        %v4369 = vsub.f32 1.0, %v4368
        %v4370 = vmul.f32 %v4367, %v4369
        %v4371 = vadd.f32 %v4367, %v4370
        %vm4372 = vweird.f32 %v3981
        %vm4373 = vweird.f32 %v4367
        %vm4374 = vmor %vm4372, %vm4373
        %v4375 = vsel %vm4374, %v4367, %v4371
        %v4376 = vand.u32 2147483647, %v3981
        %vm4377 = vcmp.eq.f32.partialorder %v4376, 8.507059e+37
        %v4378 = vand.u32 %v3981, 2147483648
        %v4379 = vor.u32 1.1754944e-38, %v4378
        %v4380 = vsel %vm4377, %v4379, %v4375
        %v4381 = vmul.f32 1.0, %v4380
        %v4382 = vrcp.pop %v3982
        %v4383 = vmul.f32 %v3982, %v4382
        %v4384 = vsub.f32 1.0, %v4383
        %v4385 = vmul.f32 %v4382, %v4384
        %v4386 = vadd.f32 %v4382, %v4385
        %vm4387 = vweird.f32 %v3982
        %vm4388 = vweird.f32 %v4382
        %vm4389 = vmor %vm4387, %vm4388
        %v4390 = vsel %vm4389, %v4382, %v4386
        %v4391 = vand.u32 2147483647, %v3982
        %vm4392 = vcmp.eq.f32.partialorder %v4391, 8.507059e+37
        %v4393 = vand.u32 %v3982, 2147483648
        %v4394 = vor.u32 1.1754944e-38, %v4393
        %v4395 = vsel %vm4392, %v4394, %v4390
        %v4396 = vmul.f32 1.0, %v4395
        %v4397 = vrcp.pop %v3983
        %v4398 = vmul.f32 %v3983, %v4397
        %v4399 = vsub.f32 1.0, %v4398
        %v4400 = vmul.f32 %v4397, %v4399
        %v4401 = vadd.f32 %v4397, %v4400
        %vm4402 = vweird.f32 %v3983
        %vm4403 = vweird.f32 %v4397
        %vm4404 = vmor %vm4402, %vm4403
        %v4405 = vsel %vm4404, %v4397, %v4401
        %v4406 = vand.u32 2147483647, %v3983
        %vm4407 = vcmp.eq.f32.partialorder %v4406, 8.507059e+37
        %v4408 = vand.u32 %v3983, 2147483648
        %v4409 = vor.u32 1.1754944e-38, %v4408
        %v4410 = vsel %vm4407, %v4409, %v4405
        %v4411 = vmul.f32 1.0, %v4410
        %v4412 = vrcp.pop %v3984
        %v4413 = vmul.f32 %v3984, %v4412
        %v4414 = vsub.f32 1.0, %v4413
        %v4415 = vmul.f32 %v4412, %v4414
        %v4416 = vadd.f32 %v4412, %v4415
        %vm4417 = vweird.f32 %v3984
        %vm4418 = vweird.f32 %v4412
        %vm4419 = vmor %vm4417, %vm4418
        %v4420 = vsel %vm4419, %v4412, %v4416
        %v4421 = vand.u32 2147483647, %v3984
        %vm4422 = vcmp.eq.f32.partialorder %v4421, 8.507059e+37
        %v4423 = vand.u32 %v3984, 2147483648
        %v4424 = vor.u32 1.1754944e-38, %v4423
        %v4425 = vsel %vm4422, %v4424, %v4420
        %v4426 = vmul.f32 1.0, %v4425
        %v4427 = vrcp.pop %v3985
        %v4428 = vmul.f32 %v3985, %v4427
        %v4429 = vsub.f32 1.0, %v4428
        %v4430 = vmul.f32 %v4427, %v4429
        %v4431 = vadd.f32 %v4427, %v4430
        %vm4432 = vweird.f32 %v3985
        %vm4433 = vweird.f32 %v4427
        %vm4434 = vmor %vm4432, %vm4433
        %v4435 = vsel %vm4434, %v4427, %v4431
        %v4436 = vand.u32 2147483647, %v3985
        %vm4437 = vcmp.eq.f32.partialorder %v4436, 8.507059e+37
        %v4438 = vand.u32 %v3985, 2147483648
        %v4439 = vor.u32 1.1754944e-38, %v4438
        %v4440 = vsel %vm4437, %v4439, %v4435
        %v4441 = vmul.f32 1.0, %v4440
        %v4442 = vrcp.pop %v3986
        %v4443 = vmul.f32 %v3986, %v4442
        %v4444 = vsub.f32 1.0, %v4443
        %v4445 = vmul.f32 %v4442, %v4444
        %v4446 = vadd.f32 %v4442, %v4445
        %vm4447 = vweird.f32 %v3986
        %vm4448 = vweird.f32 %v4442
        %vm4449 = vmor %vm4447, %vm4448
        %v4450 = vsel %vm4449, %v4442, %v4446
        %v4451 = vand.u32 2147483647, %v3986
        %vm4452 = vcmp.eq.f32.partialorder %v4451, 8.507059e+37
        %v4453 = vand.u32 %v3986, 2147483648
        %v4454 = vor.u32 1.1754944e-38, %v4453
        %v4455 = vsel %vm4452, %v4454, %v4450
        %v4456 = vmul.f32 1.0, %v4455
        %v4457 = vrcp.pop %v3987
        %v4458 = vmul.f32 %v3987, %v4457
        %v4459 = vsub.f32 1.0, %v4458
        %v4460 = vmul.f32 %v4457, %v4459
        %v4461 = vadd.f32 %v4457, %v4460
        %vm4462 = vweird.f32 %v3987
        %vm4463 = vweird.f32 %v4457
        %vm4464 = vmor %vm4462, %vm4463
        %v4465 = vsel %vm4464, %v4457, %v4461
        %v4466 = vand.u32 2147483647, %v3987
        %vm4467 = vcmp.eq.f32.partialorder %v4466, 8.507059e+37
        %v4468 = vand.u32 %v3987, 2147483648
        %v4469 = vor.u32 1.1754944e-38, %v4468
        %v4470 = vsel %vm4467, %v4469, %v4465
        %v4471 = vmul.f32 1.0, %v4470
        %v4472 = vrcp.pop %v3988
        %v4473 = vmul.f32 %v3988, %v4472
        %v4474 = vsub.f32 1.0, %v4473
        %v4475 = vmul.f32 %v4472, %v4474
        %v4476 = vadd.f32 %v4472, %v4475
        %vm4477 = vweird.f32 %v3988
        %vm4478 = vweird.f32 %v4472
        %vm4479 = vmor %vm4477, %vm4478
        %v4480 = vsel %vm4479, %v4472, %v4476
        %v4481 = vand.u32 2147483647, %v3988
        %vm4482 = vcmp.eq.f32.partialorder %v4481, 8.507059e+37
        %v4483 = vand.u32 %v3988, 2147483648
        %v4484 = vor.u32 1.1754944e-38, %v4483
        %v4485 = vsel %vm4482, %v4484, %v4480
        %v4486 = vmul.f32 1.0, %v4485
        %v4487 = vrcp.pop %v3989
        %v4488 = vmul.f32 %v3989, %v4487
        %v4489 = vsub.f32 1.0, %v4488
        %v4490 = vmul.f32 %v4487, %v4489
        %v4491 = vadd.f32 %v4487, %v4490
        %vm4492 = vweird.f32 %v3989
        %vm4493 = vweird.f32 %v4487
        %vm4494 = vmor %vm4492, %vm4493
        %v4495 = vsel %vm4494, %v4487, %v4491
        %v4496 = vand.u32 2147483647, %v3989
        %vm4497 = vcmp.eq.f32.partialorder %v4496, 8.507059e+37
        %v4498 = vand.u32 %v3989, 2147483648
        %v4499 = vor.u32 1.1754944e-38, %v4498
        %v4500 = vsel %vm4497, %v4499, %v4495
        %v4501 = vmul.f32 1.0, %v4500
        %v4502 = vrcp.pop %v3990
        %v4503 = vmul.f32 %v3990, %v4502
        %v4504 = vsub.f32 1.0, %v4503
        %v4505 = vmul.f32 %v4502, %v4504
        %v4506 = vadd.f32 %v4502, %v4505
        %vm4507 = vweird.f32 %v3990
        %vm4508 = vweird.f32 %v4502
        %vm4509 = vmor %vm4507, %vm4508
        %v4510 = vsel %vm4509, %v4502, %v4506
        %v4511 = vand.u32 2147483647, %v3990
        %vm4512 = vcmp.eq.f32.partialorder %v4511, 8.507059e+37
        %v4513 = vand.u32 %v3990, 2147483648
        %v4514 = vor.u32 1.1754944e-38, %v4513
        %v4515 = vsel %vm4512, %v4514, %v4510
        %v4516 = vmul.f32 1.0, %v4515
        %v4517 = vrcp.pop %v3991
        %v4518 = vmul.f32 %v3991, %v4517
        %v4519 = vsub.f32 1.0, %v4518
        %v4520 = vmul.f32 %v4517, %v4519
        %v4521 = vadd.f32 %v4517, %v4520
        %vm4522 = vweird.f32 %v3991
        %vm4523 = vweird.f32 %v4517
        %vm4524 = vmor %vm4522, %vm4523
        %v4525 = vsel %vm4524, %v4517, %v4521
        %v4526 = vand.u32 2147483647, %v3991
        %vm4527 = vcmp.eq.f32.partialorder %v4526, 8.507059e+37
        %v4528 = vand.u32 %v3991, 2147483648
        %v4529 = vor.u32 1.1754944e-38, %v4528
        %v4530 = vsel %vm4527, %v4529, %v4525
        %v4531 = vmul.f32 1.0, %v4530
        %v4532 = vmul.f32 %v3812, %v4006
        %v4533 = vmul.f32 %v3813, %v4021
        %v4534 = vmul.f32 %v3814, %v4036
        %v4535 = vmul.f32 %v3815, %v4051
        %v4536 = vmul.f32 %v3816, %v4066
        %v4537 = vmul.f32 %v3817, %v4081
        %v4538 = vmul.f32 %v3818, %v4096
        %v4539 = vmul.f32 %v3819, %v4111
        %v4540 = vmul.f32 %v3820, %v4126
        %v4541 = vmul.f32 %v3821, %v4141
        %v4542 = vmul.f32 %v3822, %v4156
        %v4543 = vmul.f32 %v3823, %v4171
        %v4544 = vmul.f32 %v3824, %v4186
        %v4545 = vmul.f32 %v3825, %v4201
        %v4546 = vmul.f32 %v3826, %v4216
        %v4547 = vmul.f32 %v3827, %v4231
        %v4548 = vmul.f32 %v3828, %v4246
        %v4549 = vmul.f32 %v3829, %v4261
        %v4550 = vmul.f32 %v3830, %v4276
        %v4551 = vmul.f32 %v3831, %v4291
        %v4552 = vmul.f32 %v3832, %v4306
        %v4553 = vmul.f32 %v3833, %v4321
        %v4554 = vmul.f32 %v3834, %v4336
        %v4555 = vmul.f32 %v3835, %v4351
        %v4556 = vmul.f32 %v3836, %v4366
        %v4557 = vmul.f32 %v3837, %v4381
        %v4558 = vmul.f32 %v3838, %v4396
        %v4559 = vmul.f32 %v3839, %v4411
        %v4560 = vmul.f32 %v3840, %v4426
        %v4561 = vmul.f32 %v3841, %v4441
        %v4562 = vmul.f32 %v3842, %v4456
        %v4563 = vmul.f32 %v3843, %v4471
        %v4564 = vmul.f32 %v3844, %v4486
        %v4565 = vmul.f32 %v3845, %v4501
        %v4566 = vmul.f32 %v3846, %v4516
        %v4567 = vmul.f32 %v3847, %v4531
        %v4568 = vld [vmem:[%s463] sm:$0xff]
        %v4569 = vld [vmem:[%s463 + $0x8] sm:$0xff]
        %v4570 = vld [vmem:[%s463 + $0x10] sm:$0xff]
        %v4571 = vld [vmem:[%s463 + $0x18] sm:$0xff]
        %v4572 = vld [vmem:[%s463 + $0x20] sm:$0xff]
        %v4573 = vld [vmem:[%s463 + $0x28] sm:$0xff]
        %v4574 = vld [vmem:[%s463 + $0x30] sm:$0xff]
        %v4575 = vld [vmem:[%s463 + $0x38] sm:$0xff]
        %v4576 = vld [vmem:[%s463 + $0x40] sm:$0xff]
        %v4577 = vld [vmem:[%s463 + $0x48] sm:$0xff]
        %v4578 = vld [vmem:[%s463 + $0x50] sm:$0xff]
        %v4579 = vld [vmem:[%s463 + $0x58] sm:$0xff]
        %v4580 = vld [vmem:[%s463 + $0x60] sm:$0xff]
        %v4581 = vld [vmem:[%s463 + $0x68] sm:$0xff]
        %v4582 = vld [vmem:[%s463 + $0x70] sm:$0xff]
        %v4583 = vld [vmem:[%s463 + $0x78] sm:$0xff]
        %v4584 = vld [vmem:[%s463 + $0x80] sm:$0xff]
        %v4585 = vld [vmem:[%s463 + $0x88] sm:$0xff]
        %v4586 = vld [vmem:[%s463 + $0x90] sm:$0xff]
        %v4587 = vld [vmem:[%s463 + $0x98] sm:$0xff]
        %v4588 = vld [vmem:[%s463 + $0xa0] sm:$0xff]
        %v4589 = vld [vmem:[%s463 + $0xa8] sm:$0xff]
        %v4590 = vld [vmem:[%s463 + $0xb0] sm:$0xff]
        %v4591 = vld [vmem:[%s463 + $0xb8] sm:$0xff]
        %v4592 = vld [vmem:[%s463 + $0xc0] sm:$0xff]
        %v4593 = vld [vmem:[%s463 + $0xc8] sm:$0xff]
        %v4594 = vld [vmem:[%s463 + $0xd0] sm:$0xff]
        %v4595 = vld [vmem:[%s463 + $0xd8] sm:$0xff]
        %v4596 = vld [vmem:[%s463 + $0xe0] sm:$0xff]
        %v4597 = vld [vmem:[%s463 + $0xe8] sm:$0xff]
        %v4598 = vld [vmem:[%s463 + $0xf0] sm:$0xff]
        %v4599 = vld [vmem:[%s463 + $0xf8] sm:$0xff]
        %v4600 = vld [vmem:[%s463 + $0x100] sm:$0xff]
        %v4601 = vld [vmem:[%s463 + $0x108] sm:$0xff]
        %v4602 = vld [vmem:[%s463 + $0x110] sm:$0xff]
        %v4603 = vld [vmem:[%s463 + $0x118] sm:$0xff]
        %4605 = vset.pattern.permute.xlu0 0
        %4606 = vperm.xlu0 %4605, %v4568
        %v4607 = vpop.permute.xlu0 %4606
        %4610 = vset.pattern.permute.xlu0 0
        %4611 = vperm.xlu0 %4610, %v4569
        %v4612 = vpop.permute.xlu0 %4611
        %4615 = vset.pattern.permute.xlu0 0
        %4616 = vperm.xlu0 %4615, %v4570
        %v4617 = vpop.permute.xlu0 %4616
        %4620 = vset.pattern.permute.xlu0 0
        %4621 = vperm.xlu0 %4620, %v4571
        %v4622 = vpop.permute.xlu0 %4621
        %4625 = vset.pattern.permute.xlu0 0
        %4626 = vperm.xlu0 %4625, %v4572
        %v4627 = vpop.permute.xlu0 %4626
        %4630 = vset.pattern.permute.xlu0 0
        %4631 = vperm.xlu0 %4630, %v4573
        %v4632 = vpop.permute.xlu0 %4631
        %4635 = vset.pattern.permute.xlu0 0
        %4636 = vperm.xlu0 %4635, %v4574
        %v4637 = vpop.permute.xlu0 %4636
        %4640 = vset.pattern.permute.xlu0 0
        %4641 = vperm.xlu0 %4640, %v4575
        %v4642 = vpop.permute.xlu0 %4641
        %4645 = vset.pattern.permute.xlu0 0
        %4646 = vperm.xlu0 %4645, %v4576
        %v4647 = vpop.permute.xlu0 %4646
        %4650 = vset.pattern.permute.xlu0 0
        %4651 = vperm.xlu0 %4650, %v4577
        %v4652 = vpop.permute.xlu0 %4651
        %4655 = vset.pattern.permute.xlu0 0
        %4656 = vperm.xlu0 %4655, %v4578
        %v4657 = vpop.permute.xlu0 %4656
        %4660 = vset.pattern.permute.xlu0 0
        %4661 = vperm.xlu0 %4660, %v4579
        %v4662 = vpop.permute.xlu0 %4661
        %4665 = vset.pattern.permute.xlu0 0
        %4666 = vperm.xlu0 %4665, %v4580
        %v4667 = vpop.permute.xlu0 %4666
        %4670 = vset.pattern.permute.xlu0 0
        %4671 = vperm.xlu0 %4670, %v4581
        %v4672 = vpop.permute.xlu0 %4671
        %4675 = vset.pattern.permute.xlu0 0
        %4676 = vperm.xlu0 %4675, %v4582
        %v4677 = vpop.permute.xlu0 %4676
        %4680 = vset.pattern.permute.xlu0 0
        %4681 = vperm.xlu0 %4680, %v4583
        %v4682 = vpop.permute.xlu0 %4681
        %4685 = vset.pattern.permute.xlu0 0
        %4686 = vperm.xlu0 %4685, %v4584
        %v4687 = vpop.permute.xlu0 %4686
        %4690 = vset.pattern.permute.xlu0 0
        %4691 = vperm.xlu0 %4690, %v4585
        %v4692 = vpop.permute.xlu0 %4691
        %4695 = vset.pattern.permute.xlu0 0
        %4696 = vperm.xlu0 %4695, %v4586
        %v4697 = vpop.permute.xlu0 %4696
        %4700 = vset.pattern.permute.xlu0 0
        %4701 = vperm.xlu0 %4700, %v4587
        %v4702 = vpop.permute.xlu0 %4701
        %4705 = vset.pattern.permute.xlu0 0
        %4706 = vperm.xlu0 %4705, %v4588
        %v4707 = vpop.permute.xlu0 %4706
        %4710 = vset.pattern.permute.xlu0 0
        %4711 = vperm.xlu0 %4710, %v4589
        %v4712 = vpop.permute.xlu0 %4711
        %4715 = vset.pattern.permute.xlu0 0
        %4716 = vperm.xlu0 %4715, %v4590
        %v4717 = vpop.permute.xlu0 %4716
        %4720 = vset.pattern.permute.xlu0 0
        %4721 = vperm.xlu0 %4720, %v4591
        %v4722 = vpop.permute.xlu0 %4721
        %4725 = vset.pattern.permute.xlu0 0
        %4726 = vperm.xlu0 %4725, %v4592
        %v4727 = vpop.permute.xlu0 %4726
        %4730 = vset.pattern.permute.xlu0 0
        %4731 = vperm.xlu0 %4730, %v4593
        %v4732 = vpop.permute.xlu0 %4731
        %4735 = vset.pattern.permute.xlu0 0
        %4736 = vperm.xlu0 %4735, %v4594
        %v4737 = vpop.permute.xlu0 %4736
        %4740 = vset.pattern.permute.xlu0 0
        %4741 = vperm.xlu0 %4740, %v4595
        %v4742 = vpop.permute.xlu0 %4741
        %4745 = vset.pattern.permute.xlu0 0
        %4746 = vperm.xlu0 %4745, %v4596
        %v4747 = vpop.permute.xlu0 %4746
        %4750 = vset.pattern.permute.xlu0 0
        %4751 = vperm.xlu0 %4750, %v4597
        %v4752 = vpop.permute.xlu0 %4751
        %4755 = vset.pattern.permute.xlu0 0
        %4756 = vperm.xlu0 %4755, %v4598
        %v4757 = vpop.permute.xlu0 %4756
        %4760 = vset.pattern.permute.xlu0 0
        %4761 = vperm.xlu0 %4760, %v4599
        %v4762 = vpop.permute.xlu0 %4761
        %4765 = vset.pattern.permute.xlu0 0
        %4766 = vperm.xlu0 %4765, %v4600
        %v4767 = vpop.permute.xlu0 %4766
        %4770 = vset.pattern.permute.xlu0 0
        %4771 = vperm.xlu0 %4770, %v4601
        %v4772 = vpop.permute.xlu0 %4771
        %4775 = vset.pattern.permute.xlu0 0
        %4776 = vperm.xlu0 %4775, %v4602
        %v4777 = vpop.permute.xlu0 %4776
        %4780 = vset.pattern.permute.xlu0 0
        %4781 = vperm.xlu0 %4780, %v4603
        %v4782 = vpop.permute.xlu0 %4781
        %v4784 = vmul.f32 %v4532, %v4607
        %v4785 = vmul.f32 %v4533, %v4612
        %v4786 = vmul.f32 %v4534, %v4617
        %v4787 = vmul.f32 %v4535, %v4622
        %v4788 = vmul.f32 %v4536, %v4627
        %v4789 = vmul.f32 %v4537, %v4632
        %v4790 = vmul.f32 %v4538, %v4637
        %v4791 = vmul.f32 %v4539, %v4642
        %v4792 = vmul.f32 %v4540, %v4647
        %v4793 = vmul.f32 %v4541, %v4652
        %v4794 = vmul.f32 %v4542, %v4657
        %v4795 = vmul.f32 %v4543, %v4662
        %v4796 = vmul.f32 %v4544, %v4667
        %v4797 = vmul.f32 %v4545, %v4672
        %v4798 = vmul.f32 %v4546, %v4677
        %v4799 = vmul.f32 %v4547, %v4682
        %v4800 = vmul.f32 %v4548, %v4687
        %v4801 = vmul.f32 %v4549, %v4692
        %v4802 = vmul.f32 %v4550, %v4697
        %v4803 = vmul.f32 %v4551, %v4702
        %v4804 = vmul.f32 %v4552, %v4707
        %v4805 = vmul.f32 %v4553, %v4712
        %v4806 = vmul.f32 %v4554, %v4717
        %v4807 = vmul.f32 %v4555, %v4722
        %v4808 = vmul.f32 %v4556, %v4727
        %v4809 = vmul.f32 %v4557, %v4732
        %v4810 = vmul.f32 %v4558, %v4737
        %v4811 = vmul.f32 %v4559, %v4742
        %v4812 = vmul.f32 %v4560, %v4747
        %v4813 = vmul.f32 %v4561, %v4752
        %v4814 = vmul.f32 %v4562, %v4757
        %v4815 = vmul.f32 %v4563, %v4762
        %v4816 = vmul.f32 %v4564, %v4767
        %v4817 = vmul.f32 %v4565, %v4772
        %v4818 = vmul.f32 %v4566, %v4777
        %v4819 = vmul.f32 %v4567, %v4782
        %v4820 = vpack.c.bf16 %v4784, %v4784
        %v4821 = vpack.c.bf16 %v4785, %v4785
        %v4822 = vpack.c.bf16 %v4786, %v4786
        %v4823 = vpack.c.bf16 %v4787, %v4787
        %v4824 = vpack.c.bf16 %v4788, %v4788
        %v4825 = vpack.c.bf16 %v4789, %v4789
        %v4826 = vpack.c.bf16 %v4790, %v4790
        %v4827 = vpack.c.bf16 %v4791, %v4791
        %v4828 = vpack.c.bf16 %v4792, %v4792
        %v4829 = vpack.c.bf16 %v4793, %v4793
        %v4830 = vpack.c.bf16 %v4794, %v4794
        %v4831 = vpack.c.bf16 %v4795, %v4795
        %v4832 = vpack.c.bf16 %v4796, %v4796
        %v4833 = vpack.c.bf16 %v4797, %v4797
        %v4834 = vpack.c.bf16 %v4798, %v4798
        %v4835 = vpack.c.bf16 %v4799, %v4799
        %v4836 = vpack.c.bf16 %v4800, %v4800
        %v4837 = vpack.c.bf16 %v4801, %v4801
        %v4838 = vpack.c.bf16 %v4802, %v4802
        %v4839 = vpack.c.bf16 %v4803, %v4803
        %v4840 = vpack.c.bf16 %v4804, %v4804
        %v4841 = vpack.c.bf16 %v4805, %v4805
        %v4842 = vpack.c.bf16 %v4806, %v4806
        %v4843 = vpack.c.bf16 %v4807, %v4807
        %v4844 = vpack.c.bf16 %v4808, %v4808
        %v4845 = vpack.c.bf16 %v4809, %v4809
        %v4846 = vpack.c.bf16 %v4810, %v4810
        %v4847 = vpack.c.bf16 %v4811, %v4811
        %v4848 = vpack.c.bf16 %v4812, %v4812
        %v4849 = vpack.c.bf16 %v4813, %v4813
        %v4850 = vpack.c.bf16 %v4814, %v4814
        %v4851 = vpack.c.bf16 %v4815, %v4815
        %v4852 = vpack.c.bf16 %v4816, %v4816
        %v4853 = vpack.c.bf16 %v4817, %v4817
        %v4854 = vpack.c.bf16 %v4818, %v4818
        %v4855 = vpack.c.bf16 %v4819, %v4819
        %v4892 = vrot.slane %v4784, 1
        %v4893 = vrot.slane %v4785, 1
        %v4894 = vsel %vm1688, %v4892, %v4893
        %v4895 = vrot.slane %v4786, 1
        %v4896 = vsel %vm1688, %v4893, %v4895
        %v4897 = vrot.slane %v4787, 1
        %v4898 = vsel %vm1688, %v4895, %v4897
        %v4899 = vrot.slane %v4788, 1
        %v4900 = vsel %vm1688, %v4897, %v4899
        %v4901 = vrot.slane %v4789, 1
        %v4902 = vsel %vm1688, %v4899, %v4901
        %v4903 = vrot.slane %v4790, 1
        %v4904 = vsel %vm1688, %v4901, %v4903
        %v4905 = vrot.slane %v4791, 1
        %v4906 = vsel %vm1688, %v4903, %v4905
        %v4907 = vrot.slane %v4792, 1
        %v4908 = vsel %vm1688, %v4905, %v4907
        %v4909 = vrot.slane %v4793, 1
        %v4910 = vsel %vm1688, %v4907, %v4909
        %v4911 = vrot.slane %v4794, 1
        %v4912 = vsel %vm1688, %v4909, %v4911
        %v4913 = vrot.slane %v4795, 1
        %v4914 = vsel %vm1688, %v4911, %v4913
        %v4915 = vrot.slane %v4796, 1
        %v4916 = vsel %vm1688, %v4913, %v4915
        %v4917 = vrot.slane %v4797, 1
        %v4918 = vsel %vm1688, %v4915, %v4917
        %v4919 = vrot.slane %v4798, 1
        %v4920 = vsel %vm1688, %v4917, %v4919
        %v4921 = vrot.slane %v4799, 1
        %v4922 = vsel %vm1688, %v4919, %v4921
        %v4923 = vrot.slane %v4800, 1
        %v4924 = vsel %vm1688, %v4921, %v4923
        %v4925 = vrot.slane %v4801, 1
        %v4926 = vsel %vm1688, %v4923, %v4925
        %v4927 = vrot.slane %v4802, 1
        %v4928 = vsel %vm1688, %v4925, %v4927
        %v4929 = vrot.slane %v4803, 1
        %v4930 = vsel %vm1688, %v4927, %v4929
        %v4931 = vrot.slane %v4804, 1
        %v4932 = vsel %vm1688, %v4929, %v4931
        %v4933 = vrot.slane %v4805, 1
        %v4934 = vsel %vm1688, %v4931, %v4933
        %v4935 = vrot.slane %v4806, 1
        %v4936 = vsel %vm1688, %v4933, %v4935
        %v4937 = vrot.slane %v4807, 1
        %v4938 = vsel %vm1688, %v4935, %v4937
        %v4939 = vrot.slane %v4808, 1
        %v4940 = vsel %vm1688, %v4937, %v4939
        %v4941 = vrot.slane %v4809, 1
        %v4942 = vsel %vm1688, %v4939, %v4941
        %v4943 = vrot.slane %v4810, 1
        %v4944 = vsel %vm1688, %v4941, %v4943
        %v4945 = vrot.slane %v4811, 1
        %v4946 = vsel %vm1688, %v4943, %v4945
        %v4947 = vrot.slane %v4812, 1
        %v4948 = vsel %vm1688, %v4945, %v4947
        %v4949 = vrot.slane %v4813, 1
        %v4950 = vsel %vm1688, %v4947, %v4949
        %v4951 = vrot.slane %v4814, 1
        %v4952 = vsel %vm1688, %v4949, %v4951
        %v4953 = vrot.slane %v4815, 1
        %v4954 = vsel %vm1688, %v4951, %v4953
        %v4955 = vrot.slane %v4816, 1
        %v4956 = vsel %vm1688, %v4953, %v4955
        %v4957 = vrot.slane %v4817, 1
        %v4958 = vsel %vm1688, %v4955, %v4957
        %v4959 = vrot.slane %v4818, 1
        %v4960 = vsel %vm1688, %v4957, %v4959
        %v4961 = vrot.slane %v4819, 1
        %v4962 = vsel %vm1688, %v4959, %v4961
        %v5000 = vsel %vm1688, %v4961, %v4892
        %v5001 = vpack.c.bf16 %v4894, %v4894
        %v5002 = vpack.c.bf16 %v4896, %v4896
        %v5003 = vpack.c.bf16 %v4898, %v4898
        %v5004 = vpack.c.bf16 %v4900, %v4900
        %v5005 = vpack.c.bf16 %v4902, %v4902
        %v5006 = vpack.c.bf16 %v4904, %v4904
        %v5007 = vpack.c.bf16 %v4906, %v4906
        %v5008 = vpack.c.bf16 %v4908, %v4908
        %v5009 = vpack.c.bf16 %v4910, %v4910
        %v5010 = vpack.c.bf16 %v4912, %v4912
        %v5011 = vpack.c.bf16 %v4914, %v4914
        %v5012 = vpack.c.bf16 %v4916, %v4916
        %v5013 = vpack.c.bf16 %v4918, %v4918
        %v5014 = vpack.c.bf16 %v4920, %v4920
        %v5015 = vpack.c.bf16 %v4922, %v4922
        %v5016 = vpack.c.bf16 %v4924, %v4924
        %v5017 = vpack.c.bf16 %v4926, %v4926
        %v5018 = vpack.c.bf16 %v4928, %v4928
        %v5019 = vpack.c.bf16 %v4930, %v4930
        %v5020 = vpack.c.bf16 %v4932, %v4932
        %v5021 = vpack.c.bf16 %v4934, %v4934
        %v5022 = vpack.c.bf16 %v4936, %v4936
        %v5023 = vpack.c.bf16 %v4938, %v4938
        %v5024 = vpack.c.bf16 %v4940, %v4940
        %v5025 = vpack.c.bf16 %v4942, %v4942
        %v5026 = vpack.c.bf16 %v4944, %v4944
        %v5027 = vpack.c.bf16 %v4946, %v4946
        %v5028 = vpack.c.bf16 %v4948, %v4948
        %v5029 = vpack.c.bf16 %v4950, %v4950
        %v5030 = vpack.c.bf16 %v4952, %v4952
        %v5031 = vpack.c.bf16 %v4954, %v4954
        %v5032 = vpack.c.bf16 %v4956, %v4956
        %v5033 = vpack.c.bf16 %v4958, %v4958
        %v5034 = vpack.c.bf16 %v4960, %v4960
        %v5035 = vpack.c.bf16 %v4962, %v4962
        %v5036 = vpack.c.bf16 %v5000, %v5000
        %v5037 = vrot.slane %v4784, 2
        %v5038 = vrot.slane %v4785, 2
        %v5039 = vsel %vm786, %v5037, %v5038
        %v5040 = vrot.slane %v4786, 2
        %v5041 = vsel %vm786, %v5038, %v5040
        %v5042 = vrot.slane %v4787, 2
        %v5043 = vsel %vm786, %v5040, %v5042
        %v5044 = vrot.slane %v4788, 2
        %v5045 = vsel %vm786, %v5042, %v5044
        %v5046 = vrot.slane %v4789, 2
        %v5047 = vsel %vm786, %v5044, %v5046
        %v5048 = vrot.slane %v4790, 2
        %v5049 = vsel %vm786, %v5046, %v5048
        %v5050 = vrot.slane %v4791, 2
        %v5051 = vsel %vm786, %v5048, %v5050
        %v5052 = vrot.slane %v4792, 2
        %v5053 = vsel %vm786, %v5050, %v5052
        %v5054 = vrot.slane %v4793, 2
        %v5055 = vsel %vm786, %v5052, %v5054
        %v5056 = vrot.slane %v4794, 2
        %v5057 = vsel %vm786, %v5054, %v5056
        %v5058 = vrot.slane %v4795, 2
        %v5059 = vsel %vm786, %v5056, %v5058
        %v5060 = vrot.slane %v4796, 2
        %v5061 = vsel %vm786, %v5058, %v5060
        %v5062 = vrot.slane %v4797, 2
        %v5063 = vsel %vm786, %v5060, %v5062
        %v5064 = vrot.slane %v4798, 2
        %v5065 = vsel %vm786, %v5062, %v5064
        %v5066 = vrot.slane %v4799, 2
        %v5067 = vsel %vm786, %v5064, %v5066
        %v5068 = vrot.slane %v4800, 2
        %v5069 = vsel %vm786, %v5066, %v5068
        %v5070 = vrot.slane %v4801, 2
        %v5071 = vsel %vm786, %v5068, %v5070
        %v5072 = vrot.slane %v4802, 2
        %v5073 = vsel %vm786, %v5070, %v5072
        %v5074 = vrot.slane %v4803, 2
        %v5075 = vsel %vm786, %v5072, %v5074
        %v5076 = vrot.slane %v4804, 2
        %v5077 = vsel %vm786, %v5074, %v5076
        %v5078 = vrot.slane %v4805, 2
        %v5079 = vsel %vm786, %v5076, %v5078
        %v5080 = vrot.slane %v4806, 2
        %v5081 = vsel %vm786, %v5078, %v5080
        %v5082 = vrot.slane %v4807, 2
        %v5083 = vsel %vm786, %v5080, %v5082
        %v5084 = vrot.slane %v4808, 2
        %v5085 = vsel %vm786, %v5082, %v5084
        %v5086 = vrot.slane %v4809, 2
        %v5087 = vsel %vm786, %v5084, %v5086
        %v5088 = vrot.slane %v4810, 2
        %v5089 = vsel %vm786, %v5086, %v5088
        %v5090 = vrot.slane %v4811, 2
        %v5091 = vsel %vm786, %v5088, %v5090
        %v5092 = vrot.slane %v4812, 2
        %v5093 = vsel %vm786, %v5090, %v5092
        %v5094 = vrot.slane %v4813, 2
        %v5095 = vsel %vm786, %v5092, %v5094
        %v5096 = vrot.slane %v4814, 2
        %v5097 = vsel %vm786, %v5094, %v5096
        %v5098 = vrot.slane %v4815, 2
        %v5099 = vsel %vm786, %v5096, %v5098
        %v5100 = vrot.slane %v4816, 2
        %v5101 = vsel %vm786, %v5098, %v5100
        %v5102 = vrot.slane %v4817, 2
        %v5103 = vsel %vm786, %v5100, %v5102
        %v5104 = vrot.slane %v4818, 2
        %v5105 = vsel %vm786, %v5102, %v5104
        %v5106 = vrot.slane %v4819, 2
        %v5107 = vsel %vm786, %v5104, %v5106
        %v5145 = vsel %vm786, %v5106, %v5037
        %v5146 = vpack.c.bf16 %v5039, %v5039
        %v5147 = vpack.c.bf16 %v5041, %v5041
        %v5148 = vpack.c.bf16 %v5043, %v5043
        %v5149 = vpack.c.bf16 %v5045, %v5045
        %v5150 = vpack.c.bf16 %v5047, %v5047
        %v5151 = vpack.c.bf16 %v5049, %v5049
        %v5152 = vpack.c.bf16 %v5051, %v5051
        %v5153 = vpack.c.bf16 %v5053, %v5053
        %v5154 = vpack.c.bf16 %v5055, %v5055
        %v5155 = vpack.c.bf16 %v5057, %v5057
        %v5156 = vpack.c.bf16 %v5059, %v5059
        %v5157 = vpack.c.bf16 %v5061, %v5061
        %v5158 = vpack.c.bf16 %v5063, %v5063
        %v5159 = vpack.c.bf16 %v5065, %v5065
        %v5160 = vpack.c.bf16 %v5067, %v5067
        %v5161 = vpack.c.bf16 %v5069, %v5069
        %v5162 = vpack.c.bf16 %v5071, %v5071
        %v5163 = vpack.c.bf16 %v5073, %v5073
        %v5164 = vpack.c.bf16 %v5075, %v5075
        %v5165 = vpack.c.bf16 %v5077, %v5077
        %v5166 = vpack.c.bf16 %v5079, %v5079
        %v5167 = vpack.c.bf16 %v5081, %v5081
        %v5168 = vpack.c.bf16 %v5083, %v5083
        %v5169 = vpack.c.bf16 %v5085, %v5085
        %v5170 = vpack.c.bf16 %v5087, %v5087
        %v5171 = vpack.c.bf16 %v5089, %v5089
        %v5172 = vpack.c.bf16 %v5091, %v5091
        %v5173 = vpack.c.bf16 %v5093, %v5093
        %v5174 = vpack.c.bf16 %v5095, %v5095
        %v5175 = vpack.c.bf16 %v5097, %v5097
        %v5176 = vpack.c.bf16 %v5099, %v5099
        %v5177 = vpack.c.bf16 %v5101, %v5101
        %v5178 = vpack.c.bf16 %v5103, %v5103
        %v5179 = vpack.c.bf16 %v5105, %v5105
        %v5180 = vpack.c.bf16 %v5107, %v5107
        %v5181 = vpack.c.bf16 %v5145, %v5145
        %v5218 = vunpack.c.l.b16 %v4820
        %v5219 = vunpack.c.l.b16 %v4821
        %v5220 = vunpack.c.l.b16 %v4822
        %v5221 = vunpack.c.l.b16 %v4823
        %v5222 = vunpack.c.l.b16 %v4824
        %v5223 = vunpack.c.l.b16 %v4825
        %v5224 = vunpack.c.l.b16 %v4826
        %v5225 = vunpack.c.l.b16 %v4827
        %v5226 = vunpack.c.l.b16 %v4828
        %v5227 = vunpack.c.l.b16 %v4829
        %v5228 = vunpack.c.l.b16 %v4830
        %v5229 = vunpack.c.l.b16 %v4831
        %v5230 = vunpack.c.l.b16 %v4832
        %v5231 = vunpack.c.l.b16 %v4833
        %v5232 = vunpack.c.l.b16 %v4834
        %v5233 = vunpack.c.l.b16 %v4835
        %v5234 = vunpack.c.l.b16 %v4836
        %v5235 = vunpack.c.l.b16 %v4837
        %v5236 = vunpack.c.l.b16 %v4838
        %v5237 = vunpack.c.l.b16 %v4839
        %v5238 = vunpack.c.l.b16 %v4840
        %v5239 = vunpack.c.l.b16 %v4841
        %v5240 = vunpack.c.l.b16 %v4842
        %v5241 = vunpack.c.l.b16 %v4843
        %v5242 = vunpack.c.l.b16 %v4844
        %v5243 = vunpack.c.l.b16 %v4845
        %v5244 = vunpack.c.l.b16 %v4846
        %v5245 = vunpack.c.l.b16 %v4847
        %v5246 = vunpack.c.l.b16 %v4848
        %v5247 = vunpack.c.l.b16 %v4849
        %v5248 = vunpack.c.l.b16 %v4850
        %v5249 = vunpack.c.l.b16 %v4851
        %v5250 = vunpack.c.l.b16 %v4852
        %v5251 = vunpack.c.l.b16 %v4853
        %v5252 = vunpack.c.l.b16 %v4854
        %v5253 = vunpack.c.l.b16 %v4855
        %v5254 = vpack.c.b16 %v5219, %v5218
        %v5255 = vpack.c.b16 %v5221, %v5220
        %v5256 = vpack.c.b16 %v5223, %v5222
        %v5257 = vpack.c.b16 %v5225, %v5224
        %v5258 = vpack.c.b16 %v5227, %v5226
        %v5259 = vpack.c.b16 %v5229, %v5228
        %v5260 = vpack.c.b16 %v5231, %v5230
        %v5261 = vpack.c.b16 %v5233, %v5232
        %v5262 = vpack.c.b16 %v5235, %v5234
        %v5263 = vpack.c.b16 %v5237, %v5236
        %v5264 = vpack.c.b16 %v5239, %v5238
        %v5265 = vpack.c.b16 %v5241, %v5240
        %v5266 = vpack.c.b16 %v5243, %v5242
        %v5267 = vpack.c.b16 %v5245, %v5244
        %v5268 = vpack.c.b16 %v5247, %v5246
        %v5269 = vpack.c.b16 %v5249, %v5248
        %v5270 = vpack.c.b16 %v5251, %v5250
        %v5271 = vpack.c.b16 %v5253, %v5252
        %v5326 = vunpack.c.l.b16 %v5001
        %v5327 = vunpack.c.l.b16 %v5002
        %v5328 = vunpack.c.l.b16 %v5003
        %v5329 = vunpack.c.l.b16 %v5004
        %v5330 = vunpack.c.l.b16 %v5005
        %v5331 = vunpack.c.l.b16 %v5006
        %v5332 = vunpack.c.l.b16 %v5007
        %v5333 = vunpack.c.l.b16 %v5008
        %v5334 = vunpack.c.l.b16 %v5009
        %v5335 = vunpack.c.l.b16 %v5010
        %v5336 = vunpack.c.l.b16 %v5011
        %v5337 = vunpack.c.l.b16 %v5012
        %v5338 = vunpack.c.l.b16 %v5013
        %v5339 = vunpack.c.l.b16 %v5014
        %v5340 = vunpack.c.l.b16 %v5015
        %v5341 = vunpack.c.l.b16 %v5016
        %v5342 = vunpack.c.l.b16 %v5017
        %v5343 = vunpack.c.l.b16 %v5018
        %v5344 = vunpack.c.l.b16 %v5019
        %v5345 = vunpack.c.l.b16 %v5020
        %v5346 = vunpack.c.l.b16 %v5021
        %v5347 = vunpack.c.l.b16 %v5022
        %v5348 = vunpack.c.l.b16 %v5023
        %v5349 = vunpack.c.l.b16 %v5024
        %v5350 = vunpack.c.l.b16 %v5025
        %v5351 = vunpack.c.l.b16 %v5026
        %v5352 = vunpack.c.l.b16 %v5027
        %v5353 = vunpack.c.l.b16 %v5028
        %v5354 = vunpack.c.l.b16 %v5029
        %v5355 = vunpack.c.l.b16 %v5030
        %v5356 = vunpack.c.l.b16 %v5031
        %v5357 = vunpack.c.l.b16 %v5032
        %v5358 = vunpack.c.l.b16 %v5033
        %v5359 = vunpack.c.l.b16 %v5034
        %v5360 = vunpack.c.l.b16 %v5035
        %v5361 = vunpack.c.l.b16 %v5036
        %v5362 = vpack.c.b16 %v5327, %v5326
        %v5363 = vpack.c.b16 %v5329, %v5328
        %v5364 = vpack.c.b16 %v5331, %v5330
        %v5365 = vpack.c.b16 %v5333, %v5332
        %v5366 = vpack.c.b16 %v5335, %v5334
        %v5367 = vpack.c.b16 %v5337, %v5336
        %v5368 = vpack.c.b16 %v5339, %v5338
        %v5369 = vpack.c.b16 %v5341, %v5340
        %v5370 = vpack.c.b16 %v5343, %v5342
        %v5371 = vpack.c.b16 %v5345, %v5344
        %v5372 = vpack.c.b16 %v5347, %v5346
        %v5373 = vpack.c.b16 %v5349, %v5348
        %v5374 = vpack.c.b16 %v5351, %v5350
        %v5375 = vpack.c.b16 %v5353, %v5352
        %v5376 = vpack.c.b16 %v5355, %v5354
        %v5377 = vpack.c.b16 %v5357, %v5356
        %v5378 = vpack.c.b16 %v5359, %v5358
        %v5379 = vpack.c.b16 %v5361, %v5360
        %v5434 = vunpack.c.l.b16 %v5146
        %v5435 = vunpack.c.l.b16 %v5147
        %v5436 = vunpack.c.l.b16 %v5148
        %v5437 = vunpack.c.l.b16 %v5149
        %v5438 = vunpack.c.l.b16 %v5150
        %v5439 = vunpack.c.l.b16 %v5151
        %v5440 = vunpack.c.l.b16 %v5152
        %v5441 = vunpack.c.l.b16 %v5153
        %v5442 = vunpack.c.l.b16 %v5154
        %v5443 = vunpack.c.l.b16 %v5155
        %v5444 = vunpack.c.l.b16 %v5156
        %v5445 = vunpack.c.l.b16 %v5157
        %v5446 = vunpack.c.l.b16 %v5158
        %v5447 = vunpack.c.l.b16 %v5159
        %v5448 = vunpack.c.l.b16 %v5160
        %v5449 = vunpack.c.l.b16 %v5161
        %v5450 = vunpack.c.l.b16 %v5162
        %v5451 = vunpack.c.l.b16 %v5163
        %v5452 = vunpack.c.l.b16 %v5164
        %v5453 = vunpack.c.l.b16 %v5165
        %v5454 = vunpack.c.l.b16 %v5166
        %v5455 = vunpack.c.l.b16 %v5167
        %v5456 = vunpack.c.l.b16 %v5168
        %v5457 = vunpack.c.l.b16 %v5169
        %v5458 = vunpack.c.l.b16 %v5170
        %v5459 = vunpack.c.l.b16 %v5171
        %v5460 = vunpack.c.l.b16 %v5172
        %v5461 = vunpack.c.l.b16 %v5173
        %v5462 = vunpack.c.l.b16 %v5174
        %v5463 = vunpack.c.l.b16 %v5175
        %v5464 = vunpack.c.l.b16 %v5176
        %v5465 = vunpack.c.l.b16 %v5177
        %v5466 = vunpack.c.l.b16 %v5178
        %v5467 = vunpack.c.l.b16 %v5179
        %v5468 = vunpack.c.l.b16 %v5180
        %v5469 = vunpack.c.l.b16 %v5181
        %v5470 = vpack.c.b16 %v5435, %v5434
        %v5471 = vpack.c.b16 %v5437, %v5436
        %v5472 = vpack.c.b16 %v5439, %v5438
        %v5473 = vpack.c.b16 %v5441, %v5440
        %v5474 = vpack.c.b16 %v5443, %v5442
        %v5475 = vpack.c.b16 %v5445, %v5444
        %v5476 = vpack.c.b16 %v5447, %v5446
        %v5477 = vpack.c.b16 %v5449, %v5448
        %v5478 = vpack.c.b16 %v5451, %v5450
        %v5479 = vpack.c.b16 %v5453, %v5452
        %v5480 = vpack.c.b16 %v5455, %v5454
        %v5481 = vpack.c.b16 %v5457, %v5456
        %v5482 = vpack.c.b16 %v5459, %v5458
        %v5483 = vpack.c.b16 %v5461, %v5460
        %v5484 = vpack.c.b16 %v5463, %v5462
        %v5485 = vpack.c.b16 %v5465, %v5464
        %v5486 = vpack.c.b16 %v5467, %v5466
        %v5487 = vpack.c.b16 %v5469, %v5468
        %v5506 = vld [vmem:[#allocation7] sm:$0xf]
        %v5507 = vld [vmem:[#allocation7 + $0x4] sm:$0xf]
        %v5508 = vld [vmem:[#allocation7 + $0x8] sm:$0xf]
        %v5509 = vld [vmem:[#allocation7 + $0xc] sm:$0xf]
        %v5510 = vld [vmem:[#allocation7 + $0x10] sm:$0xf]
        %v5511 = vld [vmem:[#allocation7 + $0x14] sm:$0xf]
        %v5512 = vld [vmem:[#allocation7 + $0x18] sm:$0xf]
        %v5513 = vld [vmem:[#allocation7 + $0x1c] sm:$0xf]
        %v5514 = vld [vmem:[#allocation7 + $0x20] sm:$0xf]
        %v5515 = vld [vmem:[#allocation7 + $0x24] sm:$0xf]
        %v5516 = vld [vmem:[#allocation7 + $0x28] sm:$0xf]
        %v5517 = vld [vmem:[#allocation7 + $0x2c] sm:$0xf]
        %v5518 = vld [vmem:[#allocation7 + $0x30] sm:$0xf]
        %v5519 = vld [vmem:[#allocation7 + $0x34] sm:$0xf]
        %v5520 = vld [vmem:[#allocation7 + $0x38] sm:$0xf]
        %v5521 = vld [vmem:[#allocation7 + $0x3c] sm:$0xf]
        %v5522 = vld [vmem:[#allocation7 + $0x40] sm:$0xf]
        %v5523 = vld [vmem:[#allocation7 + $0x44] sm:$0xf]
        %v5524 = vld [vmem:[#allocation7 + $0x48] sm:$0xf]
        %v5525 = vld [vmem:[#allocation7 + $0x4c] sm:$0xf]
        %v5526 = vld [vmem:[#allocation7 + $0x50] sm:$0xf]
        %v5527 = vld [vmem:[#allocation7 + $0x54] sm:$0xf]
        %v5528 = vld [vmem:[#allocation7 + $0x58] sm:$0xf]
        %v5529 = vld [vmem:[#allocation7 + $0x5c] sm:$0xf]
        %v5530 = vld [vmem:[#allocation7 + $0x60] sm:$0xf]
        %v5531 = vld [vmem:[#allocation7 + $0x64] sm:$0xf]
        %v5532 = vld [vmem:[#allocation7 + $0x68] sm:$0xf]
        %v5533 = vld [vmem:[#allocation7 + $0x6c] sm:$0xf]
        %v5534 = vld [vmem:[#allocation7 + $0x70] sm:$0xf]
        %v5535 = vld [vmem:[#allocation7 + $0x74] sm:$0xf]
        %v5536 = vld [vmem:[#allocation7 + $0x78] sm:$0xf]
        %v5537 = vld [vmem:[#allocation7 + $0x7c] sm:$0xf]
        %v5538 = vld [vmem:[#allocation7 + $0x80] sm:$0xf]
        %v5539 = vld [vmem:[#allocation7 + $0x84] sm:$0xf]
        %v5540 = vld [vmem:[#allocation7 + $0x88] sm:$0xf]
        %v5541 = vld [vmem:[#allocation7 + $0x8c] sm:$0xf]
        %v5542 = vld [vmem:[#allocation7 + $0x90] sm:$0xf]
        %v5543 = vld [vmem:[#allocation7 + $0x94] sm:$0xf]
        %v5544 = vld [vmem:[#allocation7 + $0x98] sm:$0xf]
        %v5545 = vld [vmem:[#allocation7 + $0x9c] sm:$0xf]
        %v5546 = vld [vmem:[#allocation7 + $0xa0] sm:$0xf]
        %v5547 = vld [vmem:[#allocation7 + $0xa4] sm:$0xf]
        %v5548 = vld [vmem:[#allocation7 + $0xa8] sm:$0xf]
        %v5549 = vld [vmem:[#allocation7 + $0xac] sm:$0xf]
        %v5550 = vld [vmem:[#allocation7 + $0xb0] sm:$0xf]
        %v5551 = vld [vmem:[#allocation7 + $0xb4] sm:$0xf]
        %v5552 = vld [vmem:[#allocation7 + $0xb8] sm:$0xf]
        %v5553 = vld [vmem:[#allocation7 + $0xbc] sm:$0xf]
        %s5554 = scalar_lea.vmem [#allocation7], 192
        %v5555 = vld [vmem:[%s5554] sm:$0xf]
        %v5556 = vld [vmem:[%s5554 + $0x4] sm:$0xf]
        %v5557 = vld [vmem:[%s5554 + $0x8] sm:$0xf]
        %v5558 = vld [vmem:[%s5554 + $0xc] sm:$0xf]
        %v5559 = vld [vmem:[%s5554 + $0x10] sm:$0xf]
        %v5560 = vld [vmem:[%s5554 + $0x14] sm:$0xf]
        %v5561 = vld [vmem:[%s5554 + $0x18] sm:$0xf]
        %v5562 = vld [vmem:[%s5554 + $0x1c] sm:$0xf]
        %v5563 = vld [vmem:[%s5554 + $0x20] sm:$0xf]
        %v5564 = vld [vmem:[%s5554 + $0x24] sm:$0xf]
        %v5565 = vld [vmem:[%s5554 + $0x28] sm:$0xf]
        %v5566 = vld [vmem:[%s5554 + $0x2c] sm:$0xf]
        %v5567 = vld [vmem:[%s5554 + $0x30] sm:$0xf]
        %v5568 = vld [vmem:[%s5554 + $0x34] sm:$0xf]
        %v5569 = vld [vmem:[%s5554 + $0x38] sm:$0xf]
        %v5570 = vld [vmem:[%s5554 + $0x3c] sm:$0xf]
        %v5571 = vld [vmem:[%s5554 + $0x40] sm:$0xf]
        %v5572 = vld [vmem:[%s5554 + $0x44] sm:$0xf]
        %v5573 = vld [vmem:[%s5554 + $0x48] sm:$0xf]
        %v5574 = vld [vmem:[%s5554 + $0x4c] sm:$0xf]
        %v5575 = vld [vmem:[%s5554 + $0x50] sm:$0xf]
        %v5576 = vld [vmem:[%s5554 + $0x54] sm:$0xf]
        %v5577 = vld [vmem:[%s5554 + $0x58] sm:$0xf]
        %v5578 = vld [vmem:[%s5554 + $0x5c] sm:$0xf]
        %v5579 = vld [vmem:[%s5554 + $0x60] sm:$0xf]
        %v5580 = vld [vmem:[%s5554 + $0x64] sm:$0xf]
        %v5581 = vld [vmem:[%s5554 + $0x68] sm:$0xf]
        %v5582 = vld [vmem:[%s5554 + $0x6c] sm:$0xf]
        %v5583 = vld [vmem:[%s5554 + $0x70] sm:$0xf]
        %v5584 = vld [vmem:[%s5554 + $0x74] sm:$0xf]
        %v5585 = vld [vmem:[%s5554 + $0x78] sm:$0xf]
        %v5586 = vld [vmem:[%s5554 + $0x7c] sm:$0xf]
        %v5587 = vld [vmem:[%s5554 + $0x80] sm:$0xf]
        %v5588 = vld [vmem:[%s5554 + $0x84] sm:$0xf]
        %v5589 = vld [vmem:[%s5554 + $0x88] sm:$0xf]
        %v5590 = vld [vmem:[%s5554 + $0x8c] sm:$0xf]
        %v5591 = vld [vmem:[%s5554 + $0x90] sm:$0xf]
        %v5592 = vld [vmem:[%s5554 + $0x94] sm:$0xf]
        %v5593 = vld [vmem:[%s5554 + $0x98] sm:$0xf]
        %v5594 = vld [vmem:[%s5554 + $0x9c] sm:$0xf]
        %v5595 = vld [vmem:[%s5554 + $0xa0] sm:$0xf]
        %v5596 = vld [vmem:[%s5554 + $0xa4] sm:$0xf]
        %v5597 = vld [vmem:[%s5554 + $0xa8] sm:$0xf]
        %v5598 = vld [vmem:[%s5554 + $0xac] sm:$0xf]
        %v5599 = vld [vmem:[%s5554 + $0xb0] sm:$0xf]
        %v5600 = vld [vmem:[%s5554 + $0xb4] sm:$0xf]
        %v5601 = vld [vmem:[%s5554 + $0xb8] sm:$0xf]
        %v5602 = vld [vmem:[%s5554 + $0xbc] sm:$0xf]
        %v5651 = vunpack.c.l.b16 %v5555
        %v5652 = vunpack.c.l.b16 %v5556
        %v5653 = vunpack.c.l.b16 %v5557
        %v5654 = vunpack.c.l.b16 %v5558
        %v5655 = vunpack.c.l.b16 %v5559
        %v5656 = vunpack.c.l.b16 %v5560
        %v5657 = vunpack.c.l.b16 %v5561
        %v5658 = vunpack.c.l.b16 %v5562
        %v5659 = vunpack.c.l.b16 %v5563
        %v5660 = vunpack.c.l.b16 %v5564
        %v5661 = vunpack.c.l.b16 %v5565
        %v5662 = vunpack.c.l.b16 %v5566
        %v5663 = vunpack.c.l.b16 %v5567
        %v5664 = vunpack.c.l.b16 %v5568
        %v5665 = vunpack.c.l.b16 %v5569
        %v5666 = vunpack.c.l.b16 %v5570
        %v5667 = vunpack.c.l.b16 %v5571
        %v5668 = vunpack.c.l.b16 %v5572
        %v5669 = vunpack.c.l.b16 %v5573
        %v5670 = vunpack.c.l.b16 %v5574
        %v5671 = vunpack.c.l.b16 %v5575
        %v5672 = vunpack.c.l.b16 %v5576
        %v5673 = vunpack.c.l.b16 %v5577
        %v5674 = vunpack.c.l.b16 %v5578
        %v5675 = vunpack.c.l.b16 %v5579
        %v5676 = vunpack.c.l.b16 %v5580
        %v5677 = vunpack.c.l.b16 %v5581
        %v5678 = vunpack.c.l.b16 %v5582
        %v5679 = vunpack.c.l.b16 %v5583
        %v5680 = vunpack.c.l.b16 %v5584
        %v5681 = vunpack.c.l.b16 %v5585
        %v5682 = vunpack.c.l.b16 %v5586
        %v5683 = vunpack.c.l.b16 %v5587
        %v5684 = vunpack.c.l.b16 %v5588
        %v5685 = vunpack.c.l.b16 %v5589
        %v5686 = vunpack.c.l.b16 %v5590
        %v5687 = vunpack.c.l.b16 %v5591
        %v5688 = vunpack.c.l.b16 %v5592
        %v5689 = vunpack.c.l.b16 %v5593
        %v5690 = vunpack.c.l.b16 %v5594
        %v5691 = vunpack.c.l.b16 %v5595
        %v5692 = vunpack.c.l.b16 %v5596
        %v5693 = vunpack.c.l.b16 %v5597
        %v5694 = vunpack.c.l.b16 %v5598
        %v5695 = vunpack.c.l.b16 %v5599
        %v5696 = vunpack.c.l.b16 %v5600
        %v5697 = vunpack.c.l.b16 %v5601
        %v5698 = vunpack.c.l.b16 %v5602
        %v5699 = vpack.c.b16 %v5652, %v5651
        %v5700 = vpack.c.b16 %v5654, %v5653
        %v5701 = vpack.c.b16 %v5656, %v5655
        %v5702 = vpack.c.b16 %v5658, %v5657
        %v5703 = vpack.c.b16 %v5660, %v5659
        %v5704 = vpack.c.b16 %v5662, %v5661
        %v5705 = vpack.c.b16 %v5664, %v5663
        %v5706 = vpack.c.b16 %v5666, %v5665
        %v5707 = vpack.c.b16 %v5668, %v5667
        %v5708 = vpack.c.b16 %v5670, %v5669
        %v5709 = vpack.c.b16 %v5672, %v5671
        %v5710 = vpack.c.b16 %v5674, %v5673
        %v5711 = vpack.c.b16 %v5676, %v5675
        %v5712 = vpack.c.b16 %v5678, %v5677
        %v5713 = vpack.c.b16 %v5680, %v5679
        %v5714 = vpack.c.b16 %v5682, %v5681
        %v5715 = vpack.c.b16 %v5684, %v5683
        %v5716 = vpack.c.b16 %v5686, %v5685
        %v5717 = vpack.c.b16 %v5688, %v5687
        %v5718 = vpack.c.b16 %v5690, %v5689
        %v5719 = vpack.c.b16 %v5692, %v5691
        %v5720 = vpack.c.b16 %v5694, %v5693
        %v5721 = vpack.c.b16 %v5696, %v5695
        %v5722 = vpack.c.b16 %v5698, %v5697
        %5747 = vmatpush.bf16.msra.mxu0 %v5706
        %5748 = vmatpush.bf16.msra.mxu0 %v5705
        %5749 = vmatpush.bf16.msra.mxu0 %v5704
        %5750 = vmatpush.bf16.msra.mxu0 %v5703
        %5751 = vmatpush.bf16.msra.mxu0 %v5702
        %5752 = vmatpush.bf16.msra.mxu0 %v5701
        %5753 = vmatpush.bf16.msra.mxu0 %v5700
        %5754 = vmatpush.bf16.msra.mxu0 %v5699
        %5755 = vmatmul.bf16.gmra.mxu0 %v5254
        %v5756 = vpop.f32.mrf.mxu0
        %v5757 = vpop.f32.mrf.mxu0
        %5758 = vmatmul.bf16.gmra.mxu0 %v5255
        %v5759 = vpop.f32.mrf.mxu0
        %v5760 = vpop.f32.mrf.mxu0
        %v5761 = vadd.f32 0.0, %v5760
        %5762 = vmatmul.bf16.gmra.mxu0 %v5256
        %v5763 = vpop.f32.mrf.mxu0
        %v5764 = vadd.f32 0.0, %v5763
        %v5765 = vpop.f32.mrf.mxu0
        %v5766 = vadd.f32 0.0, %v5765
        %5767 = vmatmul.bf16.gmra.mxu0 %v5257
        %v5768 = vpop.f32.mrf.mxu0
        %v5769 = vadd.f32 0.0, %v5768
        %v5770 = vpop.f32.mrf.mxu0
        %v5771 = vadd.f32 0.0, %v5770
        %5772 = vmatmul.bf16.gmra.mxu0 %v5258
        %v5773 = vpop.f32.mrf.mxu0
        %v5774 = vadd.f32 0.0, %v5773
        %v5775 = vpop.f32.mrf.mxu0
        %v5776 = vadd.f32 0.0, %v5775
        %5777 = vmatmul.bf16.gmra.mxu0 %v5259
        %v5778 = vpop.f32.mrf.mxu0
        %v5779 = vadd.f32 0.0, %v5778
        %v5780 = vpop.f32.mrf.mxu0
        %v5781 = vadd.f32 0.0, %v5780
        %5782 = vmatmul.bf16.gmra.mxu0 %v5260
        %v5783 = vpop.f32.mrf.mxu0
        %v5784 = vadd.f32 0.0, %v5783
        %v5785 = vpop.f32.mrf.mxu0
        %v5786 = vadd.f32 0.0, %v5785
        %5787 = vmatmul.bf16.gmra.mxu0 %v5261
        %v5788 = vpop.f32.mrf.mxu0
        %v5789 = vadd.f32 0.0, %v5788
        %v5790 = vpop.f32.mrf.mxu0
        %v5791 = vadd.f32 0.0, %v5790
        %5792 = vmatmul.bf16.gmra.mxu0 %v5262
        %v5793 = vpop.f32.mrf.mxu0
        %v5794 = vadd.f32 0.0, %v5793
        %v5795 = vpop.f32.mrf.mxu0
        %v5796 = vadd.f32 0.0, %v5795
        %5797 = vmatmul.bf16.gmra.mxu0 %v5263
        %v5798 = vpop.f32.mrf.mxu0
        %v5799 = vadd.f32 0.0, %v5798
        %v5800 = vpop.f32.mrf.mxu0
        %v5801 = vadd.f32 0.0, %v5800
        %5802 = vmatmul.bf16.gmra.mxu0 %v5264
        %v5803 = vpop.f32.mrf.mxu0
        %v5804 = vadd.f32 0.0, %v5803
        %v5805 = vpop.f32.mrf.mxu0
        %v5806 = vadd.f32 0.0, %v5805
        %5807 = vmatmul.bf16.gmra.mxu0 %v5265
        %v5808 = vpop.f32.mrf.mxu0
        %v5809 = vadd.f32 0.0, %v5808
        %v5810 = vpop.f32.mrf.mxu0
        %v5811 = vadd.f32 0.0, %v5810
        %5812 = vmatmul.bf16.gmra.mxu0 %v5266
        %v5813 = vpop.f32.mrf.mxu0
        %v5814 = vadd.f32 0.0, %v5813
        %v5815 = vpop.f32.mrf.mxu0
        %v5816 = vadd.f32 0.0, %v5815
        %5817 = vmatmul.bf16.gmra.mxu0 %v5267
        %v5818 = vpop.f32.mrf.mxu0
        %v5819 = vadd.f32 0.0, %v5818
        %v5820 = vpop.f32.mrf.mxu0
        %5821 = vmatmul.bf16.gmra.mxu0 %v5268
        %v5822 = vpop.f32.mrf.mxu0
        %v5823 = vpop.f32.mrf.mxu0
        %5824 = vmatmul.bf16.gmra.mxu0 %v5269
        %v5825 = vpop.f32.mrf.mxu0
        %v5826 = vpop.f32.mrf.mxu0
        %5827 = vmatmul.bf16.gmra.mxu0 %v5270
        %v5828 = vpop.f32.mrf.mxu0
        %v5829 = vpop.f32.mrf.mxu0
        %5830 = vmatmul.bf16.gmra.mxu0 %v5271
        %v5831 = vpop.f32.mrf.mxu0
        %v5832 = vpop.f32.mrf.mxu0
        %5833 = vdwg.mxu0
        %5834 = vmatpush.bf16.msra.mxu0 %v5714
        %5835 = vmatpush.bf16.msra.mxu0 %v5713
        %5836 = vmatpush.bf16.msra.mxu0 %v5712
        %5837 = vmatpush.bf16.msra.mxu0 %v5711
        %5838 = vmatpush.bf16.msra.mxu0 %v5710
        %5839 = vmatpush.bf16.msra.mxu0 %v5709
        %5840 = vmatpush.bf16.msra.mxu0 %v5708
        %5841 = vmatpush.bf16.msra.mxu0 %v5707
        %5842 = vmatmul.bf16.gmra.mxu0 %v5362
        %v5843 = vpop.f32.mrf.mxu0
        %v5844 = vpop.f32.mrf.mxu0
        %5845 = vmatmul.bf16.gmra.mxu0 %v5363
        %v5846 = vpop.f32.mrf.mxu0
        %v5847 = vpop.f32.mrf.mxu0
        %v5848 = vadd.f32 %v5761, %v5847
        %5849 = vmatmul.bf16.gmra.mxu0 %v5364
        %v5850 = vpop.f32.mrf.mxu0
        %v5851 = vadd.f32 %v5764, %v5850
        %v5852 = vpop.f32.mrf.mxu0
        %v5853 = vadd.f32 %v5766, %v5852
        %5854 = vmatmul.bf16.gmra.mxu0 %v5365
        %v5855 = vpop.f32.mrf.mxu0
        %v5856 = vadd.f32 %v5769, %v5855
        %v5857 = vpop.f32.mrf.mxu0
        %v5858 = vadd.f32 %v5771, %v5857
        %5859 = vmatmul.bf16.gmra.mxu0 %v5366
        %v5860 = vpop.f32.mrf.mxu0
        %v5861 = vadd.f32 %v5774, %v5860
        %v5862 = vpop.f32.mrf.mxu0
        %v5863 = vadd.f32 %v5776, %v5862
        %5864 = vmatmul.bf16.gmra.mxu0 %v5367
        %v5865 = vpop.f32.mrf.mxu0
        %v5866 = vadd.f32 %v5779, %v5865
        %v5867 = vpop.f32.mrf.mxu0
        %v5868 = vadd.f32 %v5781, %v5867
        %5869 = vmatmul.bf16.gmra.mxu0 %v5368
        %v5870 = vpop.f32.mrf.mxu0
        %v5871 = vadd.f32 %v5784, %v5870
        %v5872 = vpop.f32.mrf.mxu0
        %v5873 = vadd.f32 %v5786, %v5872
        %5874 = vmatmul.bf16.gmra.mxu0 %v5369
        %v5875 = vpop.f32.mrf.mxu0
        %v5876 = vadd.f32 %v5789, %v5875
        %v5877 = vpop.f32.mrf.mxu0
        %v5878 = vadd.f32 %v5791, %v5877
        %5879 = vmatmul.bf16.gmra.mxu0 %v5370
        %v5880 = vpop.f32.mrf.mxu0
        %v5881 = vadd.f32 %v5794, %v5880
        %v5882 = vpop.f32.mrf.mxu0
        %v5883 = vadd.f32 %v5796, %v5882
        %5884 = vmatmul.bf16.gmra.mxu0 %v5371
        %v5885 = vpop.f32.mrf.mxu0
        %v5886 = vadd.f32 %v5799, %v5885
        %v5887 = vpop.f32.mrf.mxu0
        %v5888 = vadd.f32 %v5801, %v5887
        %5889 = vmatmul.bf16.gmra.mxu0 %v5372
        %v5890 = vpop.f32.mrf.mxu0
        %v5891 = vadd.f32 %v5804, %v5890
        %v5892 = vpop.f32.mrf.mxu0
        %v5893 = vadd.f32 %v5806, %v5892
        %5894 = vmatmul.bf16.gmra.mxu0 %v5373
        %v5895 = vpop.f32.mrf.mxu0
        %v5896 = vadd.f32 %v5809, %v5895
        %v5897 = vpop.f32.mrf.mxu0
        %v5898 = vadd.f32 %v5811, %v5897
        %5899 = vmatmul.bf16.gmra.mxu0 %v5374
        %v5900 = vpop.f32.mrf.mxu0
        %v5901 = vadd.f32 %v5814, %v5900
        %v5902 = vpop.f32.mrf.mxu0
        %v5903 = vadd.f32 %v5816, %v5902
        %5904 = vmatmul.bf16.gmra.mxu0 %v5375
        %v5905 = vpop.f32.mrf.mxu0
        %v5906 = vadd.f32 %v5819, %v5905
        %v5907 = vpop.f32.mrf.mxu0
        %5908 = vmatmul.bf16.gmra.mxu0 %v5376
        %v5909 = vpop.f32.mrf.mxu0
        %v5910 = vpop.f32.mrf.mxu0
        %5911 = vmatmul.bf16.gmra.mxu0 %v5377
        %v5912 = vpop.f32.mrf.mxu0
        %v5913 = vpop.f32.mrf.mxu0
        %5914 = vmatmul.bf16.gmra.mxu0 %v5378
        %v5915 = vpop.f32.mrf.mxu0
        %v5916 = vpop.f32.mrf.mxu0
        %5917 = vmatmul.bf16.gmra.mxu0 %v5379
        %v5918 = vpop.f32.mrf.mxu0
        %v5919 = vpop.f32.mrf.mxu0
        %5920 = vdwg.mxu0
        %5921 = vmatpush.bf16.msra.mxu0 %v5722
        %5922 = vmatpush.bf16.msra.mxu0 %v5721
        %5923 = vmatpush.bf16.msra.mxu0 %v5720
        %5924 = vmatpush.bf16.msra.mxu0 %v5719
        %5925 = vmatpush.bf16.msra.mxu0 %v5718
        %5926 = vmatpush.bf16.msra.mxu0 %v5717
        %5927 = vmatpush.bf16.msra.mxu0 %v5716
        %5928 = vmatpush.bf16.msra.mxu0 %v5715
        %5929 = vmatmul.bf16.gmra.mxu0 %v5470
        %v5930 = vpop.f32.mrf.mxu0
        %v5931 = vpop.f32.mrf.mxu0
        %5932 = vmatmul.bf16.gmra.mxu0 %v5471
        %v5933 = vpop.f32.mrf.mxu0
        %v5934 = vpop.f32.mrf.mxu0
        %v5935 = vadd.f32 %v5848, %v5934
        %5936 = vmatmul.bf16.gmra.mxu0 %v5472
        %v5937 = vpop.f32.mrf.mxu0
        %v5938 = vadd.f32 %v5851, %v5937
        %v5939 = vpop.f32.mrf.mxu0
        %v5940 = vadd.f32 %v5853, %v5939
        %5941 = vmatmul.bf16.gmra.mxu0 %v5473
        %v5942 = vpop.f32.mrf.mxu0
        %v5943 = vadd.f32 %v5856, %v5942
        %v5944 = vpop.f32.mrf.mxu0
        %v5945 = vadd.f32 %v5858, %v5944
        %5946 = vmatmul.bf16.gmra.mxu0 %v5474
        %v5947 = vpop.f32.mrf.mxu0
        %v5948 = vadd.f32 %v5861, %v5947
        %v5949 = vpop.f32.mrf.mxu0
        %v5950 = vadd.f32 %v5863, %v5949
        %5951 = vmatmul.bf16.gmra.mxu0 %v5475
        %v5952 = vpop.f32.mrf.mxu0
        %v5953 = vadd.f32 %v5866, %v5952
        %v5954 = vpop.f32.mrf.mxu0
        %v5955 = vadd.f32 %v5868, %v5954
        %5956 = vmatmul.bf16.gmra.mxu0 %v5476
        %v5957 = vpop.f32.mrf.mxu0
        %v5958 = vadd.f32 %v5871, %v5957
        %v5959 = vpop.f32.mrf.mxu0
        %v5960 = vadd.f32 %v5873, %v5959
        %5961 = vmatmul.bf16.gmra.mxu0 %v5477
        %v5962 = vpop.f32.mrf.mxu0
        %v5963 = vadd.f32 %v5876, %v5962
        %v5964 = vpop.f32.mrf.mxu0
        %v5965 = vadd.f32 %v5878, %v5964
        %5966 = vmatmul.bf16.gmra.mxu0 %v5478
        %v5967 = vpop.f32.mrf.mxu0
        %v5968 = vadd.f32 %v5881, %v5967
        %v5969 = vpop.f32.mrf.mxu0
        %v5970 = vadd.f32 %v5883, %v5969
        %5971 = vmatmul.bf16.gmra.mxu0 %v5479
        %v5972 = vpop.f32.mrf.mxu0
        %v5973 = vadd.f32 %v5886, %v5972
        %v5974 = vpop.f32.mrf.mxu0
        %v5975 = vadd.f32 %v5888, %v5974
        %5976 = vmatmul.bf16.gmra.mxu0 %v5480
        %v5977 = vpop.f32.mrf.mxu0
        %v5978 = vadd.f32 %v5891, %v5977
        %v5979 = vpop.f32.mrf.mxu0
        %v5980 = vadd.f32 %v5893, %v5979
        %5981 = vmatmul.bf16.gmra.mxu0 %v5481
        %v5982 = vpop.f32.mrf.mxu0
        %v5983 = vadd.f32 %v5896, %v5982
        %v5984 = vpop.f32.mrf.mxu0
        %v5985 = vadd.f32 %v5898, %v5984
        %5986 = vmatmul.bf16.gmra.mxu0 %v5482
        %v5987 = vpop.f32.mrf.mxu0
        %v5988 = vadd.f32 %v5901, %v5987
        %v5989 = vpop.f32.mrf.mxu0
        %v5990 = vadd.f32 %v5903, %v5989
        %5991 = vmatmul.bf16.gmra.mxu0 %v5483
        %v5992 = vpop.f32.mrf.mxu0
        %v5993 = vadd.f32 %v5906, %v5992
        %v5994 = vpop.f32.mrf.mxu0
        %5995 = vmatmul.bf16.gmra.mxu0 %v5484
        %v5996 = vpop.f32.mrf.mxu0
        %v5997 = vpop.f32.mrf.mxu0
        %5998 = vmatmul.bf16.gmra.mxu0 %v5485
        %v5999 = vpop.f32.mrf.mxu0
        %v6000 = vpop.f32.mrf.mxu0
        %6001 = vmatmul.bf16.gmra.mxu0 %v5486
        %v6002 = vpop.f32.mrf.mxu0
        %v6003 = vpop.f32.mrf.mxu0
        %6004 = vmatmul.bf16.gmra.mxu0 %v5487
        %v6005 = vpop.f32.mrf.mxu0
        %v6006 = vpop.f32.mrf.mxu0
        %6007 = vdwg.mxu0
        %v6056 = vunpack.c.l.b16 %v5506
        %v6057 = vunpack.c.l.b16 %v5507
        %v6058 = vunpack.c.l.b16 %v5508
        %v6059 = vunpack.c.l.b16 %v5509
        %v6060 = vunpack.c.l.b16 %v5510
        %v6061 = vunpack.c.l.b16 %v5511
        %v6062 = vunpack.c.l.b16 %v5512
        %v6063 = vunpack.c.l.b16 %v5513
        %v6064 = vunpack.c.l.b16 %v5514
        %v6065 = vunpack.c.l.b16 %v5515
        %v6066 = vunpack.c.l.b16 %v5516
        %v6067 = vunpack.c.l.b16 %v5517
        %v6068 = vunpack.c.l.b16 %v5518
        %v6069 = vunpack.c.l.b16 %v5519
        %v6070 = vunpack.c.l.b16 %v5520
        %v6071 = vunpack.c.l.b16 %v5521
        %v6072 = vunpack.c.l.b16 %v5522
        %v6073 = vunpack.c.l.b16 %v5523
        %v6074 = vunpack.c.l.b16 %v5524
        %v6075 = vunpack.c.l.b16 %v5525
        %v6076 = vunpack.c.l.b16 %v5526
        %v6077 = vunpack.c.l.b16 %v5527
        %v6078 = vunpack.c.l.b16 %v5528
        %v6079 = vunpack.c.l.b16 %v5529
        %v6080 = vunpack.c.l.b16 %v5530
        %v6081 = vunpack.c.l.b16 %v5531
        %v6082 = vunpack.c.l.b16 %v5532
        %v6083 = vunpack.c.l.b16 %v5533
        %v6084 = vunpack.c.l.b16 %v5534
        %v6085 = vunpack.c.l.b16 %v5535
        %v6086 = vunpack.c.l.b16 %v5536
        %v6087 = vunpack.c.l.b16 %v5537
        %v6088 = vunpack.c.l.b16 %v5538
        %v6089 = vunpack.c.l.b16 %v5539
        %v6090 = vunpack.c.l.b16 %v5540
        %v6091 = vunpack.c.l.b16 %v5541
        %v6092 = vunpack.c.l.b16 %v5542
        %v6093 = vunpack.c.l.b16 %v5543
        %v6094 = vunpack.c.l.b16 %v5544
        %v6095 = vunpack.c.l.b16 %v5545
        %v6096 = vunpack.c.l.b16 %v5546
        %v6097 = vunpack.c.l.b16 %v5547
        %v6098 = vunpack.c.l.b16 %v5548
        %v6099 = vunpack.c.l.b16 %v5549
        %v6100 = vunpack.c.l.b16 %v5550
        %v6101 = vunpack.c.l.b16 %v5551
        %v6102 = vunpack.c.l.b16 %v5552
        %v6103 = vunpack.c.l.b16 %v5553
        %v6104 = vpack.c.b16 %v6057, %v6056
        %v6105 = vpack.c.b16 %v6059, %v6058
        %v6106 = vpack.c.b16 %v6061, %v6060
        %v6107 = vpack.c.b16 %v6063, %v6062
        %v6108 = vpack.c.b16 %v6065, %v6064
        %v6109 = vpack.c.b16 %v6067, %v6066
        %v6110 = vpack.c.b16 %v6069, %v6068
        %v6111 = vpack.c.b16 %v6071, %v6070
        %v6112 = vpack.c.b16 %v6073, %v6072
        %v6113 = vpack.c.b16 %v6075, %v6074
        %v6114 = vpack.c.b16 %v6077, %v6076
        %v6115 = vpack.c.b16 %v6079, %v6078
        %v6116 = vpack.c.b16 %v6081, %v6080
        %v6117 = vpack.c.b16 %v6083, %v6082
        %v6118 = vpack.c.b16 %v6085, %v6084
        %v6119 = vpack.c.b16 %v6087, %v6086
        %v6120 = vpack.c.b16 %v6089, %v6088
        %v6121 = vpack.c.b16 %v6091, %v6090
        %v6122 = vpack.c.b16 %v6093, %v6092
        %v6123 = vpack.c.b16 %v6095, %v6094
        %v6124 = vpack.c.b16 %v6097, %v6096
        %v6125 = vpack.c.b16 %v6099, %v6098
        %v6126 = vpack.c.b16 %v6101, %v6100
        %v6127 = vpack.c.b16 %v6103, %v6102
        %6152 = vmatpush.bf16.msra.mxu0 %v6111
        %6153 = vmatpush.bf16.msra.mxu0 %v6110
        %6154 = vmatpush.bf16.msra.mxu0 %v6109
        %6155 = vmatpush.bf16.msra.mxu0 %v6108
        %6156 = vmatpush.bf16.msra.mxu0 %v6107
        %6157 = vmatpush.bf16.msra.mxu0 %v6106
        %6158 = vmatpush.bf16.msra.mxu0 %v6105
        %6159 = vmatpush.bf16.msra.mxu0 %v6104
        %6160 = vmatmul.bf16.gmra.mxu0 %v5254
        %v6161 = vpop.f32.mrf.mxu0
        %v6162 = vadd.f32 %v5935, %v6161
        %v6163 = vpop.f32.mrf.mxu0
        %v6164 = vadd.f32 %v5938, %v6163
        %6165 = vmatmul.bf16.gmra.mxu0 %v5255
        %v6166 = vpop.f32.mrf.mxu0
        %v6167 = vadd.f32 %v5940, %v6166
        %v6168 = vpop.f32.mrf.mxu0
        %v6169 = vadd.f32 %v5943, %v6168
        %6170 = vmatmul.bf16.gmra.mxu0 %v5256
        %v6171 = vpop.f32.mrf.mxu0
        %v6172 = vadd.f32 %v5945, %v6171
        %v6173 = vpop.f32.mrf.mxu0
        %v6174 = vadd.f32 %v5948, %v6173
        %6175 = vmatmul.bf16.gmra.mxu0 %v5257
        %v6176 = vpop.f32.mrf.mxu0
        %v6177 = vadd.f32 %v5950, %v6176
        %v6178 = vpop.f32.mrf.mxu0
        %v6179 = vadd.f32 %v5953, %v6178
        %6180 = vmatmul.bf16.gmra.mxu0 %v5258
        %v6181 = vpop.f32.mrf.mxu0
        %v6182 = vadd.f32 %v5955, %v6181
        %v6183 = vpop.f32.mrf.mxu0
        %v6184 = vadd.f32 %v5958, %v6183
        %6185 = vmatmul.bf16.gmra.mxu0 %v5259
        %v6186 = vpop.f32.mrf.mxu0
        %v6187 = vadd.f32 %v5960, %v6186
        %v6188 = vpop.f32.mrf.mxu0
        %v6189 = vadd.f32 %v5963, %v6188
        %6190 = vmatmul.bf16.gmra.mxu0 %v5260
        %v6191 = vpop.f32.mrf.mxu0
        %v6192 = vadd.f32 %v5965, %v6191
        %v6193 = vpop.f32.mrf.mxu0
        %v6194 = vadd.f32 %v5968, %v6193
        %6195 = vmatmul.bf16.gmra.mxu0 %v5261
        %v6196 = vpop.f32.mrf.mxu0
        %v6197 = vadd.f32 %v5970, %v6196
        %v6198 = vpop.f32.mrf.mxu0
        %v6199 = vadd.f32 %v5973, %v6198
        %6200 = vmatmul.bf16.gmra.mxu0 %v5262
        %v6201 = vpop.f32.mrf.mxu0
        %v6202 = vadd.f32 %v5975, %v6201
        %v6203 = vpop.f32.mrf.mxu0
        %v6204 = vadd.f32 %v5978, %v6203
        %6205 = vmatmul.bf16.gmra.mxu0 %v5263
        %v6206 = vpop.f32.mrf.mxu0
        %v6207 = vadd.f32 %v5980, %v6206
        %v6208 = vpop.f32.mrf.mxu0
        %v6209 = vadd.f32 %v5983, %v6208
        %6210 = vmatmul.bf16.gmra.mxu0 %v5264
        %v6211 = vpop.f32.mrf.mxu0
        %v6212 = vadd.f32 %v5985, %v6211
        %v6213 = vpop.f32.mrf.mxu0
        %v6214 = vadd.f32 %v5988, %v6213
        %6215 = vmatmul.bf16.gmra.mxu0 %v5265
        %v6216 = vpop.f32.mrf.mxu0
        %v6217 = vadd.f32 %v5990, %v6216
        %v6218 = vpop.f32.mrf.mxu0
        %v6219 = vadd.f32 %v5993, %v6218
        %6220 = vmatmul.bf16.gmra.mxu0 %v5266
        %v6221 = vpop.f32.mrf.mxu0
        %v6222 = vpop.f32.mrf.mxu0
        %6223 = vmatmul.bf16.gmra.mxu0 %v5267
        %v6224 = vpop.f32.mrf.mxu0
        %v6225 = vpop.f32.mrf.mxu0
        %6226 = vmatmul.bf16.gmra.mxu0 %v5268
        %v6227 = vpop.f32.mrf.mxu0
        %v6228 = vpop.f32.mrf.mxu0
        %6229 = vmatmul.bf16.gmra.mxu0 %v5269
        %v6230 = vpop.f32.mrf.mxu0
        %v6231 = vpop.f32.mrf.mxu0
        %6232 = vmatmul.bf16.gmra.mxu0 %v5270
        %v6233 = vpop.f32.mrf.mxu0
        %v6234 = vpop.f32.mrf.mxu0
        %6235 = vmatmul.bf16.gmra.mxu0 %v5271
        %v6236 = vpop.f32.mrf.mxu0
        %v6237 = vpop.f32.mrf.mxu0
        %6238 = vdwg.mxu0
        %6239 = vmatpush.bf16.msra.mxu0 %v6119
        %6240 = vmatpush.bf16.msra.mxu0 %v6118
        %6241 = vmatpush.bf16.msra.mxu0 %v6117
        %6242 = vmatpush.bf16.msra.mxu0 %v6116
        %6243 = vmatpush.bf16.msra.mxu0 %v6115
        %6244 = vmatpush.bf16.msra.mxu0 %v6114
        %6245 = vmatpush.bf16.msra.mxu0 %v6113
        %6246 = vmatpush.bf16.msra.mxu0 %v6112
        %6247 = vmatmul.bf16.gmra.mxu0 %v5362
        %v6248 = vpop.f32.mrf.mxu0
        %v6249 = vadd.f32 %v6162, %v6248
        %v6250 = vpop.f32.mrf.mxu0
        %v6251 = vadd.f32 %v6164, %v6250
        %6252 = vmatmul.bf16.gmra.mxu0 %v5363
        %v6253 = vpop.f32.mrf.mxu0
        %v6254 = vadd.f32 %v6167, %v6253
        %v6255 = vpop.f32.mrf.mxu0
        %v6256 = vadd.f32 %v6169, %v6255
        %6257 = vmatmul.bf16.gmra.mxu0 %v5364
        %v6258 = vpop.f32.mrf.mxu0
        %v6259 = vadd.f32 %v6172, %v6258
        %v6260 = vpop.f32.mrf.mxu0
        %v6261 = vadd.f32 %v6174, %v6260
        %6262 = vmatmul.bf16.gmra.mxu0 %v5365
        %v6263 = vpop.f32.mrf.mxu0
        %v6264 = vadd.f32 %v6177, %v6263
        %v6265 = vpop.f32.mrf.mxu0
        %v6266 = vadd.f32 %v6179, %v6265
        %6267 = vmatmul.bf16.gmra.mxu0 %v5366
        %v6268 = vpop.f32.mrf.mxu0
        %v6269 = vadd.f32 %v6182, %v6268
        %v6270 = vpop.f32.mrf.mxu0
        %v6271 = vadd.f32 %v6184, %v6270
        %6272 = vmatmul.bf16.gmra.mxu0 %v5367
        %v6273 = vpop.f32.mrf.mxu0
        %v6274 = vadd.f32 %v6187, %v6273
        %v6275 = vpop.f32.mrf.mxu0
        %v6276 = vadd.f32 %v6189, %v6275
        %6277 = vmatmul.bf16.gmra.mxu0 %v5368
        %v6278 = vpop.f32.mrf.mxu0
        %v6279 = vadd.f32 %v6192, %v6278
        %v6280 = vpop.f32.mrf.mxu0
        %v6281 = vadd.f32 %v6194, %v6280
        %6282 = vmatmul.bf16.gmra.mxu0 %v5369
        %v6283 = vpop.f32.mrf.mxu0
        %v6284 = vadd.f32 %v6197, %v6283
        %v6285 = vpop.f32.mrf.mxu0
        %v6286 = vadd.f32 %v6199, %v6285
        %6287 = vmatmul.bf16.gmra.mxu0 %v5370
        %v6288 = vpop.f32.mrf.mxu0
        %v6289 = vadd.f32 %v6202, %v6288
        %v6290 = vpop.f32.mrf.mxu0
        %v6291 = vadd.f32 %v6204, %v6290
        %6292 = vmatmul.bf16.gmra.mxu0 %v5371
        %v6293 = vpop.f32.mrf.mxu0
        %v6294 = vadd.f32 %v6207, %v6293
        %v6295 = vpop.f32.mrf.mxu0
        %v6296 = vadd.f32 %v6209, %v6295
        %6297 = vmatmul.bf16.gmra.mxu0 %v5372
        %v6298 = vpop.f32.mrf.mxu0
        %v6299 = vadd.f32 %v6212, %v6298
        %v6300 = vpop.f32.mrf.mxu0
        %v6301 = vadd.f32 %v6214, %v6300
        %6302 = vmatmul.bf16.gmra.mxu0 %v5373
        %v6303 = vpop.f32.mrf.mxu0
        %v6304 = vadd.f32 %v6217, %v6303
        %v6305 = vpop.f32.mrf.mxu0
        %v6306 = vadd.f32 %v6219, %v6305
        %6307 = vmatmul.bf16.gmra.mxu0 %v5374
        %v6308 = vpop.f32.mrf.mxu0
        %v6309 = vpop.f32.mrf.mxu0
        %6310 = vmatmul.bf16.gmra.mxu0 %v5375
        %v6311 = vpop.f32.mrf.mxu0
        %v6312 = vpop.f32.mrf.mxu0
        %6313 = vmatmul.bf16.gmra.mxu0 %v5376
        %v6314 = vpop.f32.mrf.mxu0
        %v6315 = vpop.f32.mrf.mxu0
        %6316 = vmatmul.bf16.gmra.mxu0 %v5377
        %v6317 = vpop.f32.mrf.mxu0
        %v6318 = vpop.f32.mrf.mxu0
        %6319 = vmatmul.bf16.gmra.mxu0 %v5378
        %v6320 = vpop.f32.mrf.mxu0
        %v6321 = vpop.f32.mrf.mxu0
        %6322 = vmatmul.bf16.gmra.mxu0 %v5379
        %v6323 = vpop.f32.mrf.mxu0
        %v6324 = vpop.f32.mrf.mxu0
        %6325 = vdwg.mxu0
        %6326 = vmatpush.bf16.msra.mxu0 %v6127
        %6327 = vmatpush.bf16.msra.mxu0 %v6126
        %6328 = vmatpush.bf16.msra.mxu0 %v6125
        %6329 = vmatpush.bf16.msra.mxu0 %v6124
        %6330 = vmatpush.bf16.msra.mxu0 %v6123
        %6331 = vmatpush.bf16.msra.mxu0 %v6122
        %6332 = vmatpush.bf16.msra.mxu0 %v6121
        %6333 = vmatpush.bf16.msra.mxu0 %v6120
        %6334 = vmatmul.bf16.gmra.mxu0 %v5470
        %v6335 = vpop.f32.mrf.mxu0
        %v6336 = vadd.f32 %v6249, %v6335
        %v6337 = vpop.f32.mrf.mxu0
        %v6338 = vadd.f32 %v6251, %v6337
        %6339 = vmatmul.bf16.gmra.mxu0 %v5471
        %v6340 = vpop.f32.mrf.mxu0
        %v6341 = vadd.f32 %v6254, %v6340
        %v6342 = vpop.f32.mrf.mxu0
        %v6343 = vadd.f32 %v6256, %v6342
        %6344 = vmatmul.bf16.gmra.mxu0 %v5472
        %v6345 = vpop.f32.mrf.mxu0
        %v6346 = vadd.f32 %v6259, %v6345
        %v6347 = vpop.f32.mrf.mxu0
        %v6348 = vadd.f32 %v6261, %v6347
        %6349 = vmatmul.bf16.gmra.mxu0 %v5473
        %v6350 = vpop.f32.mrf.mxu0
        %v6351 = vadd.f32 %v6264, %v6350
        %v6352 = vpop.f32.mrf.mxu0
        %v6353 = vadd.f32 %v6266, %v6352
        %6354 = vmatmul.bf16.gmra.mxu0 %v5474
        %v6355 = vpop.f32.mrf.mxu0
        %v6356 = vadd.f32 %v6269, %v6355
        %v6357 = vpop.f32.mrf.mxu0
        %v6358 = vadd.f32 %v6271, %v6357
        %6359 = vmatmul.bf16.gmra.mxu0 %v5475
        %v6360 = vpop.f32.mrf.mxu0
        %v6361 = vadd.f32 %v6274, %v6360
        %v6362 = vpop.f32.mrf.mxu0
        %v6363 = vadd.f32 %v6276, %v6362
        %6364 = vmatmul.bf16.gmra.mxu0 %v5476
        %v6365 = vpop.f32.mrf.mxu0
        %v6366 = vadd.f32 %v6279, %v6365
        %v6367 = vpop.f32.mrf.mxu0
        %v6368 = vadd.f32 %v6281, %v6367
        %6369 = vmatmul.bf16.gmra.mxu0 %v5477
        %v6370 = vpop.f32.mrf.mxu0
        %v6371 = vadd.f32 %v6284, %v6370
        %v6372 = vpop.f32.mrf.mxu0
        %v6373 = vadd.f32 %v6286, %v6372
        %6374 = vmatmul.bf16.gmra.mxu0 %v5478
        %v6375 = vpop.f32.mrf.mxu0
        %v6376 = vadd.f32 %v6289, %v6375
        %v6377 = vpop.f32.mrf.mxu0
        %v6378 = vadd.f32 %v6291, %v6377
        %6379 = vmatmul.bf16.gmra.mxu0 %v5479
        %v6380 = vpop.f32.mrf.mxu0
        %v6381 = vadd.f32 %v6294, %v6380
        %v6382 = vpop.f32.mrf.mxu0
        %v6383 = vadd.f32 %v6296, %v6382
        %6384 = vmatmul.bf16.gmra.mxu0 %v5480
        %v6385 = vpop.f32.mrf.mxu0
        %v6386 = vadd.f32 %v6299, %v6385
        %v6387 = vpop.f32.mrf.mxu0
        %v6388 = vadd.f32 %v6301, %v6387
        %6389 = vmatmul.bf16.gmra.mxu0 %v5481
        %v6390 = vpop.f32.mrf.mxu0
        %v6391 = vadd.f32 %v6304, %v6390
        %v6392 = vpop.f32.mrf.mxu0
        %v6393 = vadd.f32 %v6306, %v6392
        %6394 = vmatmul.bf16.gmra.mxu0 %v5482
        %v6395 = vpop.f32.mrf.mxu0
        %v6396 = vpop.f32.mrf.mxu0
        %6397 = vmatmul.bf16.gmra.mxu0 %v5483
        %v6398 = vpop.f32.mrf.mxu0
        %v6399 = vpop.f32.mrf.mxu0
        %6400 = vmatmul.bf16.gmra.mxu0 %v5484
        %v6401 = vpop.f32.mrf.mxu0
        %v6402 = vpop.f32.mrf.mxu0
        %6403 = vmatmul.bf16.gmra.mxu0 %v5485
        %v6404 = vpop.f32.mrf.mxu0
        %v6405 = vpop.f32.mrf.mxu0
        %6406 = vmatmul.bf16.gmra.mxu0 %v5486
        %v6407 = vpop.f32.mrf.mxu0
        %v6408 = vpop.f32.mrf.mxu0
        %6409 = vmatmul.bf16.gmra.mxu0 %v5487
        %v6410 = vpop.f32.mrf.mxu0
        %v6411 = vpop.f32.mrf.mxu0
        %6412 = vdwg.mxu0
        %s6413 = scalar_lea.vmem [#allocation7], 384
        %v6414 = vld [vmem:[%s6413] sm:$0xf]
        %v6415 = vld [vmem:[%s6413 + $0x4] sm:$0xf]
        %v6416 = vld [vmem:[%s6413 + $0x8] sm:$0xf]
        %v6417 = vld [vmem:[%s6413 + $0xc] sm:$0xf]
        %v6418 = vld [vmem:[%s6413 + $0x10] sm:$0xf]
        %v6419 = vld [vmem:[%s6413 + $0x14] sm:$0xf]
        %v6420 = vld [vmem:[%s6413 + $0x18] sm:$0xf]
        %v6421 = vld [vmem:[%s6413 + $0x1c] sm:$0xf]
        %v6422 = vld [vmem:[%s6413 + $0x20] sm:$0xf]
        %v6423 = vld [vmem:[%s6413 + $0x24] sm:$0xf]
        %v6424 = vld [vmem:[%s6413 + $0x28] sm:$0xf]
        %v6425 = vld [vmem:[%s6413 + $0x2c] sm:$0xf]
        %v6426 = vld [vmem:[%s6413 + $0x30] sm:$0xf]
        %v6427 = vld [vmem:[%s6413 + $0x34] sm:$0xf]
        %v6428 = vld [vmem:[%s6413 + $0x38] sm:$0xf]
        %v6429 = vld [vmem:[%s6413 + $0x3c] sm:$0xf]
        %v6430 = vld [vmem:[%s6413 + $0x40] sm:$0xf]
        %v6431 = vld [vmem:[%s6413 + $0x44] sm:$0xf]
        %v6432 = vld [vmem:[%s6413 + $0x48] sm:$0xf]
        %v6433 = vld [vmem:[%s6413 + $0x4c] sm:$0xf]
        %v6434 = vld [vmem:[%s6413 + $0x50] sm:$0xf]
        %v6435 = vld [vmem:[%s6413 + $0x54] sm:$0xf]
        %v6436 = vld [vmem:[%s6413 + $0x58] sm:$0xf]
        %v6437 = vld [vmem:[%s6413 + $0x5c] sm:$0xf]
        %v6438 = vld [vmem:[%s6413 + $0x60] sm:$0xf]
        %v6439 = vld [vmem:[%s6413 + $0x64] sm:$0xf]
        %v6440 = vld [vmem:[%s6413 + $0x68] sm:$0xf]
        %v6441 = vld [vmem:[%s6413 + $0x6c] sm:$0xf]
        %v6442 = vld [vmem:[%s6413 + $0x70] sm:$0xf]
        %v6443 = vld [vmem:[%s6413 + $0x74] sm:$0xf]
        %v6444 = vld [vmem:[%s6413 + $0x78] sm:$0xf]
        %v6445 = vld [vmem:[%s6413 + $0x7c] sm:$0xf]
        %v6446 = vld [vmem:[%s6413 + $0x80] sm:$0xf]
        %v6447 = vld [vmem:[%s6413 + $0x84] sm:$0xf]
        %v6448 = vld [vmem:[%s6413 + $0x88] sm:$0xf]
        %v6449 = vld [vmem:[%s6413 + $0x8c] sm:$0xf]
        %v6450 = vld [vmem:[%s6413 + $0x90] sm:$0xf]
        %v6451 = vld [vmem:[%s6413 + $0x94] sm:$0xf]
        %v6452 = vld [vmem:[%s6413 + $0x98] sm:$0xf]
        %v6453 = vld [vmem:[%s6413 + $0x9c] sm:$0xf]
        %v6454 = vld [vmem:[%s6413 + $0xa0] sm:$0xf]
        %v6455 = vld [vmem:[%s6413 + $0xa4] sm:$0xf]
        %v6456 = vld [vmem:[%s6413 + $0xa8] sm:$0xf]
        %v6457 = vld [vmem:[%s6413 + $0xac] sm:$0xf]
        %v6458 = vld [vmem:[%s6413 + $0xb0] sm:$0xf]
        %v6459 = vld [vmem:[%s6413 + $0xb4] sm:$0xf]
        %v6460 = vld [vmem:[%s6413 + $0xb8] sm:$0xf]
        %v6461 = vld [vmem:[%s6413 + $0xbc] sm:$0xf]
        %v6510 = vunpack.c.l.b16 %v6414
        %v6511 = vunpack.c.l.b16 %v6415
        %v6512 = vunpack.c.l.b16 %v6416
        %v6513 = vunpack.c.l.b16 %v6417
        %v6514 = vunpack.c.l.b16 %v6418
        %v6515 = vunpack.c.l.b16 %v6419
        %v6516 = vunpack.c.l.b16 %v6420
        %v6517 = vunpack.c.l.b16 %v6421
        %v6518 = vunpack.c.l.b16 %v6422
        %v6519 = vunpack.c.l.b16 %v6423
        %v6520 = vunpack.c.l.b16 %v6424
        %v6521 = vunpack.c.l.b16 %v6425
        %v6522 = vunpack.c.l.b16 %v6426
        %v6523 = vunpack.c.l.b16 %v6427
        %v6524 = vunpack.c.l.b16 %v6428
        %v6525 = vunpack.c.l.b16 %v6429
        %v6526 = vunpack.c.l.b16 %v6430
        %v6527 = vunpack.c.l.b16 %v6431
        %v6528 = vunpack.c.l.b16 %v6432
        %v6529 = vunpack.c.l.b16 %v6433
        %v6530 = vunpack.c.l.b16 %v6434
        %v6531 = vunpack.c.l.b16 %v6435
        %v6532 = vunpack.c.l.b16 %v6436
        %v6533 = vunpack.c.l.b16 %v6437
        %v6534 = vunpack.c.l.b16 %v6438
        %v6535 = vunpack.c.l.b16 %v6439
        %v6536 = vunpack.c.l.b16 %v6440
        %v6537 = vunpack.c.l.b16 %v6441
        %v6538 = vunpack.c.l.b16 %v6442
        %v6539 = vunpack.c.l.b16 %v6443
        %v6540 = vunpack.c.l.b16 %v6444
        %v6541 = vunpack.c.l.b16 %v6445
        %v6542 = vunpack.c.l.b16 %v6446
        %v6543 = vunpack.c.l.b16 %v6447
        %v6544 = vunpack.c.l.b16 %v6448
        %v6545 = vunpack.c.l.b16 %v6449
        %v6546 = vunpack.c.l.b16 %v6450
        %v6547 = vunpack.c.l.b16 %v6451
        %v6548 = vunpack.c.l.b16 %v6452
        %v6549 = vunpack.c.l.b16 %v6453
        %v6550 = vunpack.c.l.b16 %v6454
        %v6551 = vunpack.c.l.b16 %v6455
        %v6552 = vunpack.c.l.b16 %v6456
        %v6553 = vunpack.c.l.b16 %v6457
        %v6554 = vunpack.c.l.b16 %v6458
        %v6555 = vunpack.c.l.b16 %v6459
        %v6556 = vunpack.c.l.b16 %v6460
        %v6557 = vunpack.c.l.b16 %v6461
        %v6558 = vpack.c.b16 %v6511, %v6510
        %v6559 = vpack.c.b16 %v6513, %v6512
        %v6560 = vpack.c.b16 %v6515, %v6514
        %v6561 = vpack.c.b16 %v6517, %v6516
        %v6562 = vpack.c.b16 %v6519, %v6518
        %v6563 = vpack.c.b16 %v6521, %v6520
        %v6564 = vpack.c.b16 %v6523, %v6522
        %v6565 = vpack.c.b16 %v6525, %v6524
        %v6566 = vpack.c.b16 %v6527, %v6526
        %v6567 = vpack.c.b16 %v6529, %v6528
        %v6568 = vpack.c.b16 %v6531, %v6530
        %v6569 = vpack.c.b16 %v6533, %v6532
        %v6570 = vpack.c.b16 %v6535, %v6534
        %v6571 = vpack.c.b16 %v6537, %v6536
        %v6572 = vpack.c.b16 %v6539, %v6538
        %v6573 = vpack.c.b16 %v6541, %v6540
        %v6574 = vpack.c.b16 %v6543, %v6542
        %v6575 = vpack.c.b16 %v6545, %v6544
        %v6576 = vpack.c.b16 %v6547, %v6546
        %v6577 = vpack.c.b16 %v6549, %v6548
        %v6578 = vpack.c.b16 %v6551, %v6550
        %v6579 = vpack.c.b16 %v6553, %v6552
        %v6580 = vpack.c.b16 %v6555, %v6554
        %v6581 = vpack.c.b16 %v6557, %v6556
        %6606 = vmatpush.bf16.msra.mxu0 %v6565
        %6607 = vmatpush.bf16.msra.mxu0 %v6564
        %6608 = vmatpush.bf16.msra.mxu0 %v6563
        %6609 = vmatpush.bf16.msra.mxu0 %v6562
        %6610 = vmatpush.bf16.msra.mxu0 %v6561
        %6611 = vmatpush.bf16.msra.mxu0 %v6560
        %6612 = vmatpush.bf16.msra.mxu0 %v6559
        %6613 = vmatpush.bf16.msra.mxu0 %v6558
        %6614 = vmatmul.bf16.gmra.mxu0 %v5254
        %v6615 = vpop.f32.mrf.mxu0
        %v6616 = vpop.f32.mrf.mxu0
        %6617 = vmatmul.bf16.gmra.mxu0 %v5255
        %v6618 = vpop.f32.mrf.mxu0
        %v6619 = vpop.f32.mrf.mxu0
        %6620 = vmatmul.bf16.gmra.mxu0 %v5256
        %v6621 = vpop.f32.mrf.mxu0
        %v6622 = vpop.f32.mrf.mxu0
        %6623 = vmatmul.bf16.gmra.mxu0 %v5257
        %v6624 = vpop.f32.mrf.mxu0
        %v6625 = vadd.f32 0.0, %v6624
        %v6626 = vpop.f32.mrf.mxu0
        %v6627 = vadd.f32 0.0, %v6626
        %6628 = vmatmul.bf16.gmra.mxu0 %v5258
        %v6629 = vpop.f32.mrf.mxu0
        %v6630 = vadd.f32 0.0, %v6629
        %v6631 = vpop.f32.mrf.mxu0
        %v6632 = vadd.f32 0.0, %v6631
        %6633 = vmatmul.bf16.gmra.mxu0 %v5259
        %v6634 = vpop.f32.mrf.mxu0
        %v6635 = vadd.f32 0.0, %v6634
        %v6636 = vpop.f32.mrf.mxu0
        %v6637 = vadd.f32 0.0, %v6636
        %6638 = vmatmul.bf16.gmra.mxu0 %v5260
        %v6639 = vpop.f32.mrf.mxu0
        %v6640 = vadd.f32 0.0, %v6639
        %v6641 = vpop.f32.mrf.mxu0
        %v6642 = vadd.f32 0.0, %v6641
        %6643 = vmatmul.bf16.gmra.mxu0 %v5261
        %v6644 = vpop.f32.mrf.mxu0
        %v6645 = vadd.f32 0.0, %v6644
        %v6646 = vpop.f32.mrf.mxu0
        %v6647 = vadd.f32 0.0, %v6646
        %6648 = vmatmul.bf16.gmra.mxu0 %v5262
        %v6649 = vpop.f32.mrf.mxu0
        %v6650 = vadd.f32 0.0, %v6649
        %v6651 = vpop.f32.mrf.mxu0
        %v6652 = vadd.f32 0.0, %v6651
        %6653 = vmatmul.bf16.gmra.mxu0 %v5263
        %v6654 = vpop.f32.mrf.mxu0
        %v6655 = vadd.f32 0.0, %v6654
        %v6656 = vpop.f32.mrf.mxu0
        %v6657 = vadd.f32 0.0, %v6656
        %6658 = vmatmul.bf16.gmra.mxu0 %v5264
        %v6659 = vpop.f32.mrf.mxu0
        %v6660 = vadd.f32 0.0, %v6659
        %v6661 = vpop.f32.mrf.mxu0
        %v6662 = vadd.f32 0.0, %v6661
        %6663 = vmatmul.bf16.gmra.mxu0 %v5265
        %v6664 = vpop.f32.mrf.mxu0
        %v6665 = vadd.f32 0.0, %v6664
        %v6666 = vpop.f32.mrf.mxu0
        %v6667 = vadd.f32 0.0, %v6666
        %6668 = vmatmul.bf16.gmra.mxu0 %v5266
        %v6669 = vpop.f32.mrf.mxu0
        %v6670 = vadd.f32 0.0, %v6669
        %v6671 = vpop.f32.mrf.mxu0
        %v6672 = vadd.f32 0.0, %v6671
        %6673 = vmatmul.bf16.gmra.mxu0 %v5267
        %v6674 = vpop.f32.mrf.mxu0
        %v6675 = vadd.f32 0.0, %v6674
        %v6676 = vpop.f32.mrf.mxu0
        %v6677 = vadd.f32 0.0, %v6676
        %6678 = vmatmul.bf16.gmra.mxu0 %v5268
        %v6679 = vpop.f32.mrf.mxu0
        %v6680 = vadd.f32 0.0, %v6679
        %v6681 = vpop.f32.mrf.mxu0
        %v6682 = vadd.f32 0.0, %v6681
        %6683 = vmatmul.bf16.gmra.mxu0 %v5269
        %v6684 = vpop.f32.mrf.mxu0
        %v6685 = vpop.f32.mrf.mxu0
        %6686 = vmatmul.bf16.gmra.mxu0 %v5270
        %v6687 = vpop.f32.mrf.mxu0
        %v6688 = vpop.f32.mrf.mxu0
        %6689 = vmatmul.bf16.gmra.mxu0 %v5271
        %v6690 = vpop.f32.mrf.mxu0
        %v6691 = vpop.f32.mrf.mxu0
        %6692 = vdwg.mxu0
        %6693 = vmatpush.bf16.msra.mxu0 %v6573
        %6694 = vmatpush.bf16.msra.mxu0 %v6572
        %6695 = vmatpush.bf16.msra.mxu0 %v6571
        %6696 = vmatpush.bf16.msra.mxu0 %v6570
        %6697 = vmatpush.bf16.msra.mxu0 %v6569
        %6698 = vmatpush.bf16.msra.mxu0 %v6568
        %6699 = vmatpush.bf16.msra.mxu0 %v6567
        %6700 = vmatpush.bf16.msra.mxu0 %v6566
        %6701 = vmatmul.bf16.gmra.mxu0 %v5362
        %v6702 = vpop.f32.mrf.mxu0
        %v6703 = vpop.f32.mrf.mxu0
        %6704 = vmatmul.bf16.gmra.mxu0 %v5363
        %v6705 = vpop.f32.mrf.mxu0
        %v6706 = vpop.f32.mrf.mxu0
        %6707 = vmatmul.bf16.gmra.mxu0 %v5364
        %v6708 = vpop.f32.mrf.mxu0
        %v6709 = vpop.f32.mrf.mxu0
        %6710 = vmatmul.bf16.gmra.mxu0 %v5365
        %v6711 = vpop.f32.mrf.mxu0
        %v6712 = vadd.f32 %v6625, %v6711
        %v6713 = vpop.f32.mrf.mxu0
        %v6714 = vadd.f32 %v6627, %v6713
        %6715 = vmatmul.bf16.gmra.mxu0 %v5366
        %v6716 = vpop.f32.mrf.mxu0
        %v6717 = vadd.f32 %v6630, %v6716
        %v6718 = vpop.f32.mrf.mxu0
        %v6719 = vadd.f32 %v6632, %v6718
        %6720 = vmatmul.bf16.gmra.mxu0 %v5367
        %v6721 = vpop.f32.mrf.mxu0
        %v6722 = vadd.f32 %v6635, %v6721
        %v6723 = vpop.f32.mrf.mxu0
        %v6724 = vadd.f32 %v6637, %v6723
        %6725 = vmatmul.bf16.gmra.mxu0 %v5368
        %v6726 = vpop.f32.mrf.mxu0
        %v6727 = vadd.f32 %v6640, %v6726
        %v6728 = vpop.f32.mrf.mxu0
        %v6729 = vadd.f32 %v6642, %v6728
        %6730 = vmatmul.bf16.gmra.mxu0 %v5369
        %v6731 = vpop.f32.mrf.mxu0
        %v6732 = vadd.f32 %v6645, %v6731
        %v6733 = vpop.f32.mrf.mxu0
        %v6734 = vadd.f32 %v6647, %v6733
        %6735 = vmatmul.bf16.gmra.mxu0 %v5370
        %v6736 = vpop.f32.mrf.mxu0
        %v6737 = vadd.f32 %v6650, %v6736
        %v6738 = vpop.f32.mrf.mxu0
        %v6739 = vadd.f32 %v6652, %v6738
        %6740 = vmatmul.bf16.gmra.mxu0 %v5371
        %v6741 = vpop.f32.mrf.mxu0
        %v6742 = vadd.f32 %v6655, %v6741
        %v6743 = vpop.f32.mrf.mxu0
        %v6744 = vadd.f32 %v6657, %v6743
        %6745 = vmatmul.bf16.gmra.mxu0 %v5372
        %v6746 = vpop.f32.mrf.mxu0
        %v6747 = vadd.f32 %v6660, %v6746
        %v6748 = vpop.f32.mrf.mxu0
        %v6749 = vadd.f32 %v6662, %v6748
        %6750 = vmatmul.bf16.gmra.mxu0 %v5373
        %v6751 = vpop.f32.mrf.mxu0
        %v6752 = vadd.f32 %v6665, %v6751
        %v6753 = vpop.f32.mrf.mxu0
        %v6754 = vadd.f32 %v6667, %v6753
        %6755 = vmatmul.bf16.gmra.mxu0 %v5374
        %v6756 = vpop.f32.mrf.mxu0
        %v6757 = vadd.f32 %v6670, %v6756
        %v6758 = vpop.f32.mrf.mxu0
        %v6759 = vadd.f32 %v6672, %v6758
        %6760 = vmatmul.bf16.gmra.mxu0 %v5375
        %v6761 = vpop.f32.mrf.mxu0
        %v6762 = vadd.f32 %v6675, %v6761
        %v6763 = vpop.f32.mrf.mxu0
        %v6764 = vadd.f32 %v6677, %v6763
        %6765 = vmatmul.bf16.gmra.mxu0 %v5376
        %v6766 = vpop.f32.mrf.mxu0
        %v6767 = vadd.f32 %v6680, %v6766
        %v6768 = vpop.f32.mrf.mxu0
        %v6769 = vadd.f32 %v6682, %v6768
        %6770 = vmatmul.bf16.gmra.mxu0 %v5377
        %v6771 = vpop.f32.mrf.mxu0
        %v6772 = vpop.f32.mrf.mxu0
        %6773 = vmatmul.bf16.gmra.mxu0 %v5378
        %v6774 = vpop.f32.mrf.mxu0
        %v6775 = vpop.f32.mrf.mxu0
        %6776 = vmatmul.bf16.gmra.mxu0 %v5379
        %v6777 = vpop.f32.mrf.mxu0
        %v6778 = vpop.f32.mrf.mxu0
        %6779 = vdwg.mxu0
        %6780 = vmatpush.bf16.msra.mxu0 %v6581
        %6781 = vmatpush.bf16.msra.mxu0 %v6580
        %6782 = vmatpush.bf16.msra.mxu0 %v6579
        %6783 = vmatpush.bf16.msra.mxu0 %v6578
        %6784 = vmatpush.bf16.msra.mxu0 %v6577
        %6785 = vmatpush.bf16.msra.mxu0 %v6576
        %6786 = vmatpush.bf16.msra.mxu0 %v6575
        %6787 = vmatpush.bf16.msra.mxu0 %v6574
        %6788 = vmatmul.bf16.gmra.mxu0 %v5470
        %v6789 = vpop.f32.mrf.mxu0
        %v6790 = vpop.f32.mrf.mxu0
        %6791 = vmatmul.bf16.gmra.mxu0 %v5471
        %v6792 = vpop.f32.mrf.mxu0
        %v6793 = vpop.f32.mrf.mxu0
        %6794 = vmatmul.bf16.gmra.mxu0 %v5472
        %v6795 = vpop.f32.mrf.mxu0
        %v6796 = vpop.f32.mrf.mxu0
        %6797 = vmatmul.bf16.gmra.mxu0 %v5473
        %v6798 = vpop.f32.mrf.mxu0
        %v6799 = vadd.f32 %v6712, %v6798
        %v6800 = vpop.f32.mrf.mxu0
        %v6801 = vadd.f32 %v6714, %v6800
        %6802 = vmatmul.bf16.gmra.mxu0 %v5474
        %v6803 = vpop.f32.mrf.mxu0
        %v6804 = vadd.f32 %v6717, %v6803
        %v6805 = vpop.f32.mrf.mxu0
        %v6806 = vadd.f32 %v6719, %v6805
        %6807 = vmatmul.bf16.gmra.mxu0 %v5475
        %v6808 = vpop.f32.mrf.mxu0
        %v6809 = vadd.f32 %v6722, %v6808
        %v6810 = vpop.f32.mrf.mxu0
        %v6811 = vadd.f32 %v6724, %v6810
        %6812 = vmatmul.bf16.gmra.mxu0 %v5476
        %v6813 = vpop.f32.mrf.mxu0
        %v6814 = vadd.f32 %v6727, %v6813
        %v6815 = vpop.f32.mrf.mxu0
        %v6816 = vadd.f32 %v6729, %v6815
        %6817 = vmatmul.bf16.gmra.mxu0 %v5477
        %v6818 = vpop.f32.mrf.mxu0
        %v6819 = vadd.f32 %v6732, %v6818
        %v6820 = vpop.f32.mrf.mxu0
        %v6821 = vadd.f32 %v6734, %v6820
        %6822 = vmatmul.bf16.gmra.mxu0 %v5478
        %v6823 = vpop.f32.mrf.mxu0
        %v6824 = vadd.f32 %v6737, %v6823
        %v6825 = vpop.f32.mrf.mxu0
        %v6826 = vadd.f32 %v6739, %v6825
        %6827 = vmatmul.bf16.gmra.mxu0 %v5479
        %v6828 = vpop.f32.mrf.mxu0
        %v6829 = vadd.f32 %v6742, %v6828
        %v6830 = vpop.f32.mrf.mxu0
        %v6831 = vadd.f32 %v6744, %v6830
        %6832 = vmatmul.bf16.gmra.mxu0 %v5480
        %v6833 = vpop.f32.mrf.mxu0
        %v6834 = vadd.f32 %v6747, %v6833
        %v6835 = vpop.f32.mrf.mxu0
        %v6836 = vadd.f32 %v6749, %v6835
        %6837 = vmatmul.bf16.gmra.mxu0 %v5481
        %v6838 = vpop.f32.mrf.mxu0
        %v6839 = vadd.f32 %v6752, %v6838
        %v6840 = vpop.f32.mrf.mxu0
        %v6841 = vadd.f32 %v6754, %v6840
        %6842 = vmatmul.bf16.gmra.mxu0 %v5482
        %v6843 = vpop.f32.mrf.mxu0
        %v6844 = vadd.f32 %v6757, %v6843
        %v6845 = vpop.f32.mrf.mxu0
        %v6846 = vadd.f32 %v6759, %v6845
        %6847 = vmatmul.bf16.gmra.mxu0 %v5483
        %v6848 = vpop.f32.mrf.mxu0
        %v6849 = vadd.f32 %v6762, %v6848
        %v6850 = vpop.f32.mrf.mxu0
        %v6851 = vadd.f32 %v6764, %v6850
        %6852 = vmatmul.bf16.gmra.mxu0 %v5484
        %v6853 = vpop.f32.mrf.mxu0
        %v6854 = vadd.f32 %v6767, %v6853
        %v6855 = vpop.f32.mrf.mxu0
        %v6856 = vadd.f32 %v6769, %v6855
        %6857 = vmatmul.bf16.gmra.mxu0 %v5485
        %v6858 = vpop.f32.mrf.mxu0
        %v6859 = vpop.f32.mrf.mxu0
        %6860 = vmatmul.bf16.gmra.mxu0 %v5486
        %v6861 = vpop.f32.mrf.mxu0
        %v6862 = vpop.f32.mrf.mxu0
        %6863 = vmatmul.bf16.gmra.mxu0 %v5487
        %v6864 = vpop.f32.mrf.mxu0
        %v6865 = vpop.f32.mrf.mxu0
        %6866 = vdwg.mxu0
        %v6867 = vadd.f32 %v6336, %v6799
        %v6868 = vadd.f32 %v6338, %v6801
        %v6869 = vadd.f32 %v6341, %v6804
        %v6870 = vadd.f32 %v6343, %v6806
        %v6871 = vadd.f32 %v6346, %v6809
        %v6872 = vadd.f32 %v6348, %v6811
        %v6873 = vadd.f32 %v6351, %v6814
        %v6874 = vadd.f32 %v6353, %v6816
        %v6875 = vadd.f32 %v6356, %v6819
        %v6876 = vadd.f32 %v6358, %v6821
        %v6877 = vadd.f32 %v6361, %v6824
        %v6878 = vadd.f32 %v6363, %v6826
        %v6879 = vadd.f32 %v6366, %v6829
        %v6880 = vadd.f32 %v6368, %v6831
        %v6881 = vadd.f32 %v6371, %v6834
        %v6882 = vadd.f32 %v6373, %v6836
        %v6883 = vadd.f32 %v6376, %v6839
        %v6884 = vadd.f32 %v6378, %v6841
        %v6885 = vadd.f32 %v6381, %v6844
        %v6886 = vadd.f32 %v6383, %v6846
        %v6887 = vadd.f32 %v6386, %v6849
        %v6888 = vadd.f32 %v6388, %v6851
        %v6889 = vadd.f32 %v6391, %v6854
        %v6890 = vadd.f32 %v6393, %v6856
        %v6891 = vld [vmem:[%s6] sm:$0x1]
        %v6893 = vperm.slane %v6891, 0
        %v6895 = vadd.f32 %v6867, %v6893
        %v6896 = vadd.f32 %v6868, %v6893
        %v6897 = vadd.f32 %v6869, %v6893
        %v6898 = vadd.f32 %v6870, %v6893
        %v6899 = vadd.f32 %v6871, %v6893
        %v6900 = vadd.f32 %v6872, %v6893
        %v6901 = vadd.f32 %v6873, %v6893
        %v6902 = vadd.f32 %v6874, %v6893
        %v6903 = vadd.f32 %v6875, %v6893
        %v6904 = vadd.f32 %v6876, %v6893
        %v6905 = vadd.f32 %v6877, %v6893
        %v6906 = vadd.f32 %v6878, %v6893
        %v6907 = vadd.f32 %v6879, %v6893
        %v6908 = vadd.f32 %v6880, %v6893
        %v6909 = vadd.f32 %v6881, %v6893
        %v6910 = vadd.f32 %v6882, %v6893
        %v6911 = vadd.f32 %v6883, %v6893
        %v6912 = vadd.f32 %v6884, %v6893
        %v6913 = vadd.f32 %v6885, %v6893
        %v6914 = vadd.f32 %v6886, %v6893
        %v6915 = vadd.f32 %v6887, %v6893
        %v6916 = vadd.f32 %v6888, %v6893
        %v6917 = vadd.f32 %v6889, %v6893
        %v6918 = vadd.f32 %v6890, %v6893
        %v6919 = vadd.f32 %v6895, %v789
        %v6920 = vadd.f32 %v6896, %v791
        %v6921 = vadd.f32 %v6897, %v793
        %v6922 = vadd.f32 %v6898, %v795
        %v6923 = vadd.f32 %v6899, %v797
        %v6924 = vadd.f32 %v6900, %v799
        %v6925 = vadd.f32 %v6901, %v801
        %v6926 = vadd.f32 %v6902, %v803
        %v6927 = vadd.f32 %v6903, %v805
        %v6928 = vadd.f32 %v6904, %v807
        %v6929 = vadd.f32 %v6905, %v809
        %v6930 = vadd.f32 %v6906, %v811
        %v6931 = vadd.f32 %v6907, %v813
        %v6932 = vadd.f32 %v6908, %v815
        %v6933 = vadd.f32 %v6909, %v817
        %v6934 = vadd.f32 %v6910, %v819
        %v6935 = vadd.f32 %v6911, %v821
        %v6936 = vadd.f32 %v6912, %v823
        %v6937 = vadd.f32 %v6913, %v825
        %v6938 = vadd.f32 %v6914, %v827
        %v6939 = vadd.f32 %v6915, %v829
        %v6940 = vadd.f32 %v6916, %v831
        %v6941 = vadd.f32 %v6917, %v833
        %v6942 = vadd.f32 %v6918, %v835
        %6943 = vst [vmem:[%s450] sm:$0xff] %v6919
        %6944 = vst [vmem:[%s450 + $0x8] sm:$0xff] %v6920
        %6945 = vst [vmem:[%s450 + $0x10] sm:$0xff] %v6921
        %6946 = vst [vmem:[%s450 + $0x18] sm:$0xff] %v6922
        %6947 = vst [vmem:[%s450 + $0x20] sm:$0xff] %v6923
        %6948 = vst [vmem:[%s450 + $0x28] sm:$0xff] %v6924
        %6949 = vst [vmem:[%s450 + $0x30] sm:$0xff] %v6925
        %6950 = vst [vmem:[%s450 + $0x38] sm:$0xff] %v6926
        %6951 = vst [vmem:[%s450 + $0x40] sm:$0xff] %v6927
        %6952 = vst [vmem:[%s450 + $0x48] sm:$0xff] %v6928
        %6953 = vst [vmem:[%s450 + $0x50] sm:$0xff] %v6929
        %6954 = vst [vmem:[%s450 + $0x58] sm:$0xff] %v6930
        %6955 = vst [vmem:[%s450 + $0x60] sm:$0xff] %v6931
        %6956 = vst [vmem:[%s450 + $0x68] sm:$0xff] %v6932
        %6957 = vst [vmem:[%s450 + $0x70] sm:$0xff] %v6933
        %6958 = vst [vmem:[%s450 + $0x78] sm:$0xff] %v6934
        %6959 = vst [vmem:[%s450 + $0x80] sm:$0xff] %v6935
        %6960 = vst [vmem:[%s450 + $0x88] sm:$0xff] %v6936
        %6961 = vst [vmem:[%s450 + $0x90] sm:$0xff] %v6937
        %6962 = vst [vmem:[%s450 + $0x98] sm:$0xff] %v6938
        %6963 = vst [vmem:[%s450 + $0xa0] sm:$0xff] %v6939
        %6964 = vst [vmem:[%s450 + $0xa8] sm:$0xff] %v6940
        %6965 = vst [vmem:[%s450 + $0xb0] sm:$0xff] %v6941
        %6966 = vst [vmem:[%s450 + $0xb8] sm:$0xff] %v6942
        %s6967 = sand.u32 %s242, 1
        %s6968 = scalar_lea.sflag [#allocation4], %s6967
        %s6969 = sand.u32 %s242, 1
        %s6970 = smul.addr %s6969, 192
        %s6971 = scalar_lea.vmem [#allocation10], %s6970
        // Predicated region
        $region69: #{tpu_custom_call.1} parent=51 // pred_check
          %p6972 = pneg %p252
        $region70: #{tpu_custom_call.1} parent=51 // pred_check_branch
          %6974 = sbr.rel (%p6972) target = $region72
        $region71: #{tpu_custom_call.1} parent=51 // pred_region
          %s6975 = smul.u32 24, %s34
          %6977 = vsyncadd %s6968, 0
          %s6978 = smul.addr %s33, 48
          %s6979 = sadd.s32 %s6975, %s6978
          %s6980 = smul.addr %s6979, 8
          %s6981 = scalar_lea.hbm %s8, %s6980
          %s6982 = sshll.u32 %s6971, 4
          %s6983 = int_to_ptr.vmem [resolvable:$true] %s6982
          %s6984 = sshll.u32 %s6981, 4
          %s6985 = int_to_ptr.hbm [resolvable:$true] %s6984
          %6990 = dma.vmem_to_hbm [thread:$0]  %s6983, 3072, %s6985, %s6968, 128, 128, 8
        $region72: #{tpu_custom_call.1} parent=51 // pred_fallthru
          _
      $region52: #{tpu_custom_call.1} parent=5 // pred_fallthru
        _
      %p6991 = scmp.le.s32.totalorder 2, %s24
      // Predicated region
      $region73: #{tpu_custom_call.1} parent=5 // pred_check
        %p6992 = pneg %p6991
      $region74: #{tpu_custom_call.1} parent=5 // pred_check_branch
        %6994 = sbr.rel (%p6992) target = $region76
      $region75: #{tpu_custom_call.1} parent=5 // pred_region
        %s6995 = ssub.s32 %s24, 2
        // Predicated region
        $region77: #{tpu_custom_call.1} parent=75 // pred_check
          %p6996 = pneg %p258
        $region78: #{tpu_custom_call.1} parent=75 // pred_check_branch
          %6998 = sbr.rel (%p6996) target = $region80
        $region79: #{tpu_custom_call.1} parent=75 // pred_region
          %s6999 = sand.u32 %s243, 1
          %s7000 = scalar_lea.sflag [#allocation4], %s6999
          %s7001 = sand.u32 %s243, 1
          %s7002 = smul.addr %s7001, 192
          %s7003 = scalar_lea.vmem [#allocation10], %s7002
          %7005 = dma.done %s7000, 3072
        $region80: #{tpu_custom_call.1} parent=75 // pred_fallthru
          _
      $region76: #{tpu_custom_call.1} parent=5 // pred_fallthru
        _
    $region6: #{tpu_custom_call.1} parent=1 // loop_footer
      %s28 = sadd.s32 1, %s24
    $region7: #{tpu_custom_call.1} parent=1 // loop_footer_branch
      %23 = sbr.rel target = $region3
    $region8: #{tpu_custom_call.1} parent=1 // loop_exit
      _
    %7006 = vsyncpa [#allocation3], 1
    %s7007 = scalar_lea.sflag [#allocation3], 1
    %7008 = vsyncpa %s7007, 1
    %7009 = vsyncpa [#allocation6], 1
    %s7010 = scalar_lea.sflag [#allocation6], 1
    %7011 = vsyncpa %s7010, 1
    %7012 = vsyncpa [#allocation9], 1
    %7013 = vsyncpa [#allocation4], 1
    %s7014 = scalar_lea.sflag [#allocation4], 1
    %7015 = vsyncpa %s7014, 1

</llo_original>
